<compile_context>
chip_gen: v7x
topology: tpu7x:2x2x1
jax: 0.10.0
libtpu: 0.0.40
codegen_flags: <defaults>
</compile_context>

<pallas_src>
import jax
import jax.numpy as jnp
from jax.experimental import pallas as pl
from jax.experimental.pallas import tpu as pltpu

# ----------------------------------------------------------------------------
# Small-model hyperparameters (consistent with DALLE.__init__ arithmetic)
# ----------------------------------------------------------------------------
DIM = 32
HEADS = 2
DIM_HEAD = 16
DIM_INNER = HEADS * DIM_HEAD          # 32
DEPTH = 2
FF_MULT = 4
FF_HID = FF_MULT * DIM                # 128

TEXT_SEQ_LEN = 8
NUM_TEXT_TOKENS_RAW = 64              # "num_text_tokens" ctor arg
NUM_TEXT_TOKENS = NUM_TEXT_TOKENS_RAW + TEXT_SEQ_LEN   # 72 (ctor adds text_seq_len)

IMAGE_SIZE = 16                       # vae.image_size
VAE_NUM_LAYERS = 2                    # vae.num_layers
NUM_IMAGE_TOKENS = 64                 # vae.num_tokens
IMAGE_FMAP = IMAGE_SIZE // (2 ** VAE_NUM_LAYERS)        # 4
IMAGE_SEQ_LEN = IMAGE_FMAP ** 2                          # 16

TOTAL_TOKENS = NUM_TEXT_TOKENS + NUM_IMAGE_TOKENS        # 136
TOTAL_TOKENS_PAD = 256                                   # lane-dense (2 x 128)
TOTAL_SEQ_LEN = TEXT_SEQ_LEN + IMAGE_SEQ_LEN             # 24

MAX_NEG_F32 = -jnp.finfo(jnp.float32).max
ATTN_SCALE = DIM_HEAD ** -0.5
INV_SQRT2 = 0.7071067811865476

# Packed weight slab layout: every matrix column-padded to 256 lanes, bf16.
W_LAYER_ROWS = DIM + DIM_INNER + DIM + FF_HID            # 224 rows / layer
W_QKV_OFF = 0                                            # (DIM, 96->256)
W_O_OFF = DIM                                            # (DIM_INNER, 32->256)
W_FF1_OFF = DIM + DIM_INNER                              # (DIM, 256)
W_FF2_OFF = DIM + DIM_INNER + DIM                        # (FF_HID, 32->256)
W_LOGITS_OFF = DEPTH * W_LAYER_ROWS                      # (DIM, 136->256)
W_TOTAL_ROWS = W_LOGITS_OFF + DIM                        # 480

# Packed bias / LayerNorm slab layout: one (1, 256) f32 row per vector.
B_LAYER_ROWS = 7          # ln1_g, ln1_b, bo, ln2_g, ln2_b, b1, b2
B_FINAL_OFF = DEPTH * B_LAYER_ROWS                       # 14
B_TOTAL_ROWS = B_FINAL_OFF + 3                           # 17 (ln_f_g, ln_f_b, b_logits)


# ----------------------------------------------------------------------------
# In-kernel helpers (elementwise math stays f32 -> safe on v5e too)
# ----------------------------------------------------------------------------
def _layernorm(x, gamma, beta, eps=1e-5):
    mu = jnp.mean(x, axis=-1, keepdims=True)
    var = jnp.mean((x - mu) ** 2, axis=-1, keepdims=True)
    return (x - mu) * jax.lax.rsqrt(var + eps) * gamma + beta


def _gelu_exact(x):
    # PyTorch F.gelu default (erf-based)
    return 0.5 * x * (1.0 + jax.lax.erf(x * INV_SQRT2))


# ----------------------------------------------------------------------------
# Fused Pallas kernel: embedding gather + DEPTH x (causal MHA + GEGLU FF) +
# final LayerNorm + logits projection + logits_mask fill.  grid=().
# ----------------------------------------------------------------------------
def fused_forward_kernel(ids_ref, emb_ref, w_ref, b_ref, o_ref):
    bn = ids_ref.shape[0]
    n = TOTAL_SEQ_LEN
    batch = bn // n

    bias = b_ref[...]                                     # (17, 256) f32, tiny

    # ---- fused embedding lookup: exact one-hot f32 matmul gather ----
    ids = ids_ref[...]                                    # (BN, 1) int32
    tok_i = jax.lax.broadcasted_iota(jnp.int32, (bn, TOTAL_TOKENS_PAD), 1)
    onehot = (tok_i == ids).astype(jnp.float32)           # (BN, 256)
    x = jnp.dot(onehot, emb_ref[...],
                preferred_element_type=jnp.float32)       # (BN, D) f32

    # ---- attention mask: causal AND same-batch (block-diagonal), built once ----
    row = jax.lax.broadcasted_iota(jnp.int32, (bn, bn), 0)
    col = jax.lax.broadcasted_iota(jnp.int32, (bn, bn), 1)
    allowed = col <= row
    for b in range(1, batch):                             # no int div/mod needed
        allowed = allowed & ((row >= b * n) == (col >= b * n))

    for l in range(DEPTH):
        wbase = l * W_LAYER_ROWS
        bbase = l * B_LAYER_ROWS
        ln1_g = bias[bbase + 0:bbase + 1, :DIM]
        ln1_b = bias[bbase + 1:bbase + 2, :DIM]
        bo = bias[bbase + 2:bbase + 3, :DIM]
        ln2_g = bias[bbase + 3:bbase + 4, :DIM]
        ln2_b = bias[bbase + 4:bbase + 5, :DIM]
        b1 = bias[bbase + 5:bbase + 6, :]
        b2 = bias[bbase + 6:bbase + 7, :DIM]

        # ---- PreNorm causal multi-head attention (batch folded into rows) ----
        h = _layernorm(x, ln1_g, ln1_b).astype(jnp.bfloat16)
        wqkv = w_ref[wbase + W_QKV_OFF:wbase + W_QKV_OFF + DIM, :]     # (32, 256) bf16
        qkv = jnp.dot(h, wqkv, preferred_element_type=jnp.float32)     # (BN, 256); cols>=96 zero

        head_outs = []
        for hd in range(HEADS):
            q = (qkv[:, hd * DIM_HEAD:(hd + 1) * DIM_HEAD]
                 * ATTN_SCALE).astype(jnp.bfloat16)
            k = qkv[:, DIM_INNER + hd * DIM_HEAD:
                    DIM_INNER + (hd + 1) * DIM_HEAD].astype(jnp.bfloat16)
            v = qkv[:, 2 * DIM_INNER + hd * DIM_HEAD:
                    2 * DIM_INNER + (hd + 1) * DIM_HEAD].astype(jnp.bfloat16)
            # NT-form contraction on the head dim (no explicit k transpose)
            s = jax.lax.dot_general(q, k, (((1,), (1,)), ((), ())),
                                    preferred_element_type=jnp.float32)  # (BN, BN)
            s = jnp.where(allowed, s, MAX_NEG_F32)
            s = s - jnp.max(s, axis=-1, keepdims=True)
            p = jnp.exp(s)
            p = p * pl.reciprocal(jnp.sum(p, axis=-1, keepdims=True), approx=True)
            head_outs.append(jnp.dot(p.astype(jnp.bfloat16), v,
                                     preferred_element_type=jnp.float32))
        attn = jnp.concatenate(head_outs, axis=-1).astype(jnp.bfloat16)  # (BN, Di)
        wo = w_ref[wbase + W_O_OFF:wbase + W_O_OFF + DIM_INNER, :]
        attn = jnp.dot(attn, wo, preferred_element_type=jnp.float32)[:, :DIM] + bo
        x = x + attn

        # ---- PreNorm GEGLU feed-forward ----
        h2 = _layernorm(x, ln2_g, ln2_b).astype(jnp.bfloat16)
        w1 = w_ref[wbase + W_FF1_OFF:wbase + W_FF1_OFF + DIM, :]
        u = jnp.dot(h2, w1, preferred_element_type=jnp.float32) + b1    # (BN, 256)
        a = u[:, :FF_HID]
        g = u[:, FF_HID:]
        gated = (a * _gelu_exact(g)).astype(jnp.bfloat16)               # (BN, 128)
        w2 = w_ref[wbase + W_FF2_OFF:wbase + W_FF2_OFF + FF_HID, :]
        ff = jnp.dot(gated, w2, preferred_element_type=jnp.float32)[:, :DIM] + b2
        x = x + ff

    # ---- to_logits = LayerNorm -> Linear(dim, total_tokens) + mask fill ----
    ln_f_g = bias[B_FINAL_OFF + 0:B_FINAL_OFF + 1, :DIM]
    ln_f_b = bias[B_FINAL_OFF + 1:B_FINAL_OFF + 2, :DIM]
    b_log = bias[B_FINAL_OFF + 2:B_FINAL_OFF + 3, :]
    hf = _layernorm(x, ln_f_g, ln_f_b).astype(jnp.bfloat16)
    w_log = w_ref[W_LOGITS_OFF:W_LOGITS_OFF + DIM, :]
    logits = jnp.dot(hf, w_log, preferred_element_type=jnp.float32) + b_log

    # logits_mask exactly as registered in __init__, built lane-dense at
    # (BN, 256) with iotas (no concat copy, no int div/mod).
    rowL = jax.lax.broadcasted_iota(jnp.int32, (bn, TOTAL_TOKENS_PAD), 0)
    tokL = jax.lax.broadcasted_iota(jnp.int32, (bn, TOTAL_TOKENS_PAD), 1)
    is_text = rowL < TEXT_SEQ_LEN
    for b in range(1, batch):
        is_text = is_text | ((rowL >= b * n) & (rowL < b * n + TEXT_SEQ_LEN))
    lmask = ((is_text & (tokL >= NUM_TEXT_TOKENS)) |
             ((~is_text) & (tokL < NUM_TEXT_TOKENS)))
    o_ref[...] = jnp.where(lmask, MAX_NEG_F32, logits)    # lane-dense (BN, 256) store


# ----------------------------------------------------------------------------
# Cost estimate (advisory; helps XLA schedule the tiny custom call)
# ----------------------------------------------------------------------------
def _cost_estimate(batch, n):
    bn = batch * n
    emb_mm = 2 * bn * TOTAL_TOKENS_PAD * DIM
    per_layer = (2 * bn * DIM * TOTAL_TOKENS_PAD           # qkv (padded width)
                 + HEADS * 2 * bn * bn * DIM_HEAD * 2       # scores + pv
                 + 2 * bn * DIM_INNER * TOTAL_TOKENS_PAD    # out proj (padded)
                 + 2 * bn * DIM * TOTAL_TOKENS_PAD          # ff in
                 + 2 * bn * FF_HID * TOTAL_TOKENS_PAD)      # ff out (padded)
    flops = emb_mm + DEPTH * per_layer + 2 * bn * DIM * TOTAL_TOKENS_PAD
    transcendentals = DEPTH * (HEADS * bn * bn + bn * FF_HID) + 8 * bn
    bytes_accessed = (4 * bn
                      + 4 * TOTAL_TOKENS_PAD * DIM
                      + 2 * W_TOTAL_ROWS * TOTAL_TOKENS_PAD
                      + 4 * B_TOTAL_ROWS * TOTAL_TOKENS_PAD
                      + 4 * bn * TOTAL_TOKENS_PAD)
    return pl.CostEstimate(flops=flops, transcendentals=transcendentals,
                           bytes_accessed=bytes_accessed)


# ----------------------------------------------------------------------------
# One-time parameter packing: 2 lane-dense slabs + combined embedding table
# ----------------------------------------------------------------------------
def pack_params(params):
    emb = jnp.zeros((TOTAL_TOKENS_PAD, DIM), jnp.float32)
    emb = emb.at[:NUM_TEXT_TOKENS].set(params['text_emb'])
    emb = emb.at[NUM_TEXT_TOKENS:NUM_TEXT_TOKENS + NUM_IMAGE_TOKENS].set(
        params['image_emb'])

    def pad_cols(w):
        return jnp.pad(w, ((0, 0), (0, TOTAL_TOKENS_PAD - w.shape[1])))

    w_rows, b_rows = [], []
    for layer in params['layers']:
        w_rows += [pad_cols(layer['wqkv']), pad_cols(layer['wo']),
                   pad_cols(layer['w1']), pad_cols(layer['w2'])]
        b_rows += [pad_cols(layer['ln1_g']), pad_cols(layer['ln1_b']),
                   pad_cols(layer['bo']), pad_cols(layer['ln2_g']),
                   pad_cols(layer['ln2_b']), pad_cols(layer['b1']),
                   pad_cols(layer['b2'])]
    w_rows.append(pad_cols(params['w_logits']))
    b_rows += [pad_cols(params['ln_f_g']), pad_cols(params['ln_f_b']),
               pad_cols(params['b_logits'])]

    w_slab = jnp.concatenate(w_rows, axis=0).astype(jnp.bfloat16)
    b_slab = jnp.concatenate(b_rows, axis=0).astype(jnp.float32)
    assert w_slab.shape == (W_TOTAL_ROWS, TOTAL_TOKENS_PAD)
    assert b_slab.shape == (B_TOTAL_ROWS, TOTAL_TOKENS_PAD)
    return {'emb': emb, 'w_slab': w_slab, 'b_slab': b_slab}


# ----------------------------------------------------------------------------
# Forward wrapper: only tiny integer token prep happens outside the kernel.
# ----------------------------------------------------------------------------
@jax.jit
def dalle_forward(text, image, packed):
    """DALLE.forward(text, image, return_loss=False) with pre-tokenized image."""
    B = text.shape[0]

    # remap padding (0) text tokens to unique pad ids, exactly like the module
    text_range = jnp.arange(TEXT_SEQ_LEN, dtype=text.dtype) + (
        NUM_TEXT_TOKENS - TEXT_SEQ_LEN)
    text = jnp.where(text == 0, text_range[None, :], text)
    text = jnp.pad(text, ((0, 0), (1, 0)), constant_values=0)     # F.pad (1,0) -> (B, 9)
    # text_pos_emb / image_pos_emb are always(0) because rotary_emb=True
    image_ids = image + NUM_TEXT_TOKENS                           # offset into combined table
    ids = jnp.concatenate([text, image_ids], axis=1)              # (B, 25)
    ids = ids[:, :TOTAL_SEQ_LEN]                                  # drop last token -> (B, 24)
    ids_flat = ids.reshape(B * TOTAL_SEQ_LEN, 1).astype(jnp.int32)

    vmem = pl.BlockSpec(memory_space=pltpu.MemorySpace.VMEM)
    logits_flat = pl.pallas_call(
        fused_forward_kernel,
        out_shape=jax.ShapeDtypeStruct((B * TOTAL_SEQ_LEN, TOTAL_TOKENS_PAD),
                                       jnp.float32),
        in_specs=[vmem, vmem, vmem, vmem],
        out_specs=vmem,
        cost_estimate=_cost_estimate(B, TOTAL_SEQ_LEN),
    )(ids_flat, packed['emb'], packed['w_slab'], packed['b_slab'])

    logits = logits_flat.reshape(B, TOTAL_SEQ_LEN,
                                 TOTAL_TOKENS_PAD)[:, :, :TOTAL_TOKENS]
    return logits


# ----------------------------------------------------------------------------
# Deterministic synthetic parameter init
# ----------------------------------------------------------------------------
def make_params(key):
    keys = iter(jax.random.split(key, 64))

    def nrm(shape, s=0.02):
        return (s * jax.random.normal(next(keys), shape)).astype(jnp.float32)

    params = {
        'text_emb': nrm((NUM_TEXT_TOKENS, DIM)),
        'image_emb': nrm((NUM_IMAGE_TOKENS, DIM)),
        'ln_f_g': jnp.ones((1, DIM), jnp.float32),
        'ln_f_b': jnp.zeros((1, DIM), jnp.float32),
        'w_logits': nrm((DIM, TOTAL_TOKENS)),
        'b_logits': jnp.zeros((1, TOTAL_TOKENS), jnp.float32),
        'layers': [],
    }
    for _ in range(DEPTH):
        params['layers'].append({
            'ln1_g': jnp.ones((1, DIM), jnp.float32),
            'ln1_b': jnp.zeros((1, DIM), jnp.float32),
            'wqkv': nrm((DIM, 3 * DIM_INNER)),               # to_qkv (no bias)
            'wo': nrm((DIM_INNER, DIM)),
            'bo': jnp.zeros((1, DIM), jnp.float32),
            'ln2_g': jnp.ones((1, DIM), jnp.float32),
            'ln2_b': jnp.zeros((1, DIM), jnp.float32),
            'w1': nrm((DIM, 2 * FF_MULT * DIM)),             # GEGLU in-proj
            'b1': jnp.zeros((1, 2 * FF_MULT * DIM), jnp.float32),
            'w2': nrm((FF_MULT * DIM, DIM)),
            'b2': jnp.zeros((1, DIM), jnp.float32),
        })
    return params


if __name__ == "__main__":
    key = jax.random.PRNGKey(0)
    kp, kt, ki = jax.random.split(key, 3)

    params = make_params(kp)
    packed = pack_params(params)     # one-time weight packing (bf16 slabs)

    B = 2
    # text token ids (0 acts as padding and gets remapped, as in the module)
    text = jax.random.randint(kt, (B, TEXT_SEQ_LEN), 0, NUM_TEXT_TOKENS_RAW,
                              dtype=jnp.int32)
    # pre-tokenized image codebook indices (vae.get_codebook_indices output)
    image = jax.random.randint(ki, (B, IMAGE_SEQ_LEN), 0, NUM_IMAGE_TOKENS,
                               dtype=jnp.int32)

    logits = dalle_forward(text, image, params and packed)
    jax.block_until_ready(logits)

    assert logits.shape == (B, TOTAL_SEQ_LEN, TOTAL_TOKENS)
    # text rows predict text tokens (finite), image rows predict image tokens
    assert bool(jnp.isfinite(logits[0, 0, 0]))
    assert bool(jnp.isfinite(logits[0, TEXT_SEQ_LEN, NUM_TEXT_TOKENS]))
    # masked region is clamped to max-neg
    assert bool(logits[0, 0, NUM_TEXT_TOKENS] < -1e37)
    print("KERNEL_OK")
</pallas_src>

<mosaic_0001>
module attributes {stable_mosaic.version = 11 : i64} {
  func.func @fused_forward_kernel(%arg0: memref<48x1xi32, #tpu.memory_space<vmem>>, %arg1: memref<256x32xf32, #tpu.memory_space<vmem>>, %arg2: memref<480x256xbf16, #tpu.memory_space<vmem>>, %arg3: memref<17x256xf32, #tpu.memory_space<vmem>>, %arg4: memref<48x256xf32, #tpu.memory_space<vmem>>) attributes {dimension_semantics = [], scalar_prefetch = 0 : i64, scratch_operands = 0 : i64, tpu.core_type = #tpu.core_type<tc>} {
    %c0 = arith.constant 0 : index
    %c0_0 = arith.constant 0 : index
    %0 = vector.load %arg3[%c0, %c0_0] : memref<17x256xf32, #tpu.memory_space<vmem>>, vector<17x256xf32>
    %c0_1 = arith.constant 0 : index
    %c0_2 = arith.constant 0 : index
    %1 = vector.load %arg0[%c0_1, %c0_2] : memref<48x1xi32, #tpu.memory_space<vmem>>, vector<48x1xi32>
    %2 = tpu.iota {dimensions = array<i32: 1>} : vector<48x256xi32>
    %3 = vector.broadcast %1 : vector<48x1xi32> to vector<48x256xi32>
    %4 = arith.cmpi eq, %2, %3 : vector<48x256xi32>
    %5 = arith.extui %4 : vector<48x256xi1> to vector<48x256xi32>
    %6 = arith.sitofp %5 : vector<48x256xi32> to vector<48x256xf32>
    %c0_3 = arith.constant 0 : index
    %c0_4 = arith.constant 0 : index
    %7 = vector.load %arg1[%c0_3, %c0_4] : memref<256x32xf32, #tpu.memory_space<vmem>>, vector<256x32xf32>
    %cst = arith.constant dense<0.000000e+00> : vector<48x32xf32>
    %8 = tpu.matmul %6, %7, %cst {dimension_numbers = #tpu.dot_dimension_numbers<[1], [0], [0], [1], [0, 0, 1, 1], [], []>} : vector<48x256xf32>, vector<256x32xf32>, vector<48x32xf32> -> vector<48x32xf32>
    %9 = tpu.iota {dimensions = array<i32: 0>} : vector<48x48xi32>
    %10 = tpu.iota {dimensions = array<i32: 1>} : vector<48x48xi32>
    %11 = arith.cmpi sle, %10, %9 : vector<48x48xi32>
    %c24_i32 = arith.constant 24 : i32
    %12 = vector.broadcast %c24_i32 : i32 to vector<48x48xi32>
    %13 = arith.cmpi sge, %9, %12 : vector<48x48xi32>
    %c24_i32_5 = arith.constant 24 : i32
    %14 = vector.broadcast %c24_i32_5 : i32 to vector<48x48xi32>
    %15 = arith.cmpi sge, %10, %14 : vector<48x48xi32>
    %16 = arith.xori %13, %15 : vector<48x48xi1>
    %cst_6 = arith.constant dense<true> : vector<48x48xi1>
    %17 = arith.xori %16, %cst_6 : vector<48x48xi1>
    %18 = arith.andi %11, %17 : vector<48x48xi1>
    %19 = vector.extract_strided_slice %0 {offsets = [0, 0], sizes = [1, 32], strides = [1, 1]} : vector<17x256xf32> to vector<1x32xf32>
    %20 = vector.extract_strided_slice %0 {offsets = [1, 0], sizes = [1, 32], strides = [1, 1]} : vector<17x256xf32> to vector<1x32xf32>
    %21 = vector.extract_strided_slice %0 {offsets = [2, 0], sizes = [1, 32], strides = [1, 1]} : vector<17x256xf32> to vector<1x32xf32>
    %22 = vector.extract_strided_slice %0 {offsets = [3, 0], sizes = [1, 32], strides = [1, 1]} : vector<17x256xf32> to vector<1x32xf32>
    %23 = vector.extract_strided_slice %0 {offsets = [4, 0], sizes = [1, 32], strides = [1, 1]} : vector<17x256xf32> to vector<1x32xf32>
    %24 = vector.extract_strided_slice %0 {offsets = [5, 0], sizes = [1, 256], strides = [1, 1]} : vector<17x256xf32> to vector<1x256xf32>
    %25 = vector.extract_strided_slice %0 {offsets = [6, 0], sizes = [1, 32], strides = [1, 1]} : vector<17x256xf32> to vector<1x32xf32>
    %cst_7 = arith.constant dense<0.000000e+00> : vector<48xf32>
    %26 = vector.multi_reduction <add>, %8, %cst_7 [1] : vector<48x32xf32> to vector<48xf32>
    %27 = vector.shape_cast %26 : vector<48xf32> to vector<48x1xf32>
    %cst_8 = arith.constant 3.200000e+01 : f32
    %28 = vector.broadcast %cst_8 : f32 to vector<48x1xf32>
    %29 = arith.divf %27, %28 : vector<48x1xf32>
    %30 = vector.broadcast %29 : vector<48x1xf32> to vector<48x32xf32>
    %31 = arith.subf %8, %30 : vector<48x32xf32>
    %32 = arith.mulf %31, %31 : vector<48x32xf32>
    %cst_9 = arith.constant dense<0.000000e+00> : vector<48xf32>
    %33 = vector.multi_reduction <add>, %32, %cst_9 [1] : vector<48x32xf32> to vector<48xf32>
    %34 = vector.shape_cast %33 : vector<48xf32> to vector<48x1xf32>
    %cst_10 = arith.constant 3.200000e+01 : f32
    %35 = vector.broadcast %cst_10 : f32 to vector<48x1xf32>
    %36 = arith.divf %34, %35 : vector<48x1xf32>
    %37 = vector.broadcast %29 : vector<48x1xf32> to vector<48x32xf32>
    %38 = arith.subf %8, %37 : vector<48x32xf32>
    %cst_11 = arith.constant 9.99999974E-6 : f32
    %39 = vector.broadcast %cst_11 : f32 to vector<48x1xf32>
    %40 = arith.addf %36, %39 : vector<48x1xf32>
    %41 = math.rsqrt %40 : vector<48x1xf32>
    %42 = vector.broadcast %41 : vector<48x1xf32> to vector<48x32xf32>
    %43 = arith.mulf %38, %42 : vector<48x32xf32>
    %44 = vector.broadcast %19 : vector<1x32xf32> to vector<48x32xf32>
    %45 = arith.mulf %43, %44 : vector<48x32xf32>
    %46 = vector.broadcast %20 : vector<1x32xf32> to vector<48x32xf32>
    %47 = arith.addf %45, %46 : vector<48x32xf32>
    %48 = arith.truncf %47 : vector<48x32xf32> to vector<48x32xbf16>
    %c0_12 = arith.constant 0 : index
    %c0_13 = arith.constant 0 : index
    %49 = vector.load %arg2[%c0_12, %c0_13] : memref<480x256xbf16, #tpu.memory_space<vmem>>, vector<32x256xbf16>
    %cst_14 = arith.constant dense<0.000000e+00> : vector<48x256xf32>
    %50 = tpu.matmul %48, %49, %cst_14 {dimension_numbers = #tpu.dot_dimension_numbers<[1], [0], [0], [1], [0, 0, 1, 1], [], []>} : vector<48x32xbf16>, vector<32x256xbf16>, vector<48x256xf32> -> vector<48x256xf32>
    %51 = vector.extract_strided_slice %50 {offsets = [0, 0], sizes = [48, 16], strides = [1, 1]} : vector<48x256xf32> to vector<48x16xf32>
    %cst_15 = arith.constant 2.500000e-01 : f32
    %52 = vector.broadcast %cst_15 : f32 to vector<48x16xf32>
    %53 = arith.mulf %51, %52 : vector<48x16xf32>
    %54 = arith.truncf %53 : vector<48x16xf32> to vector<48x16xbf16>
    %55 = vector.extract_strided_slice %50 {offsets = [0, 32], sizes = [48, 16], strides = [1, 1]} : vector<48x256xf32> to vector<48x16xf32>
    %56 = arith.truncf %55 : vector<48x16xf32> to vector<48x16xbf16>
    %57 = vector.extract_strided_slice %50 {offsets = [0, 64], sizes = [48, 16], strides = [1, 1]} : vector<48x256xf32> to vector<48x16xf32>
    %58 = arith.truncf %57 : vector<48x16xf32> to vector<48x16xbf16>
    %cst_16 = arith.constant dense<0.000000e+00> : vector<48x48xf32>
    %59 = tpu.matmul %54, %56, %cst_16 {dimension_numbers = #tpu.dot_dimension_numbers<[1], [1], [0], [0], [0, 0, 1, 0], [], []>} : vector<48x16xbf16>, vector<48x16xbf16>, vector<48x48xf32> -> vector<48x48xf32>
    %cst_17 = arith.constant -3.40282347E+38 : f32
    %60 = vector.broadcast %cst_17 : f32 to vector<48x48xf32>
    %61 = arith.select %18, %59, %60 : vector<48x48xi1>, vector<48x48xf32>
    %cst_18 = arith.constant dense<0xFF800000> : vector<48xf32>
    %62 = vector.multi_reduction <maximumf>, %61, %cst_18 [1] : vector<48x48xf32> to vector<48xf32>
    %63 = vector.shape_cast %62 : vector<48xf32> to vector<48x1xf32>
    %64 = vector.broadcast %63 : vector<48x1xf32> to vector<48x48xf32>
    %65 = arith.subf %61, %64 : vector<48x48xf32>
    %66 = math.exp %65 : vector<48x48xf32>
    %cst_19 = arith.constant dense<0.000000e+00> : vector<48xf32>
    %67 = vector.multi_reduction <add>, %66, %cst_19 [1] : vector<48x48xf32> to vector<48xf32>
    %68 = vector.shape_cast %67 : vector<48xf32> to vector<48x1xf32>
    %69 = tpu.reciprocal %68 {approx = true} : vector<48x1xf32> -> vector<48x1xf32>
    %70 = vector.broadcast %69 : vector<48x1xf32> to vector<48x48xf32>
    %71 = arith.mulf %66, %70 : vector<48x48xf32>
    %72 = arith.truncf %71 : vector<48x48xf32> to vector<48x48xbf16>
    %cst_20 = arith.constant dense<0.000000e+00> : vector<48x16xf32>
    %73 = tpu.matmul %72, %58, %cst_20 {dimension_numbers = #tpu.dot_dimension_numbers<[1], [0], [0], [1], [0, 0, 1, 1], [], []>} : vector<48x48xbf16>, vector<48x16xbf16>, vector<48x16xf32> -> vector<48x16xf32>
    %74 = vector.extract_strided_slice %50 {offsets = [0, 16], sizes = [48, 16], strides = [1, 1]} : vector<48x256xf32> to vector<48x16xf32>
    %cst_21 = arith.constant 2.500000e-01 : f32
    %75 = vector.broadcast %cst_21 : f32 to vector<48x16xf32>
    %76 = arith.mulf %74, %75 : vector<48x16xf32>
    %77 = arith.truncf %76 : vector<48x16xf32> to vector<48x16xbf16>
    %78 = vector.extract_strided_slice %50 {offsets = [0, 48], sizes = [48, 16], strides = [1, 1]} : vector<48x256xf32> to vector<48x16xf32>
    %79 = arith.truncf %78 : vector<48x16xf32> to vector<48x16xbf16>
    %80 = vector.extract_strided_slice %50 {offsets = [0, 80], sizes = [48, 16], strides = [1, 1]} : vector<48x256xf32> to vector<48x16xf32>
    %81 = arith.truncf %80 : vector<48x16xf32> to vector<48x16xbf16>
    %cst_22 = arith.constant dense<0.000000e+00> : vector<48x48xf32>
    %82 = tpu.matmul %77, %79, %cst_22 {dimension_numbers = #tpu.dot_dimension_numbers<[1], [1], [0], [0], [0, 0, 1, 0], [], []>} : vector<48x16xbf16>, vector<48x16xbf16>, vector<48x48xf32> -> vector<48x48xf32>
    %cst_23 = arith.constant -3.40282347E+38 : f32
    %83 = vector.broadcast %cst_23 : f32 to vector<48x48xf32>
    %84 = arith.select %18, %82, %83 : vector<48x48xi1>, vector<48x48xf32>
    %cst_24 = arith.constant dense<0xFF800000> : vector<48xf32>
    %85 = vector.multi_reduction <maximumf>, %84, %cst_24 [1] : vector<48x48xf32> to vector<48xf32>
    %86 = vector.shape_cast %85 : vector<48xf32> to vector<48x1xf32>
    %87 = vector.broadcast %86 : vector<48x1xf32> to vector<48x48xf32>
    %88 = arith.subf %84, %87 : vector<48x48xf32>
    %89 = math.exp %88 : vector<48x48xf32>
    %cst_25 = arith.constant dense<0.000000e+00> : vector<48xf32>
    %90 = vector.multi_reduction <add>, %89, %cst_25 [1] : vector<48x48xf32> to vector<48xf32>
    %91 = vector.shape_cast %90 : vector<48xf32> to vector<48x1xf32>
    %92 = tpu.reciprocal %91 {approx = true} : vector<48x1xf32> -> vector<48x1xf32>
    %93 = vector.broadcast %92 : vector<48x1xf32> to vector<48x48xf32>
    %94 = arith.mulf %89, %93 : vector<48x48xf32>
    %95 = arith.truncf %94 : vector<48x48xf32> to vector<48x48xbf16>
    %cst_26 = arith.constant dense<0.000000e+00> : vector<48x16xf32>
    %96 = tpu.matmul %95, %81, %cst_26 {dimension_numbers = #tpu.dot_dimension_numbers<[1], [0], [0], [1], [0, 0, 1, 1], [], []>} : vector<48x48xbf16>, vector<48x16xbf16>, vector<48x16xf32> -> vector<48x16xf32>
    %97 = tpu.concatenate %73, %96 in 1 : vector<48x16xf32>, vector<48x16xf32> -> vector<48x32xf32>
    %98 = arith.truncf %97 : vector<48x32xf32> to vector<48x32xbf16>
    %c32 = arith.constant 32 : index
    %c0_27 = arith.constant 0 : index
    %99 = vector.load %arg2[%c32, %c0_27] : memref<480x256xbf16, #tpu.memory_space<vmem>>, vector<32x256xbf16>
    %cst_28 = arith.constant dense<0.000000e+00> : vector<48x256xf32>
    %100 = tpu.matmul %98, %99, %cst_28 {dimension_numbers = #tpu.dot_dimension_numbers<[1], [0], [0], [1], [0, 0, 1, 1], [], []>} : vector<48x32xbf16>, vector<32x256xbf16>, vector<48x256xf32> -> vector<48x256xf32>
    %101 = vector.extract_strided_slice %100 {offsets = [0, 0], sizes = [48, 32], strides = [1, 1]} : vector<48x256xf32> to vector<48x32xf32>
    %102 = vector.broadcast %21 : vector<1x32xf32> to vector<48x32xf32>
    %103 = arith.addf %101, %102 : vector<48x32xf32>
    %104 = arith.addf %8, %103 : vector<48x32xf32>
    %cst_29 = arith.constant dense<0.000000e+00> : vector<48xf32>
    %105 = vector.multi_reduction <add>, %104, %cst_29 [1] : vector<48x32xf32> to vector<48xf32>
    %106 = vector.shape_cast %105 : vector<48xf32> to vector<48x1xf32>
    %cst_30 = arith.constant 3.200000e+01 : f32
    %107 = vector.broadcast %cst_30 : f32 to vector<48x1xf32>
    %108 = arith.divf %106, %107 : vector<48x1xf32>
    %109 = vector.broadcast %108 : vector<48x1xf32> to vector<48x32xf32>
    %110 = arith.subf %104, %109 : vector<48x32xf32>
    %111 = arith.mulf %110, %110 : vector<48x32xf32>
    %cst_31 = arith.constant dense<0.000000e+00> : vector<48xf32>
    %112 = vector.multi_reduction <add>, %111, %cst_31 [1] : vector<48x32xf32> to vector<48xf32>
    %113 = vector.shape_cast %112 : vector<48xf32> to vector<48x1xf32>
    %cst_32 = arith.constant 3.200000e+01 : f32
    %114 = vector.broadcast %cst_32 : f32 to vector<48x1xf32>
    %115 = arith.divf %113, %114 : vector<48x1xf32>
    %116 = vector.broadcast %108 : vector<48x1xf32> to vector<48x32xf32>
    %117 = arith.subf %104, %116 : vector<48x32xf32>
    %cst_33 = arith.constant 9.99999974E-6 : f32
    %118 = vector.broadcast %cst_33 : f32 to vector<48x1xf32>
    %119 = arith.addf %115, %118 : vector<48x1xf32>
    %120 = math.rsqrt %119 : vector<48x1xf32>
    %121 = vector.broadcast %120 : vector<48x1xf32> to vector<48x32xf32>
    %122 = arith.mulf %117, %121 : vector<48x32xf32>
    %123 = vector.broadcast %22 : vector<1x32xf32> to vector<48x32xf32>
    %124 = arith.mulf %122, %123 : vector<48x32xf32>
    %125 = vector.broadcast %23 : vector<1x32xf32> to vector<48x32xf32>
    %126 = arith.addf %124, %125 : vector<48x32xf32>
    %127 = arith.truncf %126 : vector<48x32xf32> to vector<48x32xbf16>
    %c64 = arith.constant 64 : index
    %c0_34 = arith.constant 0 : index
    %128 = vector.load %arg2[%c64, %c0_34] : memref<480x256xbf16, #tpu.memory_space<vmem>>, vector<32x256xbf16>
    %cst_35 = arith.constant dense<0.000000e+00> : vector<48x256xf32>
    %129 = tpu.matmul %127, %128, %cst_35 {dimension_numbers = #tpu.dot_dimension_numbers<[1], [0], [0], [1], [0, 0, 1, 1], [], []>} : vector<48x32xbf16>, vector<32x256xbf16>, vector<48x256xf32> -> vector<48x256xf32>
    %130 = vector.broadcast %24 : vector<1x256xf32> to vector<48x256xf32>
    %131 = arith.addf %129, %130 : vector<48x256xf32>
    %132 = vector.extract_strided_slice %131 {offsets = [0, 0], sizes = [48, 128], strides = [1, 1]} : vector<48x256xf32> to vector<48x128xf32>
    %133 = vector.extract_strided_slice %131 {offsets = [0, 128], sizes = [48, 128], strides = [1, 1]} : vector<48x256xf32> to vector<48x128xf32>
    %cst_36 = arith.constant 5.000000e-01 : f32
    %134 = vector.broadcast %cst_36 : f32 to vector<48x128xf32>
    %135 = arith.mulf %134, %133 : vector<48x128xf32>
    %cst_37 = arith.constant 0.707106769 : f32
    %136 = vector.broadcast %cst_37 : f32 to vector<48x128xf32>
    %137 = arith.mulf %133, %136 : vector<48x128xf32>
    %138 = math.erf %137 : vector<48x128xf32>
    %cst_38 = arith.constant 1.000000e+00 : f32
    %139 = vector.broadcast %cst_38 : f32 to vector<48x128xf32>
    %140 = arith.addf %139, %138 : vector<48x128xf32>
    %141 = arith.mulf %135, %140 : vector<48x128xf32>
    %142 = arith.mulf %132, %141 : vector<48x128xf32>
    %143 = arith.truncf %142 : vector<48x128xf32> to vector<48x128xbf16>
    %c96 = arith.constant 96 : index
    %c0_39 = arith.constant 0 : index
    %144 = vector.load %arg2[%c96, %c0_39] : memref<480x256xbf16, #tpu.memory_space<vmem>>, vector<128x256xbf16>
    %cst_40 = arith.constant dense<0.000000e+00> : vector<48x256xf32>
    %145 = tpu.matmul %143, %144, %cst_40 {dimension_numbers = #tpu.dot_dimension_numbers<[1], [0], [0], [1], [0, 0, 1, 1], [], []>} : vector<48x128xbf16>, vector<128x256xbf16>, vector<48x256xf32> -> vector<48x256xf32>
    %146 = vector.extract_strided_slice %145 {offsets = [0, 0], sizes = [48, 32], strides = [1, 1]} : vector<48x256xf32> to vector<48x32xf32>
    %147 = vector.broadcast %25 : vector<1x32xf32> to vector<48x32xf32>
    %148 = arith.addf %146, %147 : vector<48x32xf32>
    %149 = arith.addf %104, %148 : vector<48x32xf32>
    %150 = vector.extract_strided_slice %0 {offsets = [7, 0], sizes = [1, 32], strides = [1, 1]} : vector<17x256xf32> to vector<1x32xf32>
    %151 = vector.extract_strided_slice %0 {offsets = [8, 0], sizes = [1, 32], strides = [1, 1]} : vector<17x256xf32> to vector<1x32xf32>
    %152 = vector.extract_strided_slice %0 {offsets = [9, 0], sizes = [1, 32], strides = [1, 1]} : vector<17x256xf32> to vector<1x32xf32>
    %153 = vector.extract_strided_slice %0 {offsets = [10, 0], sizes = [1, 32], strides = [1, 1]} : vector<17x256xf32> to vector<1x32xf32>
    %154 = vector.extract_strided_slice %0 {offsets = [11, 0], sizes = [1, 32], strides = [1, 1]} : vector<17x256xf32> to vector<1x32xf32>
    %155 = vector.extract_strided_slice %0 {offsets = [12, 0], sizes = [1, 256], strides = [1, 1]} : vector<17x256xf32> to vector<1x256xf32>
    %156 = vector.extract_strided_slice %0 {offsets = [13, 0], sizes = [1, 32], strides = [1, 1]} : vector<17x256xf32> to vector<1x32xf32>
    %cst_41 = arith.constant dense<0.000000e+00> : vector<48xf32>
    %157 = vector.multi_reduction <add>, %149, %cst_41 [1] : vector<48x32xf32> to vector<48xf32>
    %158 = vector.shape_cast %157 : vector<48xf32> to vector<48x1xf32>
    %cst_42 = arith.constant 3.200000e+01 : f32
    %159 = vector.broadcast %cst_42 : f32 to vector<48x1xf32>
    %160 = arith.divf %158, %159 : vector<48x1xf32>
    %161 = vector.broadcast %160 : vector<48x1xf32> to vector<48x32xf32>
    %162 = arith.subf %149, %161 : vector<48x32xf32>
    %163 = arith.mulf %162, %162 : vector<48x32xf32>
    %cst_43 = arith.constant dense<0.000000e+00> : vector<48xf32>
    %164 = vector.multi_reduction <add>, %163, %cst_43 [1] : vector<48x32xf32> to vector<48xf32>
    %165 = vector.shape_cast %164 : vector<48xf32> to vector<48x1xf32>
    %cst_44 = arith.constant 3.200000e+01 : f32
    %166 = vector.broadcast %cst_44 : f32 to vector<48x1xf32>
    %167 = arith.divf %165, %166 : vector<48x1xf32>
    %168 = vector.broadcast %160 : vector<48x1xf32> to vector<48x32xf32>
    %169 = arith.subf %149, %168 : vector<48x32xf32>
    %cst_45 = arith.constant 9.99999974E-6 : f32
    %170 = vector.broadcast %cst_45 : f32 to vector<48x1xf32>
    %171 = arith.addf %167, %170 : vector<48x1xf32>
    %172 = math.rsqrt %171 : vector<48x1xf32>
    %173 = vector.broadcast %172 : vector<48x1xf32> to vector<48x32xf32>
    %174 = arith.mulf %169, %173 : vector<48x32xf32>
    %175 = vector.broadcast %150 : vector<1x32xf32> to vector<48x32xf32>
    %176 = arith.mulf %174, %175 : vector<48x32xf32>
    %177 = vector.broadcast %151 : vector<1x32xf32> to vector<48x32xf32>
    %178 = arith.addf %176, %177 : vector<48x32xf32>
    %179 = arith.truncf %178 : vector<48x32xf32> to vector<48x32xbf16>
    %c224 = arith.constant 224 : index
    %c0_46 = arith.constant 0 : index
    %180 = vector.load %arg2[%c224, %c0_46] : memref<480x256xbf16, #tpu.memory_space<vmem>>, vector<32x256xbf16>
    %cst_47 = arith.constant dense<0.000000e+00> : vector<48x256xf32>
    %181 = tpu.matmul %179, %180, %cst_47 {dimension_numbers = #tpu.dot_dimension_numbers<[1], [0], [0], [1], [0, 0, 1, 1], [], []>} : vector<48x32xbf16>, vector<32x256xbf16>, vector<48x256xf32> -> vector<48x256xf32>
    %182 = vector.extract_strided_slice %181 {offsets = [0, 0], sizes = [48, 16], strides = [1, 1]} : vector<48x256xf32> to vector<48x16xf32>
    %cst_48 = arith.constant 2.500000e-01 : f32
    %183 = vector.broadcast %cst_48 : f32 to vector<48x16xf32>
    %184 = arith.mulf %182, %183 : vector<48x16xf32>
    %185 = arith.truncf %184 : vector<48x16xf32> to vector<48x16xbf16>
    %186 = vector.extract_strided_slice %181 {offsets = [0, 32], sizes = [48, 16], strides = [1, 1]} : vector<48x256xf32> to vector<48x16xf32>
    %187 = arith.truncf %186 : vector<48x16xf32> to vector<48x16xbf16>
    %188 = vector.extract_strided_slice %181 {offsets = [0, 64], sizes = [48, 16], strides = [1, 1]} : vector<48x256xf32> to vector<48x16xf32>
    %189 = arith.truncf %188 : vector<48x16xf32> to vector<48x16xbf16>
    %cst_49 = arith.constant dense<0.000000e+00> : vector<48x48xf32>
    %190 = tpu.matmul %185, %187, %cst_49 {dimension_numbers = #tpu.dot_dimension_numbers<[1], [1], [0], [0], [0, 0, 1, 0], [], []>} : vector<48x16xbf16>, vector<48x16xbf16>, vector<48x48xf32> -> vector<48x48xf32>
    %cst_50 = arith.constant -3.40282347E+38 : f32
    %191 = vector.broadcast %cst_50 : f32 to vector<48x48xf32>
    %192 = arith.select %18, %190, %191 : vector<48x48xi1>, vector<48x48xf32>
    %cst_51 = arith.constant dense<0xFF800000> : vector<48xf32>
    %193 = vector.multi_reduction <maximumf>, %192, %cst_51 [1] : vector<48x48xf32> to vector<48xf32>
    %194 = vector.shape_cast %193 : vector<48xf32> to vector<48x1xf32>
    %195 = vector.broadcast %194 : vector<48x1xf32> to vector<48x48xf32>
    %196 = arith.subf %192, %195 : vector<48x48xf32>
    %197 = math.exp %196 : vector<48x48xf32>
    %cst_52 = arith.constant dense<0.000000e+00> : vector<48xf32>
    %198 = vector.multi_reduction <add>, %197, %cst_52 [1] : vector<48x48xf32> to vector<48xf32>
    %199 = vector.shape_cast %198 : vector<48xf32> to vector<48x1xf32>
    %200 = tpu.reciprocal %199 {approx = true} : vector<48x1xf32> -> vector<48x1xf32>
    %201 = vector.broadcast %200 : vector<48x1xf32> to vector<48x48xf32>
    %202 = arith.mulf %197, %201 : vector<48x48xf32>
    %203 = arith.truncf %202 : vector<48x48xf32> to vector<48x48xbf16>
    %cst_53 = arith.constant dense<0.000000e+00> : vector<48x16xf32>
    %204 = tpu.matmul %203, %189, %cst_53 {dimension_numbers = #tpu.dot_dimension_numbers<[1], [0], [0], [1], [0, 0, 1, 1], [], []>} : vector<48x48xbf16>, vector<48x16xbf16>, vector<48x16xf32> -> vector<48x16xf32>
    %205 = vector.extract_strided_slice %181 {offsets = [0, 16], sizes = [48, 16], strides = [1, 1]} : vector<48x256xf32> to vector<48x16xf32>
    %cst_54 = arith.constant 2.500000e-01 : f32
    %206 = vector.broadcast %cst_54 : f32 to vector<48x16xf32>
    %207 = arith.mulf %205, %206 : vector<48x16xf32>
    %208 = arith.truncf %207 : vector<48x16xf32> to vector<48x16xbf16>
    %209 = vector.extract_strided_slice %181 {offsets = [0, 48], sizes = [48, 16], strides = [1, 1]} : vector<48x256xf32> to vector<48x16xf32>
    %210 = arith.truncf %209 : vector<48x16xf32> to vector<48x16xbf16>
    %211 = vector.extract_strided_slice %181 {offsets = [0, 80], sizes = [48, 16], strides = [1, 1]} : vector<48x256xf32> to vector<48x16xf32>
    %212 = arith.truncf %211 : vector<48x16xf32> to vector<48x16xbf16>
    %cst_55 = arith.constant dense<0.000000e+00> : vector<48x48xf32>
    %213 = tpu.matmul %208, %210, %cst_55 {dimension_numbers = #tpu.dot_dimension_numbers<[1], [1], [0], [0], [0, 0, 1, 0], [], []>} : vector<48x16xbf16>, vector<48x16xbf16>, vector<48x48xf32> -> vector<48x48xf32>
    %cst_56 = arith.constant -3.40282347E+38 : f32
    %214 = vector.broadcast %cst_56 : f32 to vector<48x48xf32>
    %215 = arith.select %18, %213, %214 : vector<48x48xi1>, vector<48x48xf32>
    %cst_57 = arith.constant dense<0xFF800000> : vector<48xf32>
    %216 = vector.multi_reduction <maximumf>, %215, %cst_57 [1] : vector<48x48xf32> to vector<48xf32>
    %217 = vector.shape_cast %216 : vector<48xf32> to vector<48x1xf32>
    %218 = vector.broadcast %217 : vector<48x1xf32> to vector<48x48xf32>
    %219 = arith.subf %215, %218 : vector<48x48xf32>
    %220 = math.exp %219 : vector<48x48xf32>
    %cst_58 = arith.constant dense<0.000000e+00> : vector<48xf32>
    %221 = vector.multi_reduction <add>, %220, %cst_58 [1] : vector<48x48xf32> to vector<48xf32>
    %222 = vector.shape_cast %221 : vector<48xf32> to vector<48x1xf32>
    %223 = tpu.reciprocal %222 {approx = true} : vector<48x1xf32> -> vector<48x1xf32>
    %224 = vector.broadcast %223 : vector<48x1xf32> to vector<48x48xf32>
    %225 = arith.mulf %220, %224 : vector<48x48xf32>
    %226 = arith.truncf %225 : vector<48x48xf32> to vector<48x48xbf16>
    %cst_59 = arith.constant dense<0.000000e+00> : vector<48x16xf32>
    %227 = tpu.matmul %226, %212, %cst_59 {dimension_numbers = #tpu.dot_dimension_numbers<[1], [0], [0], [1], [0, 0, 1, 1], [], []>} : vector<48x48xbf16>, vector<48x16xbf16>, vector<48x16xf32> -> vector<48x16xf32>
    %228 = tpu.concatenate %204, %227 in 1 : vector<48x16xf32>, vector<48x16xf32> -> vector<48x32xf32>
    %229 = arith.truncf %228 : vector<48x32xf32> to vector<48x32xbf16>
    %c256 = arith.constant 256 : index
    %c0_60 = arith.constant 0 : index
    %230 = vector.load %arg2[%c256, %c0_60] : memref<480x256xbf16, #tpu.memory_space<vmem>>, vector<32x256xbf16>
    %cst_61 = arith.constant dense<0.000000e+00> : vector<48x256xf32>
    %231 = tpu.matmul %229, %230, %cst_61 {dimension_numbers = #tpu.dot_dimension_numbers<[1], [0], [0], [1], [0, 0, 1, 1], [], []>} : vector<48x32xbf16>, vector<32x256xbf16>, vector<48x256xf32> -> vector<48x256xf32>
    %232 = vector.extract_strided_slice %231 {offsets = [0, 0], sizes = [48, 32], strides = [1, 1]} : vector<48x256xf32> to vector<48x32xf32>
    %233 = vector.broadcast %152 : vector<1x32xf32> to vector<48x32xf32>
    %234 = arith.addf %232, %233 : vector<48x32xf32>
    %235 = arith.addf %149, %234 : vector<48x32xf32>
    %cst_62 = arith.constant dense<0.000000e+00> : vector<48xf32>
    %236 = vector.multi_reduction <add>, %235, %cst_62 [1] : vector<48x32xf32> to vector<48xf32>
    %237 = vector.shape_cast %236 : vector<48xf32> to vector<48x1xf32>
    %cst_63 = arith.constant 3.200000e+01 : f32
    %238 = vector.broadcast %cst_63 : f32 to vector<48x1xf32>
    %239 = arith.divf %237, %238 : vector<48x1xf32>
    %240 = vector.broadcast %239 : vector<48x1xf32> to vector<48x32xf32>
    %241 = arith.subf %235, %240 : vector<48x32xf32>
    %242 = arith.mulf %241, %241 : vector<48x32xf32>
    %cst_64 = arith.constant dense<0.000000e+00> : vector<48xf32>
    %243 = vector.multi_reduction <add>, %242, %cst_64 [1] : vector<48x32xf32> to vector<48xf32>
    %244 = vector.shape_cast %243 : vector<48xf32> to vector<48x1xf32>
    %cst_65 = arith.constant 3.200000e+01 : f32
    %245 = vector.broadcast %cst_65 : f32 to vector<48x1xf32>
    %246 = arith.divf %244, %245 : vector<48x1xf32>
    %247 = vector.broadcast %239 : vector<48x1xf32> to vector<48x32xf32>
    %248 = arith.subf %235, %247 : vector<48x32xf32>
    %cst_66 = arith.constant 9.99999974E-6 : f32
    %249 = vector.broadcast %cst_66 : f32 to vector<48x1xf32>
    %250 = arith.addf %246, %249 : vector<48x1xf32>
    %251 = math.rsqrt %250 : vector<48x1xf32>
    %252 = vector.broadcast %251 : vector<48x1xf32> to vector<48x32xf32>
    %253 = arith.mulf %248, %252 : vector<48x32xf32>
    %254 = vector.broadcast %153 : vector<1x32xf32> to vector<48x32xf32>
    %255 = arith.mulf %253, %254 : vector<48x32xf32>
    %256 = vector.broadcast %154 : vector<1x32xf32> to vector<48x32xf32>
    %257 = arith.addf %255, %256 : vector<48x32xf32>
    %258 = arith.truncf %257 : vector<48x32xf32> to vector<48x32xbf16>
    %c288 = arith.constant 288 : index
    %c0_67 = arith.constant 0 : index
    %259 = vector.load %arg2[%c288, %c0_67] : memref<480x256xbf16, #tpu.memory_space<vmem>>, vector<32x256xbf16>
    %cst_68 = arith.constant dense<0.000000e+00> : vector<48x256xf32>
    %260 = tpu.matmul %258, %259, %cst_68 {dimension_numbers = #tpu.dot_dimension_numbers<[1], [0], [0], [1], [0, 0, 1, 1], [], []>} : vector<48x32xbf16>, vector<32x256xbf16>, vector<48x256xf32> -> vector<48x256xf32>
    %261 = vector.broadcast %155 : vector<1x256xf32> to vector<48x256xf32>
    %262 = arith.addf %260, %261 : vector<48x256xf32>
    %263 = vector.extract_strided_slice %262 {offsets = [0, 0], sizes = [48, 128], strides = [1, 1]} : vector<48x256xf32> to vector<48x128xf32>
    %264 = vector.extract_strided_slice %262 {offsets = [0, 128], sizes = [48, 128], strides = [1, 1]} : vector<48x256xf32> to vector<48x128xf32>
    %cst_69 = arith.constant 5.000000e-01 : f32
    %265 = vector.broadcast %cst_69 : f32 to vector<48x128xf32>
    %266 = arith.mulf %265, %264 : vector<48x128xf32>
    %cst_70 = arith.constant 0.707106769 : f32
    %267 = vector.broadcast %cst_70 : f32 to vector<48x128xf32>
    %268 = arith.mulf %264, %267 : vector<48x128xf32>
    %269 = math.erf %268 : vector<48x128xf32>
    %cst_71 = arith.constant 1.000000e+00 : f32
    %270 = vector.broadcast %cst_71 : f32 to vector<48x128xf32>
    %271 = arith.addf %270, %269 : vector<48x128xf32>
    %272 = arith.mulf %266, %271 : vector<48x128xf32>
    %273 = arith.mulf %263, %272 : vector<48x128xf32>
    %274 = arith.truncf %273 : vector<48x128xf32> to vector<48x128xbf16>
    %c320 = arith.constant 320 : index
    %c0_72 = arith.constant 0 : index
    %275 = vector.load %arg2[%c320, %c0_72] : memref<480x256xbf16, #tpu.memory_space<vmem>>, vector<128x256xbf16>
    %cst_73 = arith.constant dense<0.000000e+00> : vector<48x256xf32>
    %276 = tpu.matmul %274, %275, %cst_73 {dimension_numbers = #tpu.dot_dimension_numbers<[1], [0], [0], [1], [0, 0, 1, 1], [], []>} : vector<48x128xbf16>, vector<128x256xbf16>, vector<48x256xf32> -> vector<48x256xf32>
    %277 = vector.extract_strided_slice %276 {offsets = [0, 0], sizes = [48, 32], strides = [1, 1]} : vector<48x256xf32> to vector<48x32xf32>
    %278 = vector.broadcast %156 : vector<1x32xf32> to vector<48x32xf32>
    %279 = arith.addf %277, %278 : vector<48x32xf32>
    %280 = arith.addf %235, %279 : vector<48x32xf32>
    %281 = vector.extract_strided_slice %0 {offsets = [14, 0], sizes = [1, 32], strides = [1, 1]} : vector<17x256xf32> to vector<1x32xf32>
    %282 = vector.extract_strided_slice %0 {offsets = [15, 0], sizes = [1, 32], strides = [1, 1]} : vector<17x256xf32> to vector<1x32xf32>
    %283 = vector.extract_strided_slice %0 {offsets = [16, 0], sizes = [1, 256], strides = [1, 1]} : vector<17x256xf32> to vector<1x256xf32>
    %cst_74 = arith.constant dense<0.000000e+00> : vector<48xf32>
    %284 = vector.multi_reduction <add>, %280, %cst_74 [1] : vector<48x32xf32> to vector<48xf32>
    %285 = vector.shape_cast %284 : vector<48xf32> to vector<48x1xf32>
    %cst_75 = arith.constant 3.200000e+01 : f32
    %286 = vector.broadcast %cst_75 : f32 to vector<48x1xf32>
    %287 = arith.divf %285, %286 : vector<48x1xf32>
    %288 = vector.broadcast %287 : vector<48x1xf32> to vector<48x32xf32>
    %289 = arith.subf %280, %288 : vector<48x32xf32>
    %290 = arith.mulf %289, %289 : vector<48x32xf32>
    %cst_76 = arith.constant dense<0.000000e+00> : vector<48xf32>
    %291 = vector.multi_reduction <add>, %290, %cst_76 [1] : vector<48x32xf32> to vector<48xf32>
    %292 = vector.shape_cast %291 : vector<48xf32> to vector<48x1xf32>
    %cst_77 = arith.constant 3.200000e+01 : f32
    %293 = vector.broadcast %cst_77 : f32 to vector<48x1xf32>
    %294 = arith.divf %292, %293 : vector<48x1xf32>
    %295 = vector.broadcast %287 : vector<48x1xf32> to vector<48x32xf32>
    %296 = arith.subf %280, %295 : vector<48x32xf32>
    %cst_78 = arith.constant 9.99999974E-6 : f32
    %297 = vector.broadcast %cst_78 : f32 to vector<48x1xf32>
    %298 = arith.addf %294, %297 : vector<48x1xf32>
    %299 = math.rsqrt %298 : vector<48x1xf32>
    %300 = vector.broadcast %299 : vector<48x1xf32> to vector<48x32xf32>
    %301 = arith.mulf %296, %300 : vector<48x32xf32>
    %302 = vector.broadcast %281 : vector<1x32xf32> to vector<48x32xf32>
    %303 = arith.mulf %301, %302 : vector<48x32xf32>
    %304 = vector.broadcast %282 : vector<1x32xf32> to vector<48x32xf32>
    %305 = arith.addf %303, %304 : vector<48x32xf32>
    %306 = arith.truncf %305 : vector<48x32xf32> to vector<48x32xbf16>
    %c448 = arith.constant 448 : index
    %c0_79 = arith.constant 0 : index
    %307 = vector.load %arg2[%c448, %c0_79] : memref<480x256xbf16, #tpu.memory_space<vmem>>, vector<32x256xbf16>
    %cst_80 = arith.constant dense<0.000000e+00> : vector<48x256xf32>
    %308 = tpu.matmul %306, %307, %cst_80 {dimension_numbers = #tpu.dot_dimension_numbers<[1], [0], [0], [1], [0, 0, 1, 1], [], []>} : vector<48x32xbf16>, vector<32x256xbf16>, vector<48x256xf32> -> vector<48x256xf32>
    %309 = vector.broadcast %283 : vector<1x256xf32> to vector<48x256xf32>
    %310 = arith.addf %308, %309 : vector<48x256xf32>
    %311 = tpu.iota {dimensions = array<i32: 0>} : vector<48x256xi32>
    %312 = tpu.iota {dimensions = array<i32: 1>} : vector<48x256xi32>
    %c8_i32 = arith.constant 8 : i32
    %313 = vector.broadcast %c8_i32 : i32 to vector<48x256xi32>
    %314 = arith.cmpi slt, %311, %313 : vector<48x256xi32>
    %c24_i32_81 = arith.constant 24 : i32
    %315 = vector.broadcast %c24_i32_81 : i32 to vector<48x256xi32>
    %316 = arith.cmpi sge, %311, %315 : vector<48x256xi32>
    %c32_i32 = arith.constant 32 : i32
    %317 = vector.broadcast %c32_i32 : i32 to vector<48x256xi32>
    %318 = arith.cmpi slt, %311, %317 : vector<48x256xi32>
    %319 = arith.andi %316, %318 : vector<48x256xi1>
    %320 = arith.ori %314, %319 : vector<48x256xi1>
    %c72_i32 = arith.constant 72 : i32
    %321 = vector.broadcast %c72_i32 : i32 to vector<48x256xi32>
    %322 = arith.cmpi sge, %312, %321 : vector<48x256xi32>
    %323 = arith.andi %320, %322 : vector<48x256xi1>
    %cst_82 = arith.constant dense<true> : vector<48x256xi1>
    %324 = arith.xori %320, %cst_82 : vector<48x256xi1>
    %c72_i32_83 = arith.constant 72 : i32
    %325 = vector.broadcast %c72_i32_83 : i32 to vector<48x256xi32>
    %326 = arith.cmpi slt, %312, %325 : vector<48x256xi32>
    %327 = arith.andi %324, %326 : vector<48x256xi1>
    %328 = arith.ori %323, %327 : vector<48x256xi1>
    %cst_84 = arith.constant -3.40282347E+38 : f32
    %329 = vector.broadcast %cst_84 : f32 to vector<48x256xf32>
    %330 = arith.select %328, %329, %310 : vector<48x256xi1>, vector<48x256xf32>
    %c0_85 = arith.constant 0 : index
    %c0_86 = arith.constant 0 : index
    %331 = vector.load %arg4[%c0_85, %c0_86] : memref<48x256xf32, #tpu.memory_space<vmem>>, vector<48x256xf32>
    tpu.vector_store %arg4[%c0_85, %c0_86], %330 {strides = array<i32>} : memref<48x256xf32, #tpu.memory_space<vmem>>, vector<48x256xf32>,
    return
  }
}

</mosaic_0001>

<llo_original>
// kernel: dalle_forward.1
$region0: #{dalle_forward.1}
  #allocation0 [shape = 'u32[]', space=smem, size = 0x4, offset = 0x4, fixed_abs, tag = 'smem constant byte address 0x4 - core index']
  #allocation1 [shape = 'u32[144,128]{1,0:T(1,128)}', space=vmem, size = 0x12000, scoped, tag = 'internal scratch']
  %s0 = inlined_call_operand.vmem [shape: s32[48,1], index: 0, kind: input, shape index: {}]
  %s1 = inlined_call_operand.vmem [shape: f32[256,32], index: 1, kind: input, shape index: {}]
  %s2 = inlined_call_operand.hbm [shape: bf16[480,256], index: 2, kind: input, shape index: {}]
  %s3 = inlined_call_operand.vmem [shape: f32[17,256], index: 3, kind: input, shape index: {}]
  %s4 = inlined_call_operand.hbm [shape: f32[48,256], index: 4, kind: output, shape index: {}]
  %s5 = sld [smem:[#allocation0]]
  $region30: #{dalle_forward.1} parent=0
    _
  %s7 = ssub.s32 1, %s5
  %s8 = scalar_select 0, %s7, %s5
  $region1: #{dalle_forward.1} parent=0
    #allocation2 [shape = 'u8[245760]{0}', space=vmem, size = 0x3c000, scoped, tag = 'input window, operand 2, single buffered']
    #allocation3 [shape = 's32[1]{0}', space=sflag, size = 0x4, scoped, tag = 'scoped memory for dalle_forward.1']
    #allocation4 [shape = 's32[1]{0}', space=sflag, size = 0x4, scoped, tag = 'scoped memory for dalle_forward.1']
    #allocation5 [shape = 'u8[49152]{0}', space=vmem, size = 0xc000, scoped, tag = 'output window, operand 0, single buffered']
    %9 = vsyncpa [#allocation3], 0
    %10 = vsyncpa [#allocation4], 0
    // Predicated region
    $region2: #{dalle_forward.1} parent=1 // pred_check
      _
    $region3: #{dalle_forward.1} parent=1 // pred_check_branch
      %12 = sbr.rel (0) target = $region5
    $region4: #{dalle_forward.1} parent=1 // pred_region
      _
    $region5: #{dalle_forward.1} parent=1 // pred_fallthru
      _
    // Predicated region
    $region6: #{dalle_forward.1} parent=1 // pred_check
      _
    $region7: #{dalle_forward.1} parent=1 // pred_check_branch
      %14 = sbr.rel (0) target = $region9
    $region8: #{dalle_forward.1} parent=1 // pred_region
      _
    $region9: #{dalle_forward.1} parent=1 // pred_fallthru
      _
    // Predicated region
    $region10: #{dalle_forward.1} parent=1 // pred_check
      _
    $region11: #{dalle_forward.1} parent=1 // pred_check_branch
      %16 = sbr.rel (0) target = $region13
    $region12: #{dalle_forward.1} parent=1 // pred_region
      %s18 = ssub.s32 7680, 7680
      %19 = vsyncadd [#allocation3], %s18
      %s20 = sshll.u32 [#allocation2], 4
      %s21 = int_to_ptr.vmem [resolvable:$true] %s20
      %26 = dma.hbm_to_vmem [thread:$0]  %s2, 7680, %s21, [#allocation3], 128, 128, 8
    $region13: #{dalle_forward.1} parent=1 // pred_fallthru
      _
    // Predicated region
    $region14: #{dalle_forward.1} parent=1 // pred_check
      _
    $region15: #{dalle_forward.1} parent=1 // pred_check_branch
      %28 = sbr.rel (0) target = $region17
    $region16: #{dalle_forward.1} parent=1 // pred_region
      _
    $region17: #{dalle_forward.1} parent=1 // pred_fallthru
      _
    // Predicated region
    $region18: #{dalle_forward.1} parent=1 // pred_check
      _
    $region19: #{dalle_forward.1} parent=1 // pred_check_branch
      %30 = sbr.rel (0) target = $region21
    $region20: #{dalle_forward.1} parent=1 // pred_region
      %31 = dma.done [#allocation3], 7680
    $region21: #{dalle_forward.1} parent=1 // pred_fallthru
      _
    %v33 = vld [vmem:[%s3] sm:$0xff]
    %v34 = vld [vmem:[%s3 + $0x8] sm:$0xff]
    %v35 = vld [vmem:[%s3 + $0x10] sm:$0xff]
    %v36 = vld [vmem:[%s3 + $0x18] sm:$0xff]
    %v37 = vld [vmem:[%s3 + $0x20] sm:$0x1]
    %v38 = vld [vmem:[%s3 + $0x28] sm:$0x1]
    %v39 = vld [vmem:[%s0] sm:$0xff]
    %v40 = vld [vmem:[%s0 + $0x8] sm:$0xff]
    %v41 = vld [vmem:[%s0 + $0x10] sm:$0xff]
    %v42 = vld [vmem:[%s0 + $0x18] sm:$0xff]
    %v43 = vld [vmem:[%s0 + $0x20] sm:$0xff]
    %v44 = vld [vmem:[%s0 + $0x28] sm:$0xff]
    %v45 = vlaneseq
    %v46 = vand.u32 %v45, 127
    %v47 = vadd.s32 %v46, 128
    %48 = vset.pattern.permute.xlu0 0
    %49 = vperm.xlu0 %48, %v39
    %v50 = vpop.permute.xlu0 %49
    %51 = vset.pattern.permute.xlu0 0
    %52 = vperm.xlu0 %51, %v40
    %v53 = vpop.permute.xlu0 %52
    %54 = vset.pattern.permute.xlu0 0
    %55 = vperm.xlu0 %54, %v41
    %v56 = vpop.permute.xlu0 %55
    %57 = vset.pattern.permute.xlu0 0
    %58 = vperm.xlu0 %57, %v42
    %v59 = vpop.permute.xlu0 %58
    %60 = vset.pattern.permute.xlu0 0
    %61 = vperm.xlu0 %60, %v43
    %v62 = vpop.permute.xlu0 %61
    %63 = vset.pattern.permute.xlu0 0
    %64 = vperm.xlu0 %63, %v44
    %v65 = vpop.permute.xlu0 %64
    %vm66 = vcmp.eq.s32.totalorder %v46, %v50
    %vm67 = vcmp.eq.s32.totalorder %v47, %v50
    %vm68 = vcmp.eq.s32.totalorder %v46, %v53
    %vm69 = vcmp.eq.s32.totalorder %v47, %v53
    %vm70 = vcmp.eq.s32.totalorder %v46, %v56
    %vm71 = vcmp.eq.s32.totalorder %v47, %v56
    %vm72 = vcmp.eq.s32.totalorder %v46, %v59
    %vm73 = vcmp.eq.s32.totalorder %v47, %v59
    %vm74 = vcmp.eq.s32.totalorder %v46, %v62
    %vm75 = vcmp.eq.s32.totalorder %v47, %v62
    %vm76 = vcmp.eq.s32.totalorder %v46, %v65
    %vm77 = vcmp.eq.s32.totalorder %v47, %v65
    %v78 = vsel %vm66, 1, 0
    %v79 = vsel %vm67, 1, 0
    %v80 = vsel %vm68, 1, 0
    %v81 = vsel %vm69, 1, 0
    %v82 = vsel %vm70, 1, 0
    %v83 = vsel %vm71, 1, 0
    %v84 = vsel %vm72, 1, 0
    %v85 = vsel %vm73, 1, 0
    %v86 = vsel %vm74, 1, 0
    %v87 = vsel %vm75, 1, 0
    %v88 = vsel %vm76, 1, 0
    %v89 = vsel %vm77, 1, 0
    %v90 = vcvt.s32.f32 %v78
    %v91 = vcvt.s32.f32 %v79
    %v92 = vcvt.s32.f32 %v80
    %v93 = vcvt.s32.f32 %v81
    %v94 = vcvt.s32.f32 %v82
    %v95 = vcvt.s32.f32 %v83
    %v96 = vcvt.s32.f32 %v84
    %v97 = vcvt.s32.f32 %v85
    %v98 = vcvt.s32.f32 %v86
    %v99 = vcvt.s32.f32 %v87
    %v100 = vcvt.s32.f32 %v88
    %v101 = vcvt.s32.f32 %v89
    %v102 = vld [vmem:[%s1] sm:$0xff]
    %v103 = vld [vmem:[%s1 + $0x8] sm:$0xff]
    %v104 = vld [vmem:[%s1 + $0x10] sm:$0xff]
    %v105 = vld [vmem:[%s1 + $0x18] sm:$0xff]
    %v106 = vld [vmem:[%s1 + $0x20] sm:$0xff]
    %v107 = vld [vmem:[%s1 + $0x28] sm:$0xff]
    %v108 = vld [vmem:[%s1 + $0x30] sm:$0xff]
    %v109 = vld [vmem:[%s1 + $0x38] sm:$0xff]
    %v110 = vld [vmem:[%s1 + $0x40] sm:$0xff]
    %v111 = vld [vmem:[%s1 + $0x48] sm:$0xff]
    %v112 = vld [vmem:[%s1 + $0x50] sm:$0xff]
    %v113 = vld [vmem:[%s1 + $0x58] sm:$0xff]
    %v114 = vld [vmem:[%s1 + $0x60] sm:$0xff]
    %v115 = vld [vmem:[%s1 + $0x68] sm:$0xff]
    %v116 = vld [vmem:[%s1 + $0x70] sm:$0xff]
    %v117 = vld [vmem:[%s1 + $0x78] sm:$0xff]
    %v118 = vld [vmem:[%s1 + $0x80] sm:$0xff]
    %v119 = vld [vmem:[%s1 + $0x88] sm:$0xff]
    %v120 = vld [vmem:[%s1 + $0x90] sm:$0xff]
    %v121 = vld [vmem:[%s1 + $0x98] sm:$0xff]
    %v122 = vld [vmem:[%s1 + $0xa0] sm:$0xff]
    %v123 = vld [vmem:[%s1 + $0xa8] sm:$0xff]
    %v124 = vld [vmem:[%s1 + $0xb0] sm:$0xff]
    %v125 = vld [vmem:[%s1 + $0xb8] sm:$0xff]
    %v126 = vld [vmem:[%s1 + $0xc0] sm:$0xff]
    %v127 = vld [vmem:[%s1 + $0xc8] sm:$0xff]
    %v128 = vld [vmem:[%s1 + $0xd0] sm:$0xff]
    %v129 = vld [vmem:[%s1 + $0xd8] sm:$0xff]
    %v130 = vld [vmem:[%s1 + $0xe0] sm:$0xff]
    %v131 = vld [vmem:[%s1 + $0xe8] sm:$0xff]
    %v132 = vld [vmem:[%s1 + $0xf0] sm:$0xff]
    %v133 = vld [vmem:[%s1 + $0xf8] sm:$0xff]
    %134 = vmatprep.subr.mxu0 0.0
    %135 = vmatpush1.msra.mxu0 %v102
    %136 = vmatprep.subr.mxu0 0.0
    %137 = vmatpush1.msra.mxu0 %v103
    %138 = vmatprep.subr.mxu0 0.0
    %139 = vmatpush1.msra.mxu0 %v104
    %140 = vmatprep.subr.mxu0 0.0
    %141 = vmatpush1.msra.mxu0 %v105
    %142 = vmatprep.subr.mxu0 0.0
    %143 = vmatpush1.msra.mxu0 %v106
    %144 = vmatprep.subr.mxu0 0.0
    %145 = vmatpush1.msra.mxu0 %v107
    %146 = vmatprep.subr.mxu0 0.0
    %147 = vmatpush1.msra.mxu0 %v108
    %148 = vmatprep.subr.mxu0 0.0
    %149 = vmatpush1.msra.mxu0 %v109
    %150 = vmatprep.subr.mxu0 0.0
    %151 = vmatpush1.msra.mxu0 %v110
    %152 = vmatprep.subr.mxu0 0.0
    %153 = vmatpush1.msra.mxu0 %v111
    %154 = vmatprep.subr.mxu0 0.0
    %155 = vmatpush1.msra.mxu0 %v112
    %156 = vmatprep.subr.mxu0 0.0
    %157 = vmatpush1.msra.mxu0 %v113
    %158 = vmatprep.subr.mxu0 0.0
    %159 = vmatpush1.msra.mxu0 %v114
    %160 = vmatprep.subr.mxu0 0.0
    %161 = vmatpush1.msra.mxu0 %v115
    %162 = vmatprep.subr.mxu0 0.0
    %163 = vmatpush1.msra.mxu0 %v116
    %164 = vmatprep.subr.mxu0 0.0
    %165 = vmatpush1.msra.mxu0 %v117
    %166 = vmatprep.subr.mxu0 0.0
    %167 = vmatpush1.msra.mxu0 %v118
    %168 = vmatprep.subr.mxu0 0.0
    %169 = vmatpush1.msra.mxu0 %v119
    %170 = vmatprep.subr.mxu0 0.0
    %171 = vmatpush1.msra.mxu0 %v120
    %172 = vmatprep.subr.mxu0 0.0
    %173 = vmatpush1.msra.mxu0 %v121
    %174 = vmatprep.subr.mxu0 0.0
    %175 = vmatpush1.msra.mxu0 %v122
    %176 = vmatprep.subr.mxu0 0.0
    %177 = vmatpush1.msra.mxu0 %v123
    %178 = vmatprep.subr.mxu0 0.0
    %179 = vmatpush1.msra.mxu0 %v124
    %180 = vmatprep.subr.mxu0 0.0
    %181 = vmatpush1.msra.mxu0 %v125
    %182 = vmatprep.subr.mxu0 0.0
    %183 = vmatpush1.msra.mxu0 %v126
    %184 = vmatprep.subr.mxu0 0.0
    %185 = vmatpush1.msra.mxu0 %v127
    %186 = vmatprep.subr.mxu0 0.0
    %187 = vmatpush1.msra.mxu0 %v128
    %188 = vmatprep.subr.mxu0 0.0
    %189 = vmatpush1.msra.mxu0 %v129
    %190 = vmatprep.subr.mxu0 0.0
    %191 = vmatpush1.msra.mxu0 %v130
    %192 = vmatprep.subr.mxu0 0.0
    %193 = vmatpush1.msra.mxu0 %v131
    %194 = vmatprep.subr.mxu0 0.0
    %195 = vmatpush1.msra.mxu0 %v132
    %196 = vmatprep.subr.mxu0 0.0
    %197 = vmatpush1.msra.mxu0 %v133
    %198 = vmatprep.mubr.f32.mxu0 %v91
    %199 = vmatmul.mubr.f32.gmra.mrb[0].mxu0 %v90
    %v200 = vpop.f32.mrb[0].mxu0
    %v201 = vadd.f32 0.0, %v200
    %v202 = vpop.f32.mrb[0].mxu0
    %203 = vmatprep.mubr.f32.mxu0 %v93
    %204 = vmatmul.mubr.f32.gmra.mrb[0].mxu0 %v92
    %v205 = vpop.f32.mrb[0].mxu0
    %v206 = vadd.f32 0.0, %v205
    %v207 = vpop.f32.mrb[0].mxu0
    %208 = vmatprep.mubr.f32.mxu0 %v95
    %209 = vmatmul.mubr.f32.gmra.mrb[0].mxu0 %v94
    %v210 = vpop.f32.mrb[0].mxu0
    %v211 = vadd.f32 0.0, %v210
    %v212 = vpop.f32.mrb[0].mxu0
    %213 = vmatprep.mubr.f32.mxu0 %v97
    %214 = vmatmul.mubr.f32.gmra.mrb[0].mxu0 %v96
    %v215 = vpop.f32.mrb[0].mxu0
    %v216 = vadd.f32 0.0, %v215
    %v217 = vpop.f32.mrb[0].mxu0
    %218 = vmatprep.mubr.f32.mxu0 %v99
    %219 = vmatmul.mubr.f32.gmra.mrb[0].mxu0 %v98
    %v220 = vpop.f32.mrb[0].mxu0
    %v221 = vadd.f32 0.0, %v220
    %v222 = vpop.f32.mrb[0].mxu0
    %223 = vmatprep.mubr.f32.mxu0 %v101
    %224 = vmatmul.mubr.f32.gmra.mrb[0].mxu0 %v100
    %v225 = vpop.f32.mrb[0].mxu0
    %v226 = vadd.f32 0.0, %v225
    %v227 = vpop.f32.mrb[0].mxu0
    %228 = vdwg.mxu0
    %v229 = vlaneseq
    %v230 = vshrl.u32 %v229, 7
    %v231 = vadd.s32 %v230, 8
    %v232 = vadd.s32 %v230, 16
    %v233 = vadd.s32 %v230, 24
    %v234 = vadd.s32 %v230, 32
    %v235 = vadd.s32 %v230, 40
    %vm236 = vcmp.le.s32.totalorder %v46, %v230
    %vm237 = vcmp.le.s32.totalorder %v46, %v231
    %vm238 = vcmp.le.s32.totalorder %v46, %v232
    %vm239 = vcmp.le.s32.totalorder %v46, %v233
    %vm240 = vcmp.le.s32.totalorder %v46, %v234
    %vm241 = vcmp.le.s32.totalorder %v46, %v235
    %vm242 = vcmp.ge.s32.totalorder %v230, 24
    %vm243 = vcmp.ge.s32.totalorder %v231, 24
    %vm244 = vcmp.ge.s32.totalorder %v232, 24
    %vm245 = vcmp.ge.s32.totalorder %v233, 24
    %vm246 = vcmp.ge.s32.totalorder %v234, 24
    %vm247 = vcmp.ge.s32.totalorder %v235, 24
    %vm248 = vcmp.ge.s32.totalorder %v46, 24
    %vm249 = vmxor %vm242, %vm248
    %vm250 = vmxor %vm243, %vm248
    %vm251 = vmxor %vm244, %vm248
    %vm252 = vmxor %vm245, %vm248
    %vm253 = vmxor %vm246, %vm248
    %vm254 = vmxor %vm247, %vm248
    %vm255 = vmxor %vm249, 1
    %vm256 = vmxor %vm250, 1
    %vm257 = vmxor %vm251, 1
    %vm258 = vmxor %vm252, 1
    %vm259 = vmxor %vm253, 1
    %vm260 = vmxor %vm254, 1
    %vm261 = vmand %vm236, %vm255
    %vm262 = vmand %vm237, %vm256
    %vm263 = vmand %vm238, %vm257
    %vm264 = vmand %vm239, %vm258
    %vm265 = vmand %vm240, %vm259
    %vm266 = vmand %vm241, %vm260
    %vm267 = vcmask 261120
    %v268 = vsel %vm267, %v201, 0.0
    %269 = vadd.xlane.f32.xlu0 %v268
    %v270 = vpop.xlane.xlu0 %269
    %v271 = vsel %vm267, %v206, 0.0
    %272 = vadd.xlane.f32.xlu0 %v271
    %v273 = vpop.xlane.xlu0 %272
    %v274 = vsel %vm267, %v211, 0.0
    %275 = vadd.xlane.f32.xlu0 %v274
    %v276 = vpop.xlane.xlu0 %275
    %v277 = vsel %vm267, %v216, 0.0
    %278 = vadd.xlane.f32.xlu0 %v277
    %v279 = vpop.xlane.xlu0 %278
    %v280 = vsel %vm267, %v221, 0.0
    %281 = vadd.xlane.f32.xlu0 %v280
    %v282 = vpop.xlane.xlu0 %281
    %v283 = vsel %vm267, %v226, 0.0
    %284 = vadd.xlane.f32.xlu0 %v283
    %v285 = vpop.xlane.xlu0 %284
    %v286 = vrcp.pop 32.0
    %v287 = vmul.f32 %v270, %v286
    %v288 = vmul.f32 %v273, %v286
    %v289 = vmul.f32 %v276, %v286
    %v290 = vmul.f32 %v279, %v286
    %v291 = vmul.f32 %v282, %v286
    %v292 = vmul.f32 %v285, %v286
    %v293 = vsub.f32 %v201, %v287
    %v294 = vsub.f32 %v206, %v288
    %v295 = vsub.f32 %v211, %v289
    %v296 = vsub.f32 %v216, %v290
    %v297 = vsub.f32 %v221, %v291
    %v298 = vsub.f32 %v226, %v292
    %v299 = vmul.f32 %v293, %v293
    %v300 = vmul.f32 %v294, %v294
    %v301 = vmul.f32 %v295, %v295
    %v302 = vmul.f32 %v296, %v296
    %v303 = vmul.f32 %v297, %v297
    %v304 = vmul.f32 %v298, %v298
    %v305 = vsel %vm267, %v299, 0.0
    %306 = vadd.xlane.f32.xlu0 %v305
    %v307 = vpop.xlane.xlu0 %306
    %v308 = vsel %vm267, %v300, 0.0
    %309 = vadd.xlane.f32.xlu0 %v308
    %v310 = vpop.xlane.xlu0 %309
    %v311 = vsel %vm267, %v301, 0.0
    %312 = vadd.xlane.f32.xlu0 %v311
    %v313 = vpop.xlane.xlu0 %312
    %v314 = vsel %vm267, %v302, 0.0
    %315 = vadd.xlane.f32.xlu0 %v314
    %v316 = vpop.xlane.xlu0 %315
    %v317 = vsel %vm267, %v303, 0.0
    %318 = vadd.xlane.f32.xlu0 %v317
    %v319 = vpop.xlane.xlu0 %318
    %v320 = vsel %vm267, %v304, 0.0
    %321 = vadd.xlane.f32.xlu0 %v320
    %v322 = vpop.xlane.xlu0 %321
    %v323 = vmul.f32 %v307, %v286
    %v324 = vmul.f32 %v310, %v286
    %v325 = vmul.f32 %v313, %v286
    %v326 = vmul.f32 %v316, %v286
    %v327 = vmul.f32 %v319, %v286
    %v328 = vmul.f32 %v322, %v286
    %v329 = vadd.f32 %v323, 1e-05
    %v330 = vadd.f32 %v324, 1e-05
    %v331 = vadd.f32 %v325, 1e-05
    %v332 = vadd.f32 %v326, 1e-05
    %v333 = vadd.f32 %v327, 1e-05
    %v334 = vadd.f32 %v328, 1e-05
    %v335 = vrsqrt.pop %v329
    %v336 = vrsqrt.pop %v330
    %v337 = vrsqrt.pop %v331
    %v338 = vrsqrt.pop %v332
    %v339 = vrsqrt.pop %v333
    %v340 = vrsqrt.pop %v334
    %v341 = vmul.f32 %v293, %v335
    %v342 = vmul.f32 %v294, %v336
    %v343 = vmul.f32 %v295, %v337
    %v344 = vmul.f32 %v296, %v338
    %v345 = vmul.f32 %v297, %v339
    %v346 = vmul.f32 %v298, %v340
    %v347 = vlaneseq
    %v348 = vshrl.u32 %v347, 7
    %v349 = vsub.s32 0, %v348
    %v350 = vrot.slane %v33, %v349
    %v351 = vmul.f32 %v341, %v350
    %v352 = vmul.f32 %v342, %v350
    %v353 = vmul.f32 %v343, %v350
    %v354 = vmul.f32 %v344, %v350
    %v355 = vmul.f32 %v345, %v350
    %v356 = vmul.f32 %v346, %v350
    %v357 = vlaneseq
    %v358 = vshrl.u32 %v357, 7
    %v359 = vsub.s32 1, %v358
    %v360 = vrot.slane %v33, %v359
    %v361 = vadd.f32 %v351, %v360
    %v362 = vadd.f32 %v352, %v360
    %v363 = vadd.f32 %v353, %v360
    %v364 = vadd.f32 %v354, %v360
    %v365 = vadd.f32 %v355, %v360
    %v366 = vadd.f32 %v356, %v360
    %v367 = vpack.c.bf16 %v362, %v361
    %v368 = vpack.c.bf16 %v364, %v363
    %v369 = vpack.c.bf16 %v366, %v365
    %v370 = vld [vmem:[#allocation2] sm:$0xff]
    %v371 = vld [vmem:[#allocation2 + $0x8] sm:$0xff]
    %v372 = vld [vmem:[#allocation2 + $0x10] sm:$0xff]
    %v373 = vld [vmem:[#allocation2 + $0x18] sm:$0xff]
    %v378 = vunpack.c.l.b16 %v370
    %v379 = vunpack.c.h.b16 %v370
    %v380 = vunpack.c.l.b16 %v371
    %v381 = vunpack.c.h.b16 %v371
    %v382 = vunpack.c.l.b16 %v372
    %v383 = vunpack.c.h.b16 %v372
    %v384 = vunpack.c.l.b16 %v373
    %v385 = vunpack.c.h.b16 %v373
    %v386 = vpack.c.b16 %v380, %v378
    %v387 = vpack.c.b16 %v381, %v379
    %v388 = vpack.c.b16 %v384, %v382
    %v389 = vpack.c.b16 %v385, %v383
    %v395 = vsel %vm267, %v367, 0
    %v398 = vsel %vm267, %v368, 0
    %v401 = vsel %vm267, %v369, 0
    %403 = vmatprep.subr.bf16.mxu0 %v387
    %404 = vmatpush1.bf16.msra.mxu0 %v386
    %405 = vmatprep.subr.bf16.mxu0 %v389
    %406 = vmatpush1.bf16.msra.mxu0 %v388
    %407 = vmatprep.subr.bf16.mxu0 0
    %408 = vmatpush1.bf16.msra.mxu0 0
    %409 = vmatprep.subr.bf16.mxu0 0
    %410 = vmatpush1.bf16.msra.mxu0 0
    %411 = vmatprep.subr.bf16.mxu0 0
    %412 = vmatpush1.bf16.msra.mxu0 0
    %413 = vmatprep.subr.bf16.mxu0 0
    %414 = vmatpush1.bf16.msra.mxu0 0
    %415 = vmatprep.subr.bf16.mxu0 0
    %416 = vmatpush1.bf16.msra.mxu0 0
    %417 = vmatprep.subr.bf16.mxu0 0
    %418 = vmatpush1.bf16.msra.mxu0 0
    %419 = vmatprep.subr.bf16.mxu0 0
    %420 = vmatpush1.bf16.msra.mxu0 0
    %421 = vmatprep.subr.bf16.mxu0 0
    %422 = vmatpush1.bf16.msra.mxu0 0
    %423 = vmatprep.subr.bf16.mxu0 0
    %424 = vmatpush1.bf16.msra.mxu0 0
    %425 = vmatprep.subr.bf16.mxu0 0
    %426 = vmatpush1.bf16.msra.mxu0 0
    %427 = vmatprep.subr.bf16.mxu0 0
    %428 = vmatpush1.bf16.msra.mxu0 0
    %429 = vmatprep.subr.bf16.mxu0 0
    %430 = vmatpush1.bf16.msra.mxu0 0
    %431 = vmatprep.subr.bf16.mxu0 0
    %432 = vmatpush1.bf16.msra.mxu0 0
    %433 = vmatprep.subr.bf16.mxu0 0
    %434 = vmatpush1.bf16.msra.mxu0 0
    %435 = vmatprep.mubr.bf16.mxu0 0
    %436 = vmatmul.mubr.bf16.gmra.mrb[0].mxu0 %v395
    %v437 = vpop.f32.mrb[0].mxu0
    %v438 = vadd.f32 0.0, %v437
    %v439 = vpop.f32.mrb[0].mxu0
    %v440 = vpop.f32.mrb[0].mxu0
    %v441 = vadd.f32 0.0, %v440
    %v442 = vpop.f32.mrb[0].mxu0
    %443 = vmatprep.mubr.bf16.mxu0 0
    %444 = vmatmul.mubr.bf16.gmra.mrb[0].mxu0 %v398
    %v445 = vpop.f32.mrb[0].mxu0
    %v446 = vadd.f32 0.0, %v445
    %v447 = vpop.f32.mrb[0].mxu0
    %v448 = vpop.f32.mrb[0].mxu0
    %v449 = vadd.f32 0.0, %v448
    %v450 = vpop.f32.mrb[0].mxu0
    %451 = vmatprep.mubr.bf16.mxu0 0
    %452 = vmatmul.mubr.bf16.gmra.mrb[0].mxu0 %v401
    %v453 = vpop.f32.mrb[0].mxu0
    %v454 = vadd.f32 0.0, %v453
    %v455 = vpop.f32.mrb[0].mxu0
    %v456 = vpop.f32.mrb[0].mxu0
    %v457 = vadd.f32 0.0, %v456
    %v458 = vpop.f32.mrb[0].mxu0
    %459 = vdwg.mxu0
    %v460 = vmul.f32 %v438, 0.25
    %v461 = vmul.f32 %v441, 0.25
    %v462 = vmul.f32 %v446, 0.25
    %v463 = vmul.f32 %v449, 0.25
    %v464 = vmul.f32 %v454, 0.25
    %v465 = vmul.f32 %v457, 0.25
    %v466 = vpack.c.bf16 %v461, %v460
    %v467 = vpack.c.bf16 %v463, %v462
    %v468 = vpack.c.bf16 %v465, %v464
    %v469 = vpack.c.bf16 %v441, %v438
    %v470 = vpack.c.bf16 %v449, %v446
    %v471 = vpack.c.bf16 %v457, %v454
    %475 = vrot.lane.b32.xlu0 %v469, 96
    %v476 = vpop.permute.xlu0 %475
    %477 = vrot.lane.b32.xlu0 %v470, 96
    %v478 = vpop.permute.xlu0 %477
    %479 = vrot.lane.b32.xlu0 %v471, 96
    %v480 = vpop.permute.xlu0 %479
    %vm481 = vcmask 130048
    %v483 = vsel %vm481, %v466, 0
    %v486 = vsel %vm481, %v467, 0
    %v489 = vsel %vm481, %v468, 0
    %v492 = vsel %vm481, %v476, 0
    %v495 = vsel %vm481, %v478, 0
    %v498 = vsel %vm481, %v480, 0
    %500 = vmatprep.subr.bf16.mxu0 0
    %501 = vmatpush1.bf16.xpose.msra.mxu0 %v492
    %502 = vmatprep.subr.bf16.mxu0 0
    %503 = vmatpush1.bf16.xpose.msra.mxu0 %v495
    %504 = vmatprep.subr.bf16.mxu0 0
    %505 = vmatpush1.bf16.xpose.msra.mxu0 %v498
    %506 = vmatprep.subr.bf16.mxu0 0
    %507 = vmatpush1.bf16.xpose.msra.mxu0 0
    %508 = vmatprep.subr.bf16.mxu0 0
    %509 = vmatpush1.bf16.xpose.msra.mxu0 0
    %510 = vmatprep.subr.bf16.mxu0 0
    %511 = vmatpush1.bf16.xpose.msra.mxu0 0
    %512 = vmatprep.subr.bf16.mxu0 0
    %513 = vmatpush1.bf16.xpose.msra.mxu0 0
    %514 = vmatprep.subr.bf16.mxu0 0
    %515 = vmatpush1.bf16.xpose.msra.mxu0 0
    %516 = vmatprep.subr.bf16.mxu0 0
    %517 = vmatpush1.bf16.xpose.msra.mxu0 0
    %518 = vmatprep.subr.bf16.mxu0 0
    %519 = vmatpush1.bf16.xpose.msra.mxu0 0
    %520 = vmatprep.subr.bf16.mxu0 0
    %521 = vmatpush1.bf16.xpose.msra.mxu0 0
    %522 = vmatprep.subr.bf16.mxu0 0
    %523 = vmatpush1.bf16.xpose.msra.mxu0 0
    %524 = vmatprep.subr.bf16.mxu0 0
    %525 = vmatpush1.bf16.xpose.msra.mxu0 0
    %526 = vmatprep.subr.bf16.mxu0 0
    %527 = vmatpush1.bf16.xpose.msra.mxu0 0
    %528 = vmatprep.subr.bf16.mxu0 0
    %529 = vmatpush1.bf16.xpose.msra.mxu0 0
    %530 = vmatprep.subr.bf16.mxu0 0
    %531 = vmatpush1.bf16.xpose.msra.mxu0 0
    %532 = vmatprep.mubr.bf16.mxu0 0
    %533 = vmatmul.mubr.bf16.gmra.mrb[0].mxu0 %v483
    %v534 = vpop.f32.mrb[0].mxu0
    %v535 = vadd.f32 0.0, %v534
    %v536 = vpop.f32.mrb[0].mxu0
    %v537 = vpop.f32.mrb[0].mxu0
    %v538 = vadd.f32 0.0, %v537
    %v539 = vpop.f32.mrb[0].mxu0
    %540 = vmatprep.mubr.bf16.mxu0 0
    %541 = vmatmul.mubr.bf16.gmra.mrb[0].mxu0 %v486
    %v542 = vpop.f32.mrb[0].mxu0
    %v543 = vadd.f32 0.0, %v542
    %v544 = vpop.f32.mrb[0].mxu0
    %v545 = vpop.f32.mrb[0].mxu0
    %v546 = vadd.f32 0.0, %v545
    %v547 = vpop.f32.mrb[0].mxu0
    %548 = vmatprep.mubr.bf16.mxu0 0
    %549 = vmatmul.mubr.bf16.gmra.mrb[0].mxu0 %v489
    %v550 = vpop.f32.mrb[0].mxu0
    %v551 = vadd.f32 0.0, %v550
    %v552 = vpop.f32.mrb[0].mxu0
    %v553 = vpop.f32.mrb[0].mxu0
    %v554 = vadd.f32 0.0, %v553
    %v555 = vpop.f32.mrb[0].mxu0
    %556 = vdwg.mxu0
    %v557 = vsel %vm261, %v535, -3.4028235e+38
    %v558 = vsel %vm262, %v538, -3.4028235e+38
    %v559 = vsel %vm263, %v543, -3.4028235e+38
    %v560 = vsel %vm264, %v546, -3.4028235e+38
    %v561 = vsel %vm265, %v551, -3.4028235e+38
    %v562 = vsel %vm266, %v554, -3.4028235e+38
    %vm563 = vcmask 392192
    %v564 = vsel %vm563, %v557, -inf
    %565 = vmax.xlane.f32.xlu0 %v564
    %v566 = vpop.xlane.xlu0 %565
    %v567 = vsel %vm563, %v558, -inf
    %568 = vmax.xlane.f32.xlu0 %v567
    %v569 = vpop.xlane.xlu0 %568
    %v570 = vsel %vm563, %v559, -inf
    %571 = vmax.xlane.f32.xlu0 %v570
    %v572 = vpop.xlane.xlu0 %571
    %v573 = vsel %vm563, %v560, -inf
    %574 = vmax.xlane.f32.xlu0 %v573
    %v575 = vpop.xlane.xlu0 %574
    %v576 = vsel %vm563, %v561, -inf
    %577 = vmax.xlane.f32.xlu0 %v576
    %v578 = vpop.xlane.xlu0 %577
    %v579 = vsel %vm563, %v562, -inf
    %580 = vmax.xlane.f32.xlu0 %v579
    %v581 = vpop.xlane.xlu0 %580
    %v582 = vsub.f32 %v557, %v566
    %v583 = vsub.f32 %v558, %v569
    %v584 = vsub.f32 %v559, %v572
    %v585 = vsub.f32 %v560, %v575
    %v586 = vsub.f32 %v561, %v578
    %v587 = vsub.f32 %v562, %v581
    %v588 = vmul.f32 %v582, 1.442695
    %v589 = vpow.pop %v588
    %v590 = vmul.f32 %v583, 1.442695
    %v591 = vpow.pop %v590
    %v592 = vmul.f32 %v584, 1.442695
    %v593 = vpow.pop %v592
    %v594 = vmul.f32 %v585, 1.442695
    %v595 = vpow.pop %v594
    %v596 = vmul.f32 %v586, 1.442695
    %v597 = vpow.pop %v596
    %v598 = vmul.f32 %v587, 1.442695
    %v599 = vpow.pop %v598
    %v600 = vsel %vm563, %v589, 0.0
    %601 = vadd.xlane.f32.xlu0 %v600
    %v602 = vpop.xlane.xlu0 %601
    %v603 = vsel %vm563, %v591, 0.0
    %604 = vadd.xlane.f32.xlu0 %v603
    %v605 = vpop.xlane.xlu0 %604
    %v606 = vsel %vm563, %v593, 0.0
    %607 = vadd.xlane.f32.xlu0 %v606
    %v608 = vpop.xlane.xlu0 %607
    %v609 = vsel %vm563, %v595, 0.0
    %610 = vadd.xlane.f32.xlu0 %v609
    %v611 = vpop.xlane.xlu0 %610
    %v612 = vsel %vm563, %v597, 0.0
    %613 = vadd.xlane.f32.xlu0 %v612
    %v614 = vpop.xlane.xlu0 %613
    %v615 = vsel %vm563, %v599, 0.0
    %616 = vadd.xlane.f32.xlu0 %v615
    %v617 = vpop.xlane.xlu0 %616
    %v618 = vrcp.pop %v602
    %v619 = vrcp.pop %v605
    %v620 = vrcp.pop %v608
    %v621 = vrcp.pop %v611
    %v622 = vrcp.pop %v614
    %v623 = vrcp.pop %v617
    %v624 = vmul.f32 %v589, %v618
    %v625 = vmul.f32 %v591, %v619
    %v626 = vmul.f32 %v593, %v620
    %v627 = vmul.f32 %v595, %v621
    %v628 = vmul.f32 %v597, %v622
    %v629 = vmul.f32 %v599, %v623
    %v630 = vpack.c.bf16 %v625, %v624
    %v631 = vpack.c.bf16 %v627, %v626
    %v632 = vpack.c.bf16 %v629, %v628
    %633 = vrot.lane.b32.xlu0 %v469, 64
    %v634 = vpop.permute.xlu0 %633
    %635 = vrot.lane.b32.xlu0 %v470, 64
    %v636 = vpop.permute.xlu0 %635
    %637 = vrot.lane.b32.xlu0 %v471, 64
    %v638 = vpop.permute.xlu0 %637
    %v643 = vsel %vm563, %v630, 0
    %v646 = vsel %vm563, %v631, 0
    %v649 = vsel %vm563, %v632, 0
    %651 = vmatprep.subr.bf16.mxu0 0
    %652 = vmatpush1.bf16.msra.mxu0 %v634
    %653 = vmatprep.subr.bf16.mxu0 0
    %654 = vmatpush1.bf16.msra.mxu0 %v636
    %655 = vmatprep.subr.bf16.mxu0 0
    %656 = vmatpush1.bf16.msra.mxu0 %v638
    %657 = vmatprep.subr.bf16.mxu0 0
    %658 = vmatpush1.bf16.msra.mxu0 0
    %659 = vmatprep.subr.bf16.mxu0 0
    %660 = vmatpush1.bf16.msra.mxu0 0
    %661 = vmatprep.subr.bf16.mxu0 0
    %662 = vmatpush1.bf16.msra.mxu0 0
    %663 = vmatprep.subr.bf16.mxu0 0
    %664 = vmatpush1.bf16.msra.mxu0 0
    %665 = vmatprep.subr.bf16.mxu0 0
    %666 = vmatpush1.bf16.msra.mxu0 0
    %667 = vmatprep.subr.bf16.mxu0 0
    %668 = vmatpush1.bf16.msra.mxu0 0
    %669 = vmatprep.subr.bf16.mxu0 0
    %670 = vmatpush1.bf16.msra.mxu0 0
    %671 = vmatprep.subr.bf16.mxu0 0
    %672 = vmatpush1.bf16.msra.mxu0 0
    %673 = vmatprep.subr.bf16.mxu0 0
    %674 = vmatpush1.bf16.msra.mxu0 0
    %675 = vmatprep.subr.bf16.mxu0 0
    %676 = vmatpush1.bf16.msra.mxu0 0
    %677 = vmatprep.subr.bf16.mxu0 0
    %678 = vmatpush1.bf16.msra.mxu0 0
    %679 = vmatprep.subr.bf16.mxu0 0
    %680 = vmatpush1.bf16.msra.mxu0 0
    %681 = vmatprep.subr.bf16.mxu0 0
    %682 = vmatpush1.bf16.msra.mxu0 0
    %683 = vmatprep.mubr.bf16.mxu0 0
    %684 = vmatmul.mubr.bf16.gmra.mrb[0].mxu0 %v643
    %v685 = vpop.f32.mrb[0].mxu0
    %v686 = vadd.f32 0.0, %v685
    %v687 = vpop.f32.mrb[0].mxu0
    %v688 = vpop.f32.mrb[0].mxu0
    %v689 = vadd.f32 0.0, %v688
    %v690 = vpop.f32.mrb[0].mxu0
    %691 = vmatprep.mubr.bf16.mxu0 0
    %692 = vmatmul.mubr.bf16.gmra.mrb[0].mxu0 %v646
    %v693 = vpop.f32.mrb[0].mxu0
    %v694 = vadd.f32 0.0, %v693
    %v695 = vpop.f32.mrb[0].mxu0
    %v696 = vpop.f32.mrb[0].mxu0
    %v697 = vadd.f32 0.0, %v696
    %v698 = vpop.f32.mrb[0].mxu0
    %699 = vmatprep.mubr.bf16.mxu0 0
    %700 = vmatmul.mubr.bf16.gmra.mrb[0].mxu0 %v649
    %v701 = vpop.f32.mrb[0].mxu0
    %v702 = vadd.f32 0.0, %v701
    %v703 = vpop.f32.mrb[0].mxu0
    %v704 = vpop.f32.mrb[0].mxu0
    %v705 = vadd.f32 0.0, %v704
    %v706 = vpop.f32.mrb[0].mxu0
    %707 = vdwg.mxu0
    %711 = vrot.lane.b32.xlu0 %v466, 112
    %v712 = vpop.permute.xlu0 %711
    %713 = vrot.lane.b32.xlu0 %v467, 112
    %v714 = vpop.permute.xlu0 %713
    %715 = vrot.lane.b32.xlu0 %v468, 112
    %v716 = vpop.permute.xlu0 %715
    %717 = vrot.lane.b32.xlu0 %v469, 80
    %v718 = vpop.permute.xlu0 %717
    %719 = vrot.lane.b32.xlu0 %v470, 80
    %v720 = vpop.permute.xlu0 %719
    %721 = vrot.lane.b32.xlu0 %v471, 80
    %v722 = vpop.permute.xlu0 %721
    %v724 = vsel %vm481, %v712, 0
    %v727 = vsel %vm481, %v714, 0
    %v730 = vsel %vm481, %v716, 0
    %v733 = vsel %vm481, %v718, 0
    %v736 = vsel %vm481, %v720, 0
    %v739 = vsel %vm481, %v722, 0
    %741 = vmatprep.subr.bf16.mxu0 0
    %742 = vmatpush1.bf16.xpose.msra.mxu0 %v733
    %743 = vmatprep.subr.bf16.mxu0 0
    %744 = vmatpush1.bf16.xpose.msra.mxu0 %v736
    %745 = vmatprep.subr.bf16.mxu0 0
    %746 = vmatpush1.bf16.xpose.msra.mxu0 %v739
    %747 = vmatprep.subr.bf16.mxu0 0
    %748 = vmatpush1.bf16.xpose.msra.mxu0 0
    %749 = vmatprep.subr.bf16.mxu0 0
    %750 = vmatpush1.bf16.xpose.msra.mxu0 0
    %751 = vmatprep.subr.bf16.mxu0 0
    %752 = vmatpush1.bf16.xpose.msra.mxu0 0
    %753 = vmatprep.subr.bf16.mxu0 0
    %754 = vmatpush1.bf16.xpose.msra.mxu0 0
    %755 = vmatprep.subr.bf16.mxu0 0
    %756 = vmatpush1.bf16.xpose.msra.mxu0 0
    %757 = vmatprep.subr.bf16.mxu0 0
    %758 = vmatpush1.bf16.xpose.msra.mxu0 0
    %759 = vmatprep.subr.bf16.mxu0 0
    %760 = vmatpush1.bf16.xpose.msra.mxu0 0
    %761 = vmatprep.subr.bf16.mxu0 0
    %762 = vmatpush1.bf16.xpose.msra.mxu0 0
    %763 = vmatprep.subr.bf16.mxu0 0
    %764 = vmatpush1.bf16.xpose.msra.mxu0 0
    %765 = vmatprep.subr.bf16.mxu0 0
    %766 = vmatpush1.bf16.xpose.msra.mxu0 0
    %767 = vmatprep.subr.bf16.mxu0 0
    %768 = vmatpush1.bf16.xpose.msra.mxu0 0
    %769 = vmatprep.subr.bf16.mxu0 0
    %770 = vmatpush1.bf16.xpose.msra.mxu0 0
    %771 = vmatprep.subr.bf16.mxu0 0
    %772 = vmatpush1.bf16.xpose.msra.mxu0 0
    %773 = vmatprep.mubr.bf16.mxu0 0
    %774 = vmatmul.mubr.bf16.gmra.mrb[0].mxu0 %v724
    %v775 = vpop.f32.mrb[0].mxu0
    %v776 = vadd.f32 0.0, %v775
    %v777 = vpop.f32.mrb[0].mxu0
    %v778 = vpop.f32.mrb[0].mxu0
    %v779 = vadd.f32 0.0, %v778
    %v780 = vpop.f32.mrb[0].mxu0
    %781 = vmatprep.mubr.bf16.mxu0 0
    %782 = vmatmul.mubr.bf16.gmra.mrb[0].mxu0 %v727
    %v783 = vpop.f32.mrb[0].mxu0
    %v784 = vadd.f32 0.0, %v783
    %v785 = vpop.f32.mrb[0].mxu0
    %v786 = vpop.f32.mrb[0].mxu0
    %v787 = vadd.f32 0.0, %v786
    %v788 = vpop.f32.mrb[0].mxu0
    %789 = vmatprep.mubr.bf16.mxu0 0
    %790 = vmatmul.mubr.bf16.gmra.mrb[0].mxu0 %v730
    %v791 = vpop.f32.mrb[0].mxu0
    %v792 = vadd.f32 0.0, %v791
    %v793 = vpop.f32.mrb[0].mxu0
    %v794 = vpop.f32.mrb[0].mxu0
    %v795 = vadd.f32 0.0, %v794
    %v796 = vpop.f32.mrb[0].mxu0
    %797 = vdwg.mxu0
    %v798 = vsel %vm261, %v776, -3.4028235e+38
    %v799 = vsel %vm262, %v779, -3.4028235e+38
    %v800 = vsel %vm263, %v784, -3.4028235e+38
    %v801 = vsel %vm264, %v787, -3.4028235e+38
    %v802 = vsel %vm265, %v792, -3.4028235e+38
    %v803 = vsel %vm266, %v795, -3.4028235e+38
    %v804 = vsel %vm563, %v798, -inf
    %805 = vmax.xlane.f32.xlu0 %v804
    %v806 = vpop.xlane.xlu0 %805
    %v807 = vsel %vm563, %v799, -inf
    %808 = vmax.xlane.f32.xlu0 %v807
    %v809 = vpop.xlane.xlu0 %808
    %v810 = vsel %vm563, %v800, -inf
    %811 = vmax.xlane.f32.xlu0 %v810
    %v812 = vpop.xlane.xlu0 %811
    %v813 = vsel %vm563, %v801, -inf
    %814 = vmax.xlane.f32.xlu0 %v813
    %v815 = vpop.xlane.xlu0 %814
    %v816 = vsel %vm563, %v802, -inf
    %817 = vmax.xlane.f32.xlu0 %v816
    %v818 = vpop.xlane.xlu0 %817
    %v819 = vsel %vm563, %v803, -inf
    %820 = vmax.xlane.f32.xlu0 %v819
    %v821 = vpop.xlane.xlu0 %820
    %v822 = vsub.f32 %v798, %v806
    %v823 = vsub.f32 %v799, %v809
    %v824 = vsub.f32 %v800, %v812
    %v825 = vsub.f32 %v801, %v815
    %v826 = vsub.f32 %v802, %v818
    %v827 = vsub.f32 %v803, %v821
    %v828 = vmul.f32 %v822, 1.442695
    %v829 = vpow.pop %v828
    %v830 = vmul.f32 %v823, 1.442695
    %v831 = vpow.pop %v830
    %v832 = vmul.f32 %v824, 1.442695
    %v833 = vpow.pop %v832
    %v834 = vmul.f32 %v825, 1.442695
    %v835 = vpow.pop %v834
    %v836 = vmul.f32 %v826, 1.442695
    %v837 = vpow.pop %v836
    %v838 = vmul.f32 %v827, 1.442695
    %v839 = vpow.pop %v838
    %v840 = vsel %vm563, %v829, 0.0
    %841 = vadd.xlane.f32.xlu0 %v840
    %v842 = vpop.xlane.xlu0 %841
    %v843 = vsel %vm563, %v831, 0.0
    %844 = vadd.xlane.f32.xlu0 %v843
    %v845 = vpop.xlane.xlu0 %844
    %v846 = vsel %vm563, %v833, 0.0
    %847 = vadd.xlane.f32.xlu0 %v846
    %v848 = vpop.xlane.xlu0 %847
    %v849 = vsel %vm563, %v835, 0.0
    %850 = vadd.xlane.f32.xlu0 %v849
    %v851 = vpop.xlane.xlu0 %850
    %v852 = vsel %vm563, %v837, 0.0
    %853 = vadd.xlane.f32.xlu0 %v852
    %v854 = vpop.xlane.xlu0 %853
    %v855 = vsel %vm563, %v839, 0.0
    %856 = vadd.xlane.f32.xlu0 %v855
    %v857 = vpop.xlane.xlu0 %856
    %v858 = vrcp.pop %v842
    %v859 = vrcp.pop %v845
    %v860 = vrcp.pop %v848
    %v861 = vrcp.pop %v851
    %v862 = vrcp.pop %v854
    %v863 = vrcp.pop %v857
    %v864 = vmul.f32 %v829, %v858
    %v865 = vmul.f32 %v831, %v859
    %v866 = vmul.f32 %v833, %v860
    %v867 = vmul.f32 %v835, %v861
    %v868 = vmul.f32 %v837, %v862
    %v869 = vmul.f32 %v839, %v863
    %v870 = vpack.c.bf16 %v865, %v864
    %v871 = vpack.c.bf16 %v867, %v866
    %v872 = vpack.c.bf16 %v869, %v868
    %873 = vrot.lane.b32.xlu0 %v469, 48
    %v874 = vpop.permute.xlu0 %873
    %875 = vrot.lane.b32.xlu0 %v470, 48
    %v876 = vpop.permute.xlu0 %875
    %877 = vrot.lane.b32.xlu0 %v471, 48
    %v878 = vpop.permute.xlu0 %877
    %v883 = vsel %vm563, %v870, 0
    %v886 = vsel %vm563, %v871, 0
    %v889 = vsel %vm563, %v872, 0
    %891 = vmatprep.subr.bf16.mxu0 0
    %892 = vmatpush1.bf16.msra.mxu0 %v874
    %893 = vmatprep.subr.bf16.mxu0 0
    %894 = vmatpush1.bf16.msra.mxu0 %v876
    %895 = vmatprep.subr.bf16.mxu0 0
    %896 = vmatpush1.bf16.msra.mxu0 %v878
    %897 = vmatprep.subr.bf16.mxu0 0
    %898 = vmatpush1.bf16.msra.mxu0 0
    %899 = vmatprep.subr.bf16.mxu0 0
    %900 = vmatpush1.bf16.msra.mxu0 0
    %901 = vmatprep.subr.bf16.mxu0 0
    %902 = vmatpush1.bf16.msra.mxu0 0
    %903 = vmatprep.subr.bf16.mxu0 0
    %904 = vmatpush1.bf16.msra.mxu0 0
    %905 = vmatprep.subr.bf16.mxu0 0
    %906 = vmatpush1.bf16.msra.mxu0 0
    %907 = vmatprep.subr.bf16.mxu0 0
    %908 = vmatpush1.bf16.msra.mxu0 0
    %909 = vmatprep.subr.bf16.mxu0 0
    %910 = vmatpush1.bf16.msra.mxu0 0
    %911 = vmatprep.subr.bf16.mxu0 0
    %912 = vmatpush1.bf16.msra.mxu0 0
    %913 = vmatprep.subr.bf16.mxu0 0
    %914 = vmatpush1.bf16.msra.mxu0 0
    %915 = vmatprep.subr.bf16.mxu0 0
    %916 = vmatpush1.bf16.msra.mxu0 0
    %917 = vmatprep.subr.bf16.mxu0 0
    %918 = vmatpush1.bf16.msra.mxu0 0
    %919 = vmatprep.subr.bf16.mxu0 0
    %920 = vmatpush1.bf16.msra.mxu0 0
    %921 = vmatprep.subr.bf16.mxu0 0
    %922 = vmatpush1.bf16.msra.mxu0 0
    %923 = vmatprep.mubr.bf16.mxu0 0
    %924 = vmatmul.mubr.bf16.gmra.mrb[0].mxu0 %v883
    %v925 = vpop.f32.mrb[0].mxu0
    %v926 = vadd.f32 0.0, %v925
    %v927 = vpop.f32.mrb[0].mxu0
    %v928 = vpop.f32.mrb[0].mxu0
    %v929 = vadd.f32 0.0, %v928
    %v930 = vpop.f32.mrb[0].mxu0
    %931 = vmatprep.mubr.bf16.mxu0 0
    %932 = vmatmul.mubr.bf16.gmra.mrb[0].mxu0 %v886
    %v933 = vpop.f32.mrb[0].mxu0
    %v934 = vadd.f32 0.0, %v933
    %v935 = vpop.f32.mrb[0].mxu0
    %v936 = vpop.f32.mrb[0].mxu0
    %v937 = vadd.f32 0.0, %v936
    %v938 = vpop.f32.mrb[0].mxu0
    %939 = vmatprep.mubr.bf16.mxu0 0
    %940 = vmatmul.mubr.bf16.gmra.mrb[0].mxu0 %v889
    %v941 = vpop.f32.mrb[0].mxu0
    %v942 = vadd.f32 0.0, %v941
    %v943 = vpop.f32.mrb[0].mxu0
    %v944 = vpop.f32.mrb[0].mxu0
    %v945 = vadd.f32 0.0, %v944
    %v946 = vpop.f32.mrb[0].mxu0
    %947 = vdwg.mxu0
    %954 = vrot.lane.b32.xlu0 %v926, 16
    %v955 = vpop.permute.xlu0 %954
    %956 = vrot.lane.b32.xlu0 %v929, 16
    %v957 = vpop.permute.xlu0 %956
    %958 = vrot.lane.b32.xlu0 %v934, 16
    %v959 = vpop.permute.xlu0 %958
    %960 = vrot.lane.b32.xlu0 %v937, 16
    %v961 = vpop.permute.xlu0 %960
    %962 = vrot.lane.b32.xlu0 %v942, 16
    %v963 = vpop.permute.xlu0 %962
    %964 = vrot.lane.b32.xlu0 %v945, 16
    %v965 = vpop.permute.xlu0 %964
    %v972 = vsel %vm481, %v686, %v955
    %v973 = vsel %vm481, %v689, %v957
    %v974 = vsel %vm481, %v694, %v959
    %v975 = vsel %vm481, %v697, %v961
    %v976 = vsel %vm481, %v702, %v963
    %v977 = vsel %vm481, %v705, %v965
    %v978 = vpack.c.bf16 %v973, %v972
    %v979 = vpack.c.bf16 %v975, %v974
    %v980 = vpack.c.bf16 %v977, %v976
    %v981 = vld [vmem:[#allocation2 + $0x20] sm:$0xff]
    %v982 = vld [vmem:[#allocation2 + $0x28] sm:$0xff]
    %v983 = vld [vmem:[#allocation2 + $0x30] sm:$0xff]
    %v984 = vld [vmem:[#allocation2 + $0x38] sm:$0xff]
    %v989 = vunpack.c.l.b16 %v981
    %v990 = vunpack.c.h.b16 %v981
    %v991 = vunpack.c.l.b16 %v982
    %v992 = vunpack.c.h.b16 %v982
    %v993 = vunpack.c.l.b16 %v983
    %v994 = vunpack.c.h.b16 %v983
    %v995 = vunpack.c.l.b16 %v984
    %v996 = vunpack.c.h.b16 %v984
    %v997 = vpack.c.b16 %v991, %v989
    %v998 = vpack.c.b16 %v992, %v990
    %v999 = vpack.c.b16 %v995, %v993
    %v1000 = vpack.c.b16 %v996, %v994
    %v1006 = vsel %vm267, %v978, 0
    %v1009 = vsel %vm267, %v979, 0
    %v1012 = vsel %vm267, %v980, 0
    %1014 = vmatprep.subr.bf16.mxu0 %v998
    %1015 = vmatpush1.bf16.msra.mxu0 %v997
    %1016 = vmatprep.subr.bf16.mxu0 %v1000
    %1017 = vmatpush1.bf16.msra.mxu0 %v999
    %1018 = vmatprep.subr.bf16.mxu0 0
    %1019 = vmatpush1.bf16.msra.mxu0 0
    %1020 = vmatprep.subr.bf16.mxu0 0
    %1021 = vmatpush1.bf16.msra.mxu0 0
    %1022 = vmatprep.subr.bf16.mxu0 0
    %1023 = vmatpush1.bf16.msra.mxu0 0
    %1024 = vmatprep.subr.bf16.mxu0 0
    %1025 = vmatpush1.bf16.msra.mxu0 0
    %1026 = vmatprep.subr.bf16.mxu0 0
    %1027 = vmatpush1.bf16.msra.mxu0 0
    %1028 = vmatprep.subr.bf16.mxu0 0
    %1029 = vmatpush1.bf16.msra.mxu0 0
    %1030 = vmatprep.subr.bf16.mxu0 0
    %1031 = vmatpush1.bf16.msra.mxu0 0
    %1032 = vmatprep.subr.bf16.mxu0 0
    %1033 = vmatpush1.bf16.msra.mxu0 0
    %1034 = vmatprep.subr.bf16.mxu0 0
    %1035 = vmatpush1.bf16.msra.mxu0 0
    %1036 = vmatprep.subr.bf16.mxu0 0
    %1037 = vmatpush1.bf16.msra.mxu0 0
    %1038 = vmatprep.subr.bf16.mxu0 0
    %1039 = vmatpush1.bf16.msra.mxu0 0
    %1040 = vmatprep.subr.bf16.mxu0 0
    %1041 = vmatpush1.bf16.msra.mxu0 0
    %1042 = vmatprep.subr.bf16.mxu0 0
    %1043 = vmatpush1.bf16.msra.mxu0 0
    %1044 = vmatprep.subr.bf16.mxu0 0
    %1045 = vmatpush1.bf16.msra.mxu0 0
    %1046 = vmatprep.mubr.bf16.mxu0 0
    %1047 = vmatmul.mubr.bf16.gmra.mrb[0].mxu0 %v1006
    %v1048 = vpop.f32.mrb[0].mxu0
    %v1049 = vadd.f32 0.0, %v1048
    %v1050 = vpop.f32.mrb[0].mxu0
    %v1051 = vpop.f32.mrb[0].mxu0
    %v1052 = vadd.f32 0.0, %v1051
    %v1053 = vpop.f32.mrb[0].mxu0
    %1054 = vmatprep.mubr.bf16.mxu0 0
    %1055 = vmatmul.mubr.bf16.gmra.mrb[0].mxu0 %v1009
    %v1056 = vpop.f32.mrb[0].mxu0
    %v1057 = vadd.f32 0.0, %v1056
    %v1058 = vpop.f32.mrb[0].mxu0
    %v1059 = vpop.f32.mrb[0].mxu0
    %v1060 = vadd.f32 0.0, %v1059
    %v1061 = vpop.f32.mrb[0].mxu0
    %1062 = vmatprep.mubr.bf16.mxu0 0
    %1063 = vmatmul.mubr.bf16.gmra.mrb[0].mxu0 %v1012
    %v1064 = vpop.f32.mrb[0].mxu0
    %v1065 = vadd.f32 0.0, %v1064
    %v1066 = vpop.f32.mrb[0].mxu0
    %v1067 = vpop.f32.mrb[0].mxu0
    %v1068 = vadd.f32 0.0, %v1067
    %v1069 = vpop.f32.mrb[0].mxu0
    %1070 = vdwg.mxu0
    %v1071 = vlaneseq
    %v1072 = vshrl.u32 %v1071, 7
    %v1073 = vsub.s32 2, %v1072
    %v1074 = vrot.slane %v33, %v1073
    %v1075 = vadd.f32 %v1049, %v1074
    %v1076 = vadd.f32 %v1052, %v1074
    %v1077 = vadd.f32 %v1057, %v1074
    %v1078 = vadd.f32 %v1060, %v1074
    %v1079 = vadd.f32 %v1065, %v1074
    %v1080 = vadd.f32 %v1068, %v1074
    %v1081 = vadd.f32 %v201, %v1075
    %v1082 = vadd.f32 %v206, %v1076
    %v1083 = vadd.f32 %v211, %v1077
    %v1084 = vadd.f32 %v216, %v1078
    %v1085 = vadd.f32 %v221, %v1079
    %v1086 = vadd.f32 %v226, %v1080
    %v1087 = vsel %vm267, %v1081, 0.0
    %1088 = vadd.xlane.f32.xlu0 %v1087
    %v1089 = vpop.xlane.xlu0 %1088
    %v1090 = vsel %vm267, %v1082, 0.0
    %1091 = vadd.xlane.f32.xlu0 %v1090
    %v1092 = vpop.xlane.xlu0 %1091
    %v1093 = vsel %vm267, %v1083, 0.0
    %1094 = vadd.xlane.f32.xlu0 %v1093
    %v1095 = vpop.xlane.xlu0 %1094
    %v1096 = vsel %vm267, %v1084, 0.0
    %1097 = vadd.xlane.f32.xlu0 %v1096
    %v1098 = vpop.xlane.xlu0 %1097
    %v1099 = vsel %vm267, %v1085, 0.0
    %1100 = vadd.xlane.f32.xlu0 %v1099
    %v1101 = vpop.xlane.xlu0 %1100
    %v1102 = vsel %vm267, %v1086, 0.0
    %1103 = vadd.xlane.f32.xlu0 %v1102
    %v1104 = vpop.xlane.xlu0 %1103
    %v1105 = vmul.f32 %v1089, %v286
    %v1106 = vmul.f32 %v1092, %v286
    %v1107 = vmul.f32 %v1095, %v286
    %v1108 = vmul.f32 %v1098, %v286
    %v1109 = vmul.f32 %v1101, %v286
    %v1110 = vmul.f32 %v1104, %v286
    %v1111 = vsub.f32 %v1081, %v1105
    %v1112 = vsub.f32 %v1082, %v1106
    %v1113 = vsub.f32 %v1083, %v1107
    %v1114 = vsub.f32 %v1084, %v1108
    %v1115 = vsub.f32 %v1085, %v1109
    %v1116 = vsub.f32 %v1086, %v1110
    %v1117 = vmul.f32 %v1111, %v1111
    %v1118 = vmul.f32 %v1112, %v1112
    %v1119 = vmul.f32 %v1113, %v1113
    %v1120 = vmul.f32 %v1114, %v1114
    %v1121 = vmul.f32 %v1115, %v1115
    %v1122 = vmul.f32 %v1116, %v1116
    %v1123 = vsel %vm267, %v1117, 0.0
    %1124 = vadd.xlane.f32.xlu0 %v1123
    %v1125 = vpop.xlane.xlu0 %1124
    %v1126 = vsel %vm267, %v1118, 0.0
    %1127 = vadd.xlane.f32.xlu0 %v1126
    %v1128 = vpop.xlane.xlu0 %1127
    %v1129 = vsel %vm267, %v1119, 0.0
    %1130 = vadd.xlane.f32.xlu0 %v1129
    %v1131 = vpop.xlane.xlu0 %1130
    %v1132 = vsel %vm267, %v1120, 0.0
    %1133 = vadd.xlane.f32.xlu0 %v1132
    %v1134 = vpop.xlane.xlu0 %1133
    %v1135 = vsel %vm267, %v1121, 0.0
    %1136 = vadd.xlane.f32.xlu0 %v1135
    %v1137 = vpop.xlane.xlu0 %1136
    %v1138 = vsel %vm267, %v1122, 0.0
    %1139 = vadd.xlane.f32.xlu0 %v1138
    %v1140 = vpop.xlane.xlu0 %1139
    %v1141 = vmul.f32 %v1125, %v286
    %v1142 = vmul.f32 %v1128, %v286
    %v1143 = vmul.f32 %v1131, %v286
    %v1144 = vmul.f32 %v1134, %v286
    %v1145 = vmul.f32 %v1137, %v286
    %v1146 = vmul.f32 %v1140, %v286
    %v1147 = vadd.f32 %v1141, 1e-05
    %v1148 = vadd.f32 %v1142, 1e-05
    %v1149 = vadd.f32 %v1143, 1e-05
    %v1150 = vadd.f32 %v1144, 1e-05
    %v1151 = vadd.f32 %v1145, 1e-05
    %v1152 = vadd.f32 %v1146, 1e-05
    %v1153 = vrsqrt.pop %v1147
    %v1154 = vrsqrt.pop %v1148
    %v1155 = vrsqrt.pop %v1149
    %v1156 = vrsqrt.pop %v1150
    %v1157 = vrsqrt.pop %v1151
    %v1158 = vrsqrt.pop %v1152
    %v1159 = vmul.f32 %v1111, %v1153
    %v1160 = vmul.f32 %v1112, %v1154
    %v1161 = vmul.f32 %v1113, %v1155
    %v1162 = vmul.f32 %v1114, %v1156
    %v1163 = vmul.f32 %v1115, %v1157
    %v1164 = vmul.f32 %v1116, %v1158
    %v1165 = vlaneseq
    %v1166 = vshrl.u32 %v1165, 7
    %v1167 = vsub.s32 3, %v1166
    %v1168 = vrot.slane %v33, %v1167
    %v1169 = vmul.f32 %v1159, %v1168
    %v1170 = vmul.f32 %v1160, %v1168
    %v1171 = vmul.f32 %v1161, %v1168
    %v1172 = vmul.f32 %v1162, %v1168
    %v1173 = vmul.f32 %v1163, %v1168
    %v1174 = vmul.f32 %v1164, %v1168
    %v1175 = vlaneseq
    %v1176 = vshrl.u32 %v1175, 7
    %v1177 = vsub.s32 4, %v1176
    %v1178 = vrot.slane %v33, %v1177
    %v1179 = vadd.f32 %v1169, %v1178
    %v1180 = vadd.f32 %v1170, %v1178
    %v1181 = vadd.f32 %v1171, %v1178
    %v1182 = vadd.f32 %v1172, %v1178
    %v1183 = vadd.f32 %v1173, %v1178
    %v1184 = vadd.f32 %v1174, %v1178
    %v1185 = vpack.c.bf16 %v1180, %v1179
    %v1186 = vpack.c.bf16 %v1182, %v1181
    %v1187 = vpack.c.bf16 %v1184, %v1183
    %v1188 = vld [vmem:[#allocation2 + $0x40] sm:$0xff]
    %v1189 = vld [vmem:[#allocation2 + $0x48] sm:$0xff]
    %v1190 = vld [vmem:[#allocation2 + $0x50] sm:$0xff]
    %v1191 = vld [vmem:[#allocation2 + $0x58] sm:$0xff]
    %v1192 = vlaneseq
    %v1193 = vshrl.u32 %v1192, 7
    %v1194 = vsub.s32 5, %v1193
    %v1195 = vrot.slane %v33, %v1194
    %v1196 = vlaneseq
    %v1197 = vshrl.u32 %v1196, 7
    %v1198 = vsub.s32 5, %v1197
    %v1199 = vrot.slane %v34, %v1198
    %v1204 = vunpack.c.l.b16 %v1188
    %v1205 = vunpack.c.h.b16 %v1188
    %v1206 = vunpack.c.l.b16 %v1189
    %v1207 = vunpack.c.h.b16 %v1189
    %v1208 = vunpack.c.l.b16 %v1190
    %v1209 = vunpack.c.h.b16 %v1190
    %v1210 = vunpack.c.l.b16 %v1191
    %v1211 = vunpack.c.h.b16 %v1191
    %v1212 = vpack.c.b16 %v1206, %v1204
    %v1213 = vpack.c.b16 %v1207, %v1205
    %v1214 = vpack.c.b16 %v1210, %v1208
    %v1215 = vpack.c.b16 %v1211, %v1209
    %v1221 = vsel %vm267, %v1185, 0
    %v1224 = vsel %vm267, %v1186, 0
    %v1227 = vsel %vm267, %v1187, 0
    %1229 = vmatprep.subr.bf16.mxu0 %v1213
    %1230 = vmatpush1.bf16.msra.mxu0 %v1212
    %1231 = vmatprep.subr.bf16.mxu0 %v1215
    %1232 = vmatpush1.bf16.msra.mxu0 %v1214
    %1233 = vmatprep.subr.bf16.mxu0 0
    %1234 = vmatpush1.bf16.msra.mxu0 0
    %1235 = vmatprep.subr.bf16.mxu0 0
    %1236 = vmatpush1.bf16.msra.mxu0 0
    %1237 = vmatprep.subr.bf16.mxu0 0
    %1238 = vmatpush1.bf16.msra.mxu0 0
    %1239 = vmatprep.subr.bf16.mxu0 0
    %1240 = vmatpush1.bf16.msra.mxu0 0
    %1241 = vmatprep.subr.bf16.mxu0 0
    %1242 = vmatpush1.bf16.msra.mxu0 0
    %1243 = vmatprep.subr.bf16.mxu0 0
    %1244 = vmatpush1.bf16.msra.mxu0 0
    %1245 = vmatprep.subr.bf16.mxu0 0
    %1246 = vmatpush1.bf16.msra.mxu0 0
    %1247 = vmatprep.subr.bf16.mxu0 0
    %1248 = vmatpush1.bf16.msra.mxu0 0
    %1249 = vmatprep.subr.bf16.mxu0 0
    %1250 = vmatpush1.bf16.msra.mxu0 0
    %1251 = vmatprep.subr.bf16.mxu0 0
    %1252 = vmatpush1.bf16.msra.mxu0 0
    %1253 = vmatprep.subr.bf16.mxu0 0
    %1254 = vmatpush1.bf16.msra.mxu0 0
    %1255 = vmatprep.subr.bf16.mxu0 0
    %1256 = vmatpush1.bf16.msra.mxu0 0
    %1257 = vmatprep.subr.bf16.mxu0 0
    %1258 = vmatpush1.bf16.msra.mxu0 0
    %1259 = vmatprep.subr.bf16.mxu0 0
    %1260 = vmatpush1.bf16.msra.mxu0 0
    %1261 = vmatprep.mubr.bf16.mxu0 0
    %1262 = vmatmul.mubr.bf16.gmra.mrb[0].mxu0 %v1221
    %v1263 = vpop.f32.mrb[0].mxu0
    %v1264 = vadd.f32 %v1195, %v1263
    %v1265 = vpop.f32.mrb[0].mxu0
    %v1266 = vadd.f32 %v1199, %v1265
    %v1267 = vpop.f32.mrb[0].mxu0
    %v1268 = vadd.f32 %v1195, %v1267
    %v1269 = vpop.f32.mrb[0].mxu0
    %v1270 = vadd.f32 %v1199, %v1269
    %1271 = vmatprep.mubr.bf16.mxu0 0
    %1272 = vmatmul.mubr.bf16.gmra.mrb[0].mxu0 %v1224
    %v1273 = vpop.f32.mrb[0].mxu0
    %v1274 = vadd.f32 %v1195, %v1273
    %v1275 = vpop.f32.mrb[0].mxu0
    %v1276 = vadd.f32 %v1199, %v1275
    %v1277 = vpop.f32.mrb[0].mxu0
    %v1278 = vadd.f32 %v1195, %v1277
    %v1279 = vpop.f32.mrb[0].mxu0
    %v1280 = vadd.f32 %v1199, %v1279
    %1281 = vmatprep.mubr.bf16.mxu0 0
    %1282 = vmatmul.mubr.bf16.gmra.mrb[0].mxu0 %v1227
    %v1283 = vpop.f32.mrb[0].mxu0
    %v1284 = vadd.f32 %v1195, %v1283
    %v1285 = vpop.f32.mrb[0].mxu0
    %v1286 = vadd.f32 %v1199, %v1285
    %v1287 = vpop.f32.mrb[0].mxu0
    %v1288 = vadd.f32 %v1195, %v1287
    %v1289 = vpop.f32.mrb[0].mxu0
    %v1290 = vadd.f32 %v1199, %v1289
    %1291 = vdwg.mxu0
    %v1292 = vmul.f32 %v1266, 0.5
    %v1293 = vmul.f32 %v1270, 0.5
    %v1294 = vmul.f32 %v1276, 0.5
    %v1295 = vmul.f32 %v1280, 0.5
    %v1296 = vmul.f32 %v1286, 0.5
    %v1297 = vmul.f32 %v1290, 0.5
    %v1298 = vmul.f32 %v1266, 0.70710677
    %v1299 = vmul.f32 %v1270, 0.70710677
    %v1300 = vmul.f32 %v1276, 0.70710677
    %v1301 = vmul.f32 %v1280, 0.70710677
    %v1302 = vmul.f32 %v1286, 0.70710677
    %v1303 = vmul.f32 %v1290, 0.70710677
    %v1304 = verf.f32.pop %v1298
    %v1305 = verf.f32.pop %v1299
    %v1306 = verf.f32.pop %v1300
    %v1307 = verf.f32.pop %v1301
    %v1308 = verf.f32.pop %v1302
    %v1309 = verf.f32.pop %v1303
    %v1310 = vadd.f32 %v1304, 1.0
    %v1311 = vadd.f32 %v1305, 1.0
    %v1312 = vadd.f32 %v1306, 1.0
    %v1313 = vadd.f32 %v1307, 1.0
    %v1314 = vadd.f32 %v1308, 1.0
    %v1315 = vadd.f32 %v1309, 1.0
    %v1316 = vmul.f32 %v1292, %v1310
    %v1317 = vmul.f32 %v1293, %v1311
    %v1318 = vmul.f32 %v1294, %v1312
    %v1319 = vmul.f32 %v1295, %v1313
    %v1320 = vmul.f32 %v1296, %v1314
    %v1321 = vmul.f32 %v1297, %v1315
    %v1322 = vmul.f32 %v1264, %v1316
    %v1323 = vmul.f32 %v1268, %v1317
    %v1324 = vmul.f32 %v1274, %v1318
    %v1325 = vmul.f32 %v1278, %v1319
    %v1326 = vmul.f32 %v1284, %v1320
    %v1327 = vmul.f32 %v1288, %v1321
    %v1328 = vpack.c.bf16 %v1323, %v1322
    %v1329 = vpack.c.bf16 %v1325, %v1324
    %v1330 = vpack.c.bf16 %v1327, %v1326
    %v1331 = vld [vmem:[#allocation2 + $0x60] sm:$0xff]
    %v1332 = vld [vmem:[#allocation2 + $0x68] sm:$0xff]
    %v1333 = vld [vmem:[#allocation2 + $0x70] sm:$0xff]
    %v1334 = vld [vmem:[#allocation2 + $0x78] sm:$0xff]
    %v1335 = vld [vmem:[#allocation2 + $0x80] sm:$0xff]
    %v1336 = vld [vmem:[#allocation2 + $0x88] sm:$0xff]
    %v1337 = vld [vmem:[#allocation2 + $0x90] sm:$0xff]
    %v1338 = vld [vmem:[#allocation2 + $0x98] sm:$0xff]
    %v1339 = vld [vmem:[#allocation2 + $0xa0] sm:$0xff]
    %v1340 = vld [vmem:[#allocation2 + $0xa8] sm:$0xff]
    %v1341 = vld [vmem:[#allocation2 + $0xb0] sm:$0xff]
    %v1342 = vld [vmem:[#allocation2 + $0xb8] sm:$0xff]
    %v1343 = vld [vmem:[#allocation2 + $0xc0] sm:$0xff]
    %v1344 = vld [vmem:[#allocation2 + $0xc8] sm:$0xff]
    %v1345 = vld [vmem:[#allocation2 + $0xd0] sm:$0xff]
    %v1346 = vld [vmem:[#allocation2 + $0xd8] sm:$0xff]
    %v1363 = vunpack.c.l.b16 %v1331
    %v1364 = vunpack.c.h.b16 %v1331
    %v1365 = vunpack.c.l.b16 %v1332
    %v1366 = vunpack.c.h.b16 %v1332
    %v1367 = vunpack.c.l.b16 %v1333
    %v1368 = vunpack.c.h.b16 %v1333
    %v1369 = vunpack.c.l.b16 %v1334
    %v1370 = vunpack.c.h.b16 %v1334
    %v1371 = vunpack.c.l.b16 %v1335
    %v1372 = vunpack.c.h.b16 %v1335
    %v1373 = vunpack.c.l.b16 %v1336
    %v1374 = vunpack.c.h.b16 %v1336
    %v1375 = vunpack.c.l.b16 %v1337
    %v1376 = vunpack.c.h.b16 %v1337
    %v1377 = vunpack.c.l.b16 %v1338
    %v1378 = vunpack.c.h.b16 %v1338
    %v1379 = vunpack.c.l.b16 %v1339
    %v1380 = vunpack.c.h.b16 %v1339
    %v1381 = vunpack.c.l.b16 %v1340
    %v1382 = vunpack.c.h.b16 %v1340
    %v1383 = vunpack.c.l.b16 %v1341
    %v1384 = vunpack.c.h.b16 %v1341
    %v1385 = vunpack.c.l.b16 %v1342
    %v1386 = vunpack.c.h.b16 %v1342
    %v1387 = vunpack.c.l.b16 %v1343
    %v1388 = vunpack.c.h.b16 %v1343
    %v1389 = vunpack.c.l.b16 %v1344
    %v1390 = vunpack.c.h.b16 %v1344
    %v1391 = vunpack.c.l.b16 %v1345
    %v1392 = vunpack.c.h.b16 %v1345
    %v1393 = vunpack.c.l.b16 %v1346
    %v1394 = vunpack.c.h.b16 %v1346
    %v1395 = vpack.c.b16 %v1365, %v1363
    %v1396 = vpack.c.b16 %v1366, %v1364
    %v1397 = vpack.c.b16 %v1369, %v1367
    %v1398 = vpack.c.b16 %v1370, %v1368
    %v1399 = vpack.c.b16 %v1373, %v1371
    %v1400 = vpack.c.b16 %v1374, %v1372
    %v1401 = vpack.c.b16 %v1377, %v1375
    %v1402 = vpack.c.b16 %v1378, %v1376
    %v1403 = vpack.c.b16 %v1381, %v1379
    %v1404 = vpack.c.b16 %v1382, %v1380
    %v1405 = vpack.c.b16 %v1385, %v1383
    %v1406 = vpack.c.b16 %v1386, %v1384
    %v1407 = vpack.c.b16 %v1389, %v1387
    %v1408 = vpack.c.b16 %v1390, %v1388
    %v1409 = vpack.c.b16 %v1393, %v1391
    %v1410 = vpack.c.b16 %v1394, %v1392
    %1427 = vmatprep.subr.bf16.mxu0 %v1396
    %1428 = vmatpush1.bf16.msra.mxu0 %v1395
    %1429 = vmatprep.subr.bf16.mxu0 %v1398
    %1430 = vmatpush1.bf16.msra.mxu0 %v1397
    %1431 = vmatprep.subr.bf16.mxu0 %v1400
    %1432 = vmatpush1.bf16.msra.mxu0 %v1399
    %1433 = vmatprep.subr.bf16.mxu0 %v1402
    %1434 = vmatpush1.bf16.msra.mxu0 %v1401
    %1435 = vmatprep.subr.bf16.mxu0 %v1404
    %1436 = vmatpush1.bf16.msra.mxu0 %v1403
    %1437 = vmatprep.subr.bf16.mxu0 %v1406
    %1438 = vmatpush1.bf16.msra.mxu0 %v1405
    %1439 = vmatprep.subr.bf16.mxu0 %v1408
    %1440 = vmatpush1.bf16.msra.mxu0 %v1407
    %1441 = vmatprep.subr.bf16.mxu0 %v1410
    %1442 = vmatpush1.bf16.msra.mxu0 %v1409
    %1443 = vmatprep.subr.bf16.mxu0 0
    %1444 = vmatpush1.bf16.msra.mxu0 0
    %1445 = vmatprep.subr.bf16.mxu0 0
    %1446 = vmatpush1.bf16.msra.mxu0 0
    %1447 = vmatprep.subr.bf16.mxu0 0
    %1448 = vmatpush1.bf16.msra.mxu0 0
    %1449 = vmatprep.subr.bf16.mxu0 0
    %1450 = vmatpush1.bf16.msra.mxu0 0
    %1451 = vmatprep.subr.bf16.mxu0 0
    %1452 = vmatpush1.bf16.msra.mxu0 0
    %1453 = vmatprep.subr.bf16.mxu0 0
    %1454 = vmatpush1.bf16.msra.mxu0 0
    %1455 = vmatprep.subr.bf16.mxu0 0
    %1456 = vmatpush1.bf16.msra.mxu0 0
    %1457 = vmatprep.subr.bf16.mxu0 0
    %1458 = vmatpush1.bf16.msra.mxu0 0
    %1459 = vmatprep.mubr.bf16.mxu0 0
    %1460 = vmatmul.mubr.bf16.gmra.mrb[0].mxu0 %v1328
    %v1461 = vpop.f32.mrb[0].mxu0
    %v1462 = vadd.f32 0.0, %v1461
    %v1463 = vpop.f32.mrb[0].mxu0
    %v1464 = vpop.f32.mrb[0].mxu0
    %v1465 = vadd.f32 0.0, %v1464
    %v1466 = vpop.f32.mrb[0].mxu0
    %1467 = vmatprep.mubr.bf16.mxu0 0
    %1468 = vmatmul.mubr.bf16.gmra.mrb[0].mxu0 %v1329
    %v1469 = vpop.f32.mrb[0].mxu0
    %v1470 = vadd.f32 0.0, %v1469
    %v1471 = vpop.f32.mrb[0].mxu0
    %v1472 = vpop.f32.mrb[0].mxu0
    %v1473 = vadd.f32 0.0, %v1472
    %v1474 = vpop.f32.mrb[0].mxu0
    %1475 = vmatprep.mubr.bf16.mxu0 0
    %1476 = vmatmul.mubr.bf16.gmra.mrb[0].mxu0 %v1330
    %v1477 = vpop.f32.mrb[0].mxu0
    %v1478 = vadd.f32 0.0, %v1477
    %v1479 = vpop.f32.mrb[0].mxu0
    %v1480 = vpop.f32.mrb[0].mxu0
    %v1481 = vadd.f32 0.0, %v1480
    %v1482 = vpop.f32.mrb[0].mxu0
    %1483 = vdwg.mxu0
    %v1484 = vlaneseq
    %v1485 = vshrl.u32 %v1484, 7
    %v1486 = vsub.s32 6, %v1485
    %v1487 = vrot.slane %v33, %v1486
    %v1488 = vadd.f32 %v1462, %v1487
    %v1489 = vadd.f32 %v1465, %v1487
    %v1490 = vadd.f32 %v1470, %v1487
    %v1491 = vadd.f32 %v1473, %v1487
    %v1492 = vadd.f32 %v1478, %v1487
    %v1493 = vadd.f32 %v1481, %v1487
    %v1494 = vadd.f32 %v1081, %v1488
    %v1495 = vadd.f32 %v1082, %v1489
    %v1496 = vadd.f32 %v1083, %v1490
    %v1497 = vadd.f32 %v1084, %v1491
    %v1498 = vadd.f32 %v1085, %v1492
    %v1499 = vadd.f32 %v1086, %v1493
    %v1500 = vsel %vm267, %v1494, 0.0
    %1501 = vadd.xlane.f32.xlu0 %v1500
    %v1502 = vpop.xlane.xlu0 %1501
    %v1503 = vsel %vm267, %v1495, 0.0
    %1504 = vadd.xlane.f32.xlu0 %v1503
    %v1505 = vpop.xlane.xlu0 %1504
    %v1506 = vsel %vm267, %v1496, 0.0
    %1507 = vadd.xlane.f32.xlu0 %v1506
    %v1508 = vpop.xlane.xlu0 %1507
    %v1509 = vsel %vm267, %v1497, 0.0
    %1510 = vadd.xlane.f32.xlu0 %v1509
    %v1511 = vpop.xlane.xlu0 %1510
    %v1512 = vsel %vm267, %v1498, 0.0
    %1513 = vadd.xlane.f32.xlu0 %v1512
    %v1514 = vpop.xlane.xlu0 %1513
    %v1515 = vsel %vm267, %v1499, 0.0
    %1516 = vadd.xlane.f32.xlu0 %v1515
    %v1517 = vpop.xlane.xlu0 %1516
    %v1518 = vmul.f32 %v1502, %v286
    %v1519 = vmul.f32 %v1505, %v286
    %v1520 = vmul.f32 %v1508, %v286
    %v1521 = vmul.f32 %v1511, %v286
    %v1522 = vmul.f32 %v1514, %v286
    %v1523 = vmul.f32 %v1517, %v286
    %v1524 = vsub.f32 %v1494, %v1518
    %v1525 = vsub.f32 %v1495, %v1519
    %v1526 = vsub.f32 %v1496, %v1520
    %v1527 = vsub.f32 %v1497, %v1521
    %v1528 = vsub.f32 %v1498, %v1522
    %v1529 = vsub.f32 %v1499, %v1523
    %v1530 = vmul.f32 %v1524, %v1524
    %v1531 = vmul.f32 %v1525, %v1525
    %v1532 = vmul.f32 %v1526, %v1526
    %v1533 = vmul.f32 %v1527, %v1527
    %v1534 = vmul.f32 %v1528, %v1528
    %v1535 = vmul.f32 %v1529, %v1529
    %v1536 = vsel %vm267, %v1530, 0.0
    %1537 = vadd.xlane.f32.xlu0 %v1536
    %v1538 = vpop.xlane.xlu0 %1537
    %v1539 = vsel %vm267, %v1531, 0.0
    %1540 = vadd.xlane.f32.xlu0 %v1539
    %v1541 = vpop.xlane.xlu0 %1540
    %v1542 = vsel %vm267, %v1532, 0.0
    %1543 = vadd.xlane.f32.xlu0 %v1542
    %v1544 = vpop.xlane.xlu0 %1543
    %v1545 = vsel %vm267, %v1533, 0.0
    %1546 = vadd.xlane.f32.xlu0 %v1545
    %v1547 = vpop.xlane.xlu0 %1546
    %v1548 = vsel %vm267, %v1534, 0.0
    %1549 = vadd.xlane.f32.xlu0 %v1548
    %v1550 = vpop.xlane.xlu0 %1549
    %v1551 = vsel %vm267, %v1535, 0.0
    %1552 = vadd.xlane.f32.xlu0 %v1551
    %v1553 = vpop.xlane.xlu0 %1552
    %v1554 = vmul.f32 %v1538, %v286
    %v1555 = vmul.f32 %v1541, %v286
    %v1556 = vmul.f32 %v1544, %v286
    %v1557 = vmul.f32 %v1547, %v286
    %v1558 = vmul.f32 %v1550, %v286
    %v1559 = vmul.f32 %v1553, %v286
    %v1560 = vadd.f32 %v1554, 1e-05
    %v1561 = vadd.f32 %v1555, 1e-05
    %v1562 = vadd.f32 %v1556, 1e-05
    %v1563 = vadd.f32 %v1557, 1e-05
    %v1564 = vadd.f32 %v1558, 1e-05
    %v1565 = vadd.f32 %v1559, 1e-05
    %v1566 = vrsqrt.pop %v1560
    %v1567 = vrsqrt.pop %v1561
    %v1568 = vrsqrt.pop %v1562
    %v1569 = vrsqrt.pop %v1563
    %v1570 = vrsqrt.pop %v1564
    %v1571 = vrsqrt.pop %v1565
    %v1572 = vmul.f32 %v1524, %v1566
    %v1573 = vmul.f32 %v1525, %v1567
    %v1574 = vmul.f32 %v1526, %v1568
    %v1575 = vmul.f32 %v1527, %v1569
    %v1576 = vmul.f32 %v1528, %v1570
    %v1577 = vmul.f32 %v1529, %v1571
    %v1578 = vlaneseq
    %v1579 = vshrl.u32 %v1578, 7
    %v1580 = vsub.s32 7, %v1579
    %v1581 = vrot.slane %v33, %v1580
    %v1582 = vmul.f32 %v1572, %v1581
    %v1583 = vmul.f32 %v1573, %v1581
    %v1584 = vmul.f32 %v1574, %v1581
    %v1585 = vmul.f32 %v1575, %v1581
    %v1586 = vmul.f32 %v1576, %v1581
    %v1587 = vmul.f32 %v1577, %v1581
    %v1588 = vlaneseq
    %v1589 = vshrl.u32 %v1588, 7
    %v1590 = vsub.s32 0, %v1589
    %v1591 = vrot.slane %v35, %v1590
    %v1592 = vadd.f32 %v1582, %v1591
    %v1593 = vadd.f32 %v1583, %v1591
    %v1594 = vadd.f32 %v1584, %v1591
    %v1595 = vadd.f32 %v1585, %v1591
    %v1596 = vadd.f32 %v1586, %v1591
    %v1597 = vadd.f32 %v1587, %v1591
    %v1598 = vpack.c.bf16 %v1593, %v1592
    %v1599 = vpack.c.bf16 %v1595, %v1594
    %v1600 = vpack.c.bf16 %v1597, %v1596
    %v1601 = vld [vmem:[#allocation2 + $0xe0] sm:$0xff]
    %v1602 = vld [vmem:[#allocation2 + $0xe8] sm:$0xff]
    %v1603 = vld [vmem:[#allocation2 + $0xf0] sm:$0xff]
    %v1604 = vld [vmem:[#allocation2 + $0xf8] sm:$0xff]
    %v1609 = vunpack.c.l.b16 %v1601
    %v1610 = vunpack.c.h.b16 %v1601
    %v1611 = vunpack.c.l.b16 %v1602
    %v1612 = vunpack.c.h.b16 %v1602
    %v1613 = vunpack.c.l.b16 %v1603
    %v1614 = vunpack.c.h.b16 %v1603
    %v1615 = vunpack.c.l.b16 %v1604
    %v1616 = vunpack.c.h.b16 %v1604
    %v1617 = vpack.c.b16 %v1611, %v1609
    %v1618 = vpack.c.b16 %v1612, %v1610
    %v1619 = vpack.c.b16 %v1615, %v1613
    %v1620 = vpack.c.b16 %v1616, %v1614
    %v1626 = vsel %vm267, %v1598, 0
    %v1629 = vsel %vm267, %v1599, 0
    %v1632 = vsel %vm267, %v1600, 0
    %1634 = vmatprep.subr.bf16.mxu0 %v1618
    %1635 = vmatpush1.bf16.msra.mxu0 %v1617
    %1636 = vmatprep.subr.bf16.mxu0 %v1620
    %1637 = vmatpush1.bf16.msra.mxu0 %v1619
    %1638 = vmatprep.subr.bf16.mxu0 0
    %1639 = vmatpush1.bf16.msra.mxu0 0
    %1640 = vmatprep.subr.bf16.mxu0 0
    %1641 = vmatpush1.bf16.msra.mxu0 0
    %1642 = vmatprep.subr.bf16.mxu0 0
    %1643 = vmatpush1.bf16.msra.mxu0 0
    %1644 = vmatprep.subr.bf16.mxu0 0
    %1645 = vmatpush1.bf16.msra.mxu0 0
    %1646 = vmatprep.subr.bf16.mxu0 0
    %1647 = vmatpush1.bf16.msra.mxu0 0
    %1648 = vmatprep.subr.bf16.mxu0 0
    %1649 = vmatpush1.bf16.msra.mxu0 0
    %1650 = vmatprep.subr.bf16.mxu0 0
    %1651 = vmatpush1.bf16.msra.mxu0 0
    %1652 = vmatprep.subr.bf16.mxu0 0
    %1653 = vmatpush1.bf16.msra.mxu0 0
    %1654 = vmatprep.subr.bf16.mxu0 0
    %1655 = vmatpush1.bf16.msra.mxu0 0
    %1656 = vmatprep.subr.bf16.mxu0 0
    %1657 = vmatpush1.bf16.msra.mxu0 0
    %1658 = vmatprep.subr.bf16.mxu0 0
    %1659 = vmatpush1.bf16.msra.mxu0 0
    %1660 = vmatprep.subr.bf16.mxu0 0
    %1661 = vmatpush1.bf16.msra.mxu0 0
    %1662 = vmatprep.subr.bf16.mxu0 0
    %1663 = vmatpush1.bf16.msra.mxu0 0
    %1664 = vmatprep.subr.bf16.mxu0 0
    %1665 = vmatpush1.bf16.msra.mxu0 0
    %1666 = vmatprep.mubr.bf16.mxu0 0
    %1667 = vmatmul.mubr.bf16.gmra.mrb[0].mxu0 %v1626
    %v1668 = vpop.f32.mrb[0].mxu0
    %v1669 = vadd.f32 0.0, %v1668
    %v1670 = vpop.f32.mrb[0].mxu0
    %v1671 = vpop.f32.mrb[0].mxu0
    %v1672 = vadd.f32 0.0, %v1671
    %v1673 = vpop.f32.mrb[0].mxu0
    %1674 = vmatprep.mubr.bf16.mxu0 0
    %1675 = vmatmul.mubr.bf16.gmra.mrb[0].mxu0 %v1629
    %v1676 = vpop.f32.mrb[0].mxu0
    %v1677 = vadd.f32 0.0, %v1676
    %v1678 = vpop.f32.mrb[0].mxu0
    %v1679 = vpop.f32.mrb[0].mxu0
    %v1680 = vadd.f32 0.0, %v1679
    %v1681 = vpop.f32.mrb[0].mxu0
    %1682 = vmatprep.mubr.bf16.mxu0 0
    %1683 = vmatmul.mubr.bf16.gmra.mrb[0].mxu0 %v1632
    %v1684 = vpop.f32.mrb[0].mxu0
    %v1685 = vadd.f32 0.0, %v1684
    %v1686 = vpop.f32.mrb[0].mxu0
    %v1687 = vpop.f32.mrb[0].mxu0
    %v1688 = vadd.f32 0.0, %v1687
    %v1689 = vpop.f32.mrb[0].mxu0
    %1690 = vdwg.mxu0
    %v1691 = vmul.f32 %v1669, 0.25
    %v1692 = vmul.f32 %v1672, 0.25
    %v1693 = vmul.f32 %v1677, 0.25
    %v1694 = vmul.f32 %v1680, 0.25
    %v1695 = vmul.f32 %v1685, 0.25
    %v1696 = vmul.f32 %v1688, 0.25
    %v1697 = vpack.c.bf16 %v1692, %v1691
    %v1698 = vpack.c.bf16 %v1694, %v1693
    %v1699 = vpack.c.bf16 %v1696, %v1695
    %v1700 = vpack.c.bf16 %v1672, %v1669
    %v1701 = vpack.c.bf16 %v1680, %v1677
    %v1702 = vpack.c.bf16 %v1688, %v1685
    %1706 = vrot.lane.b32.xlu0 %v1700, 96
    %v1707 = vpop.permute.xlu0 %1706
    %1708 = vrot.lane.b32.xlu0 %v1701, 96
    %v1709 = vpop.permute.xlu0 %1708
    %1710 = vrot.lane.b32.xlu0 %v1702, 96
    %v1711 = vpop.permute.xlu0 %1710
    %v1713 = vsel %vm481, %v1697, 0
    %v1716 = vsel %vm481, %v1698, 0
    %v1719 = vsel %vm481, %v1699, 0
    %v1722 = vsel %vm481, %v1707, 0
    %v1725 = vsel %vm481, %v1709, 0
    %v1728 = vsel %vm481, %v1711, 0
    %1730 = vmatprep.subr.bf16.mxu0 0
    %1731 = vmatpush1.bf16.xpose.msra.mxu0 %v1722
    %1732 = vmatprep.subr.bf16.mxu0 0
    %1733 = vmatpush1.bf16.xpose.msra.mxu0 %v1725
    %1734 = vmatprep.subr.bf16.mxu0 0
    %1735 = vmatpush1.bf16.xpose.msra.mxu0 %v1728
    %1736 = vmatprep.subr.bf16.mxu0 0
    %1737 = vmatpush1.bf16.xpose.msra.mxu0 0
    %1738 = vmatprep.subr.bf16.mxu0 0
    %1739 = vmatpush1.bf16.xpose.msra.mxu0 0
    %1740 = vmatprep.subr.bf16.mxu0 0
    %1741 = vmatpush1.bf16.xpose.msra.mxu0 0
    %1742 = vmatprep.subr.bf16.mxu0 0
    %1743 = vmatpush1.bf16.xpose.msra.mxu0 0
    %1744 = vmatprep.subr.bf16.mxu0 0
    %1745 = vmatpush1.bf16.xpose.msra.mxu0 0
    %1746 = vmatprep.subr.bf16.mxu0 0
    %1747 = vmatpush1.bf16.xpose.msra.mxu0 0
    %1748 = vmatprep.subr.bf16.mxu0 0
    %1749 = vmatpush1.bf16.xpose.msra.mxu0 0
    %1750 = vmatprep.subr.bf16.mxu0 0
    %1751 = vmatpush1.bf16.xpose.msra.mxu0 0
    %1752 = vmatprep.subr.bf16.mxu0 0
    %1753 = vmatpush1.bf16.xpose.msra.mxu0 0
    %1754 = vmatprep.subr.bf16.mxu0 0
    %1755 = vmatpush1.bf16.xpose.msra.mxu0 0
    %1756 = vmatprep.subr.bf16.mxu0 0
    %1757 = vmatpush1.bf16.xpose.msra.mxu0 0
    %1758 = vmatprep.subr.bf16.mxu0 0
    %1759 = vmatpush1.bf16.xpose.msra.mxu0 0
    %1760 = vmatprep.subr.bf16.mxu0 0
    %1761 = vmatpush1.bf16.xpose.msra.mxu0 0
    %1762 = vmatprep.mubr.bf16.mxu0 0
    %1763 = vmatmul.mubr.bf16.gmra.mrb[0].mxu0 %v1713
    %v1764 = vpop.f32.mrb[0].mxu0
    %v1765 = vadd.f32 0.0, %v1764
    %v1766 = vpop.f32.mrb[0].mxu0
    %v1767 = vpop.f32.mrb[0].mxu0
    %v1768 = vadd.f32 0.0, %v1767
    %v1769 = vpop.f32.mrb[0].mxu0
    %1770 = vmatprep.mubr.bf16.mxu0 0
    %1771 = vmatmul.mubr.bf16.gmra.mrb[0].mxu0 %v1716
    %v1772 = vpop.f32.mrb[0].mxu0
    %v1773 = vadd.f32 0.0, %v1772
    %v1774 = vpop.f32.mrb[0].mxu0
    %v1775 = vpop.f32.mrb[0].mxu0
    %v1776 = vadd.f32 0.0, %v1775
    %v1777 = vpop.f32.mrb[0].mxu0
    %1778 = vmatprep.mubr.bf16.mxu0 0
    %1779 = vmatmul.mubr.bf16.gmra.mrb[0].mxu0 %v1719
    %v1780 = vpop.f32.mrb[0].mxu0
    %v1781 = vadd.f32 0.0, %v1780
    %v1782 = vpop.f32.mrb[0].mxu0
    %v1783 = vpop.f32.mrb[0].mxu0
    %v1784 = vadd.f32 0.0, %v1783
    %v1785 = vpop.f32.mrb[0].mxu0
    %1786 = vdwg.mxu0
    %v1787 = vsel %vm261, %v1765, -3.4028235e+38
    %v1788 = vsel %vm262, %v1768, -3.4028235e+38
    %v1789 = vsel %vm263, %v1773, -3.4028235e+38
    %v1790 = vsel %vm264, %v1776, -3.4028235e+38
    %v1791 = vsel %vm265, %v1781, -3.4028235e+38
    %v1792 = vsel %vm266, %v1784, -3.4028235e+38
    %v1793 = vsel %vm563, %v1787, -inf
    %1794 = vmax.xlane.f32.xlu0 %v1793
    %v1795 = vpop.xlane.xlu0 %1794
    %v1796 = vsel %vm563, %v1788, -inf
    %1797 = vmax.xlane.f32.xlu0 %v1796
    %v1798 = vpop.xlane.xlu0 %1797
    %v1799 = vsel %vm563, %v1789, -inf
    %1800 = vmax.xlane.f32.xlu0 %v1799
    %v1801 = vpop.xlane.xlu0 %1800
    %v1802 = vsel %vm563, %v1790, -inf
    %1803 = vmax.xlane.f32.xlu0 %v1802
    %v1804 = vpop.xlane.xlu0 %1803
    %v1805 = vsel %vm563, %v1791, -inf
    %1806 = vmax.xlane.f32.xlu0 %v1805
    %v1807 = vpop.xlane.xlu0 %1806
    %v1808 = vsel %vm563, %v1792, -inf
    %1809 = vmax.xlane.f32.xlu0 %v1808
    %v1810 = vpop.xlane.xlu0 %1809
    %v1811 = vsub.f32 %v1787, %v1795
    %v1812 = vsub.f32 %v1788, %v1798
    %v1813 = vsub.f32 %v1789, %v1801
    %v1814 = vsub.f32 %v1790, %v1804
    %v1815 = vsub.f32 %v1791, %v1807
    %v1816 = vsub.f32 %v1792, %v1810
    %v1817 = vmul.f32 %v1811, 1.442695
    %v1818 = vpow.pop %v1817
    %v1819 = vmul.f32 %v1812, 1.442695
    %v1820 = vpow.pop %v1819
    %v1821 = vmul.f32 %v1813, 1.442695
    %v1822 = vpow.pop %v1821
    %v1823 = vmul.f32 %v1814, 1.442695
    %v1824 = vpow.pop %v1823
    %v1825 = vmul.f32 %v1815, 1.442695
    %v1826 = vpow.pop %v1825
    %v1827 = vmul.f32 %v1816, 1.442695
    %v1828 = vpow.pop %v1827
    %v1829 = vsel %vm563, %v1818, 0.0
    %1830 = vadd.xlane.f32.xlu0 %v1829
    %v1831 = vpop.xlane.xlu0 %1830
    %v1832 = vsel %vm563, %v1820, 0.0
    %1833 = vadd.xlane.f32.xlu0 %v1832
    %v1834 = vpop.xlane.xlu0 %1833
    %v1835 = vsel %vm563, %v1822, 0.0
    %1836 = vadd.xlane.f32.xlu0 %v1835
    %v1837 = vpop.xlane.xlu0 %1836
    %v1838 = vsel %vm563, %v1824, 0.0
    %1839 = vadd.xlane.f32.xlu0 %v1838
    %v1840 = vpop.xlane.xlu0 %1839
    %v1841 = vsel %vm563, %v1826, 0.0
    %1842 = vadd.xlane.f32.xlu0 %v1841
    %v1843 = vpop.xlane.xlu0 %1842
    %v1844 = vsel %vm563, %v1828, 0.0
    %1845 = vadd.xlane.f32.xlu0 %v1844
    %v1846 = vpop.xlane.xlu0 %1845
    %v1847 = vrcp.pop %v1831
    %v1848 = vrcp.pop %v1834
    %v1849 = vrcp.pop %v1837
    %v1850 = vrcp.pop %v1840
    %v1851 = vrcp.pop %v1843
    %v1852 = vrcp.pop %v1846
    %v1853 = vmul.f32 %v1818, %v1847
    %v1854 = vmul.f32 %v1820, %v1848
    %v1855 = vmul.f32 %v1822, %v1849
    %v1856 = vmul.f32 %v1824, %v1850
    %v1857 = vmul.f32 %v1826, %v1851
    %v1858 = vmul.f32 %v1828, %v1852
    %v1859 = vpack.c.bf16 %v1854, %v1853
    %v1860 = vpack.c.bf16 %v1856, %v1855
    %v1861 = vpack.c.bf16 %v1858, %v1857
    %1862 = vrot.lane.b32.xlu0 %v1700, 64
    %v1863 = vpop.permute.xlu0 %1862
    %1864 = vrot.lane.b32.xlu0 %v1701, 64
    %v1865 = vpop.permute.xlu0 %1864
    %1866 = vrot.lane.b32.xlu0 %v1702, 64
    %v1867 = vpop.permute.xlu0 %1866
    %v1872 = vsel %vm563, %v1859, 0
    %v1875 = vsel %vm563, %v1860, 0
    %v1878 = vsel %vm563, %v1861, 0
    %1880 = vmatprep.subr.bf16.mxu0 0
    %1881 = vmatpush1.bf16.msra.mxu0 %v1863
    %1882 = vmatprep.subr.bf16.mxu0 0
    %1883 = vmatpush1.bf16.msra.mxu0 %v1865
    %1884 = vmatprep.subr.bf16.mxu0 0
    %1885 = vmatpush1.bf16.msra.mxu0 %v1867
    %1886 = vmatprep.subr.bf16.mxu0 0
    %1887 = vmatpush1.bf16.msra.mxu0 0
    %1888 = vmatprep.subr.bf16.mxu0 0
    %1889 = vmatpush1.bf16.msra.mxu0 0
    %1890 = vmatprep.subr.bf16.mxu0 0
    %1891 = vmatpush1.bf16.msra.mxu0 0
    %1892 = vmatprep.subr.bf16.mxu0 0
    %1893 = vmatpush1.bf16.msra.mxu0 0
    %1894 = vmatprep.subr.bf16.mxu0 0
    %1895 = vmatpush1.bf16.msra.mxu0 0
    %1896 = vmatprep.subr.bf16.mxu0 0
    %1897 = vmatpush1.bf16.msra.mxu0 0
    %1898 = vmatprep.subr.bf16.mxu0 0
    %1899 = vmatpush1.bf16.msra.mxu0 0
    %1900 = vmatprep.subr.bf16.mxu0 0
    %1901 = vmatpush1.bf16.msra.mxu0 0
    %1902 = vmatprep.subr.bf16.mxu0 0
    %1903 = vmatpush1.bf16.msra.mxu0 0
    %1904 = vmatprep.subr.bf16.mxu0 0
    %1905 = vmatpush1.bf16.msra.mxu0 0
    %1906 = vmatprep.subr.bf16.mxu0 0
    %1907 = vmatpush1.bf16.msra.mxu0 0
    %1908 = vmatprep.subr.bf16.mxu0 0
    %1909 = vmatpush1.bf16.msra.mxu0 0
    %1910 = vmatprep.subr.bf16.mxu0 0
    %1911 = vmatpush1.bf16.msra.mxu0 0
    %1912 = vmatprep.mubr.bf16.mxu0 0
    %1913 = vmatmul.mubr.bf16.gmra.mrb[0].mxu0 %v1872
    %v1914 = vpop.f32.mrb[0].mxu0
    %v1915 = vadd.f32 0.0, %v1914
    %v1916 = vpop.f32.mrb[0].mxu0
    %v1917 = vpop.f32.mrb[0].mxu0
    %v1918 = vadd.f32 0.0, %v1917
    %v1919 = vpop.f32.mrb[0].mxu0
    %1920 = vmatprep.mubr.bf16.mxu0 0
    %1921 = vmatmul.mubr.bf16.gmra.mrb[0].mxu0 %v1875
    %v1922 = vpop.f32.mrb[0].mxu0
    %v1923 = vadd.f32 0.0, %v1922
    %v1924 = vpop.f32.mrb[0].mxu0
    %v1925 = vpop.f32.mrb[0].mxu0
    %v1926 = vadd.f32 0.0, %v1925
    %v1927 = vpop.f32.mrb[0].mxu0
    %1928 = vmatprep.mubr.bf16.mxu0 0
    %1929 = vmatmul.mubr.bf16.gmra.mrb[0].mxu0 %v1878
    %v1930 = vpop.f32.mrb[0].mxu0
    %v1931 = vadd.f32 0.0, %v1930
    %v1932 = vpop.f32.mrb[0].mxu0
    %v1933 = vpop.f32.mrb[0].mxu0
    %v1934 = vadd.f32 0.0, %v1933
    %v1935 = vpop.f32.mrb[0].mxu0
    %1936 = vdwg.mxu0
    %1940 = vrot.lane.b32.xlu0 %v1697, 112
    %v1941 = vpop.permute.xlu0 %1940
    %1942 = vrot.lane.b32.xlu0 %v1698, 112
    %v1943 = vpop.permute.xlu0 %1942
    %1944 = vrot.lane.b32.xlu0 %v1699, 112
    %v1945 = vpop.permute.xlu0 %1944
    %1946 = vrot.lane.b32.xlu0 %v1700, 80
    %v1947 = vpop.permute.xlu0 %1946
    %1948 = vrot.lane.b32.xlu0 %v1701, 80
    %v1949 = vpop.permute.xlu0 %1948
    %1950 = vrot.lane.b32.xlu0 %v1702, 80
    %v1951 = vpop.permute.xlu0 %1950
    %v1953 = vsel %vm481, %v1941, 0
    %v1956 = vsel %vm481, %v1943, 0
    %v1959 = vsel %vm481, %v1945, 0
    %v1962 = vsel %vm481, %v1947, 0
    %v1965 = vsel %vm481, %v1949, 0
    %v1968 = vsel %vm481, %v1951, 0
    %1970 = vmatprep.subr.bf16.mxu0 0
    %1971 = vmatpush1.bf16.xpose.msra.mxu0 %v1962
    %1972 = vmatprep.subr.bf16.mxu0 0
    %1973 = vmatpush1.bf16.xpose.msra.mxu0 %v1965
    %1974 = vmatprep.subr.bf16.mxu0 0
    %1975 = vmatpush1.bf16.xpose.msra.mxu0 %v1968
    %1976 = vmatprep.subr.bf16.mxu0 0
    %1977 = vmatpush1.bf16.xpose.msra.mxu0 0
    %1978 = vmatprep.subr.bf16.mxu0 0
    %1979 = vmatpush1.bf16.xpose.msra.mxu0 0
    %1980 = vmatprep.subr.bf16.mxu0 0
    %1981 = vmatpush1.bf16.xpose.msra.mxu0 0
    %1982 = vmatprep.subr.bf16.mxu0 0
    %1983 = vmatpush1.bf16.xpose.msra.mxu0 0
    %1984 = vmatprep.subr.bf16.mxu0 0
    %1985 = vmatpush1.bf16.xpose.msra.mxu0 0
    %1986 = vmatprep.subr.bf16.mxu0 0
    %1987 = vmatpush1.bf16.xpose.msra.mxu0 0
    %1988 = vmatprep.subr.bf16.mxu0 0
    %1989 = vmatpush1.bf16.xpose.msra.mxu0 0
    %1990 = vmatprep.subr.bf16.mxu0 0
    %1991 = vmatpush1.bf16.xpose.msra.mxu0 0
    %1992 = vmatprep.subr.bf16.mxu0 0
    %1993 = vmatpush1.bf16.xpose.msra.mxu0 0
    %1994 = vmatprep.subr.bf16.mxu0 0
    %1995 = vmatpush1.bf16.xpose.msra.mxu0 0
    %1996 = vmatprep.subr.bf16.mxu0 0
    %1997 = vmatpush1.bf16.xpose.msra.mxu0 0
    %1998 = vmatprep.subr.bf16.mxu0 0
    %1999 = vmatpush1.bf16.xpose.msra.mxu0 0
    %2000 = vmatprep.subr.bf16.mxu0 0
    %2001 = vmatpush1.bf16.xpose.msra.mxu0 0
    %2002 = vmatprep.mubr.bf16.mxu0 0
    %2003 = vmatmul.mubr.bf16.gmra.mrb[0].mxu0 %v1953
    %v2004 = vpop.f32.mrb[0].mxu0
    %v2005 = vadd.f32 0.0, %v2004
    %v2006 = vpop.f32.mrb[0].mxu0
    %v2007 = vpop.f32.mrb[0].mxu0
    %v2008 = vadd.f32 0.0, %v2007
    %v2009 = vpop.f32.mrb[0].mxu0
    %2010 = vmatprep.mubr.bf16.mxu0 0
    %2011 = vmatmul.mubr.bf16.gmra.mrb[0].mxu0 %v1956
    %v2012 = vpop.f32.mrb[0].mxu0
    %v2013 = vadd.f32 0.0, %v2012
    %v2014 = vpop.f32.mrb[0].mxu0
    %v2015 = vpop.f32.mrb[0].mxu0
    %v2016 = vadd.f32 0.0, %v2015
    %v2017 = vpop.f32.mrb[0].mxu0
    %2018 = vmatprep.mubr.bf16.mxu0 0
    %2019 = vmatmul.mubr.bf16.gmra.mrb[0].mxu0 %v1959
    %v2020 = vpop.f32.mrb[0].mxu0
    %v2021 = vadd.f32 0.0, %v2020
    %v2022 = vpop.f32.mrb[0].mxu0
    %v2023 = vpop.f32.mrb[0].mxu0
    %v2024 = vadd.f32 0.0, %v2023
    %v2025 = vpop.f32.mrb[0].mxu0
    %2026 = vdwg.mxu0
    %v2027 = vsel %vm261, %v2005, -3.4028235e+38
    %v2028 = vsel %vm262, %v2008, -3.4028235e+38
    %v2029 = vsel %vm263, %v2013, -3.4028235e+38
    %v2030 = vsel %vm264, %v2016, -3.4028235e+38
    %v2031 = vsel %vm265, %v2021, -3.4028235e+38
    %v2032 = vsel %vm266, %v2024, -3.4028235e+38
    %v2033 = vsel %vm563, %v2027, -inf
    %2034 = vmax.xlane.f32.xlu0 %v2033
    %v2035 = vpop.xlane.xlu0 %2034
    %v2036 = vsel %vm563, %v2028, -inf
    %2037 = vmax.xlane.f32.xlu0 %v2036
    %v2038 = vpop.xlane.xlu0 %2037
    %v2039 = vsel %vm563, %v2029, -inf
    %2040 = vmax.xlane.f32.xlu0 %v2039
    %v2041 = vpop.xlane.xlu0 %2040
    %v2042 = vsel %vm563, %v2030, -inf
    %2043 = vmax.xlane.f32.xlu0 %v2042
    %v2044 = vpop.xlane.xlu0 %2043
    %v2045 = vsel %vm563, %v2031, -inf
    %2046 = vmax.xlane.f32.xlu0 %v2045
    %v2047 = vpop.xlane.xlu0 %2046
    %v2048 = vsel %vm563, %v2032, -inf
    %2049 = vmax.xlane.f32.xlu0 %v2048
    %v2050 = vpop.xlane.xlu0 %2049
    %v2051 = vsub.f32 %v2027, %v2035
    %v2052 = vsub.f32 %v2028, %v2038
    %v2053 = vsub.f32 %v2029, %v2041
    %v2054 = vsub.f32 %v2030, %v2044
    %v2055 = vsub.f32 %v2031, %v2047
    %v2056 = vsub.f32 %v2032, %v2050
    %v2057 = vmul.f32 %v2051, 1.442695
    %v2058 = vpow.pop %v2057
    %v2059 = vmul.f32 %v2052, 1.442695
    %v2060 = vpow.pop %v2059
    %v2061 = vmul.f32 %v2053, 1.442695
    %v2062 = vpow.pop %v2061
    %v2063 = vmul.f32 %v2054, 1.442695
    %v2064 = vpow.pop %v2063
    %v2065 = vmul.f32 %v2055, 1.442695
    %v2066 = vpow.pop %v2065
    %v2067 = vmul.f32 %v2056, 1.442695
    %v2068 = vpow.pop %v2067
    %v2069 = vsel %vm563, %v2058, 0.0
    %2070 = vadd.xlane.f32.xlu0 %v2069
    %v2071 = vpop.xlane.xlu0 %2070
    %v2072 = vsel %vm563, %v2060, 0.0
    %2073 = vadd.xlane.f32.xlu0 %v2072
    %v2074 = vpop.xlane.xlu0 %2073
    %v2075 = vsel %vm563, %v2062, 0.0
    %2076 = vadd.xlane.f32.xlu0 %v2075
    %v2077 = vpop.xlane.xlu0 %2076
    %v2078 = vsel %vm563, %v2064, 0.0
    %2079 = vadd.xlane.f32.xlu0 %v2078
    %v2080 = vpop.xlane.xlu0 %2079
    %v2081 = vsel %vm563, %v2066, 0.0
    %2082 = vadd.xlane.f32.xlu0 %v2081
    %v2083 = vpop.xlane.xlu0 %2082
    %v2084 = vsel %vm563, %v2068, 0.0
    %2085 = vadd.xlane.f32.xlu0 %v2084
    %v2086 = vpop.xlane.xlu0 %2085
    %v2087 = vrcp.pop %v2071
    %v2088 = vrcp.pop %v2074
    %v2089 = vrcp.pop %v2077
    %v2090 = vrcp.pop %v2080
    %v2091 = vrcp.pop %v2083
    %v2092 = vrcp.pop %v2086
    %v2093 = vmul.f32 %v2058, %v2087
    %v2094 = vmul.f32 %v2060, %v2088
    %v2095 = vmul.f32 %v2062, %v2089
    %v2096 = vmul.f32 %v2064, %v2090
    %v2097 = vmul.f32 %v2066, %v2091
    %v2098 = vmul.f32 %v2068, %v2092
    %v2099 = vpack.c.bf16 %v2094, %v2093
    %v2100 = vpack.c.bf16 %v2096, %v2095
    %v2101 = vpack.c.bf16 %v2098, %v2097
    %2102 = vrot.lane.b32.xlu0 %v1700, 48
    %v2103 = vpop.permute.xlu0 %2102
    %2104 = vrot.lane.b32.xlu0 %v1701, 48
    %v2105 = vpop.permute.xlu0 %2104
    %2106 = vrot.lane.b32.xlu0 %v1702, 48
    %v2107 = vpop.permute.xlu0 %2106
    %v2112 = vsel %vm563, %v2099, 0
    %v2115 = vsel %vm563, %v2100, 0
    %v2118 = vsel %vm563, %v2101, 0
    %2120 = vmatprep.subr.bf16.mxu0 0
    %2121 = vmatpush1.bf16.msra.mxu0 %v2103
    %2122 = vmatprep.subr.bf16.mxu0 0
    %2123 = vmatpush1.bf16.msra.mxu0 %v2105
    %2124 = vmatprep.subr.bf16.mxu0 0
    %2125 = vmatpush1.bf16.msra.mxu0 %v2107
    %2126 = vmatprep.subr.bf16.mxu0 0
    %2127 = vmatpush1.bf16.msra.mxu0 0
    %2128 = vmatprep.subr.bf16.mxu0 0
    %2129 = vmatpush1.bf16.msra.mxu0 0
    %2130 = vmatprep.subr.bf16.mxu0 0
    %2131 = vmatpush1.bf16.msra.mxu0 0
    %2132 = vmatprep.subr.bf16.mxu0 0
    %2133 = vmatpush1.bf16.msra.mxu0 0
    %2134 = vmatprep.subr.bf16.mxu0 0
    %2135 = vmatpush1.bf16.msra.mxu0 0
    %2136 = vmatprep.subr.bf16.mxu0 0
    %2137 = vmatpush1.bf16.msra.mxu0 0
    %2138 = vmatprep.subr.bf16.mxu0 0
    %2139 = vmatpush1.bf16.msra.mxu0 0
    %2140 = vmatprep.subr.bf16.mxu0 0
    %2141 = vmatpush1.bf16.msra.mxu0 0
    %2142 = vmatprep.subr.bf16.mxu0 0
    %2143 = vmatpush1.bf16.msra.mxu0 0
    %2144 = vmatprep.subr.bf16.mxu0 0
    %2145 = vmatpush1.bf16.msra.mxu0 0
    %2146 = vmatprep.subr.bf16.mxu0 0
    %2147 = vmatpush1.bf16.msra.mxu0 0
    %2148 = vmatprep.subr.bf16.mxu0 0
    %2149 = vmatpush1.bf16.msra.mxu0 0
    %2150 = vmatprep.subr.bf16.mxu0 0
    %2151 = vmatpush1.bf16.msra.mxu0 0
    %2152 = vmatprep.mubr.bf16.mxu0 0
    %2153 = vmatmul.mubr.bf16.gmra.mrb[0].mxu0 %v2112
    %v2154 = vpop.f32.mrb[0].mxu0
    %v2155 = vadd.f32 0.0, %v2154
    %v2156 = vpop.f32.mrb[0].mxu0
    %v2157 = vpop.f32.mrb[0].mxu0
    %v2158 = vadd.f32 0.0, %v2157
    %v2159 = vpop.f32.mrb[0].mxu0
    %2160 = vmatprep.mubr.bf16.mxu0 0
    %2161 = vmatmul.mubr.bf16.gmra.mrb[0].mxu0 %v2115
    %v2162 = vpop.f32.mrb[0].mxu0
    %v2163 = vadd.f32 0.0, %v2162
    %v2164 = vpop.f32.mrb[0].mxu0
    %v2165 = vpop.f32.mrb[0].mxu0
    %v2166 = vadd.f32 0.0, %v2165
    %v2167 = vpop.f32.mrb[0].mxu0
    %2168 = vmatprep.mubr.bf16.mxu0 0
    %2169 = vmatmul.mubr.bf16.gmra.mrb[0].mxu0 %v2118
    %v2170 = vpop.f32.mrb[0].mxu0
    %v2171 = vadd.f32 0.0, %v2170
    %v2172 = vpop.f32.mrb[0].mxu0
    %v2173 = vpop.f32.mrb[0].mxu0
    %v2174 = vadd.f32 0.0, %v2173
    %v2175 = vpop.f32.mrb[0].mxu0
    %2176 = vdwg.mxu0
    %2183 = vrot.lane.b32.xlu0 %v2155, 16
    %v2184 = vpop.permute.xlu0 %2183
    %2185 = vrot.lane.b32.xlu0 %v2158, 16
    %v2186 = vpop.permute.xlu0 %2185
    %2187 = vrot.lane.b32.xlu0 %v2163, 16
    %v2188 = vpop.permute.xlu0 %2187
    %2189 = vrot.lane.b32.xlu0 %v2166, 16
    %v2190 = vpop.permute.xlu0 %2189
    %2191 = vrot.lane.b32.xlu0 %v2171, 16
    %v2192 = vpop.permute.xlu0 %2191
    %2193 = vrot.lane.b32.xlu0 %v2174, 16
    %v2194 = vpop.permute.xlu0 %2193
    %v2201 = vsel %vm481, %v1915, %v2184
    %v2202 = vsel %vm481, %v1918, %v2186
    %v2203 = vsel %vm481, %v1923, %v2188
    %v2204 = vsel %vm481, %v1926, %v2190
    %v2205 = vsel %vm481, %v1931, %v2192
    %v2206 = vsel %vm481, %v1934, %v2194
    %v2207 = vpack.c.bf16 %v2202, %v2201
    %v2208 = vpack.c.bf16 %v2204, %v2203
    %v2209 = vpack.c.bf16 %v2206, %v2205
    %v2210 = vld [vmem:[#allocation2 + $0x100] sm:$0xff]
    %v2211 = vld [vmem:[#allocation2 + $0x108] sm:$0xff]
    %v2212 = vld [vmem:[#allocation2 + $0x110] sm:$0xff]
    %v2213 = vld [vmem:[#allocation2 + $0x118] sm:$0xff]
    %v2218 = vunpack.c.l.b16 %v2210
    %v2219 = vunpack.c.h.b16 %v2210
    %v2220 = vunpack.c.l.b16 %v2211
    %v2221 = vunpack.c.h.b16 %v2211
    %v2222 = vunpack.c.l.b16 %v2212
    %v2223 = vunpack.c.h.b16 %v2212
    %v2224 = vunpack.c.l.b16 %v2213
    %v2225 = vunpack.c.h.b16 %v2213
    %v2226 = vpack.c.b16 %v2220, %v2218
    %v2227 = vpack.c.b16 %v2221, %v2219
    %v2228 = vpack.c.b16 %v2224, %v2222
    %v2229 = vpack.c.b16 %v2225, %v2223
    %v2235 = vsel %vm267, %v2207, 0
    %v2238 = vsel %vm267, %v2208, 0
    %v2241 = vsel %vm267, %v2209, 0
    %2243 = vmatprep.subr.bf16.mxu0 %v2227
    %2244 = vmatpush1.bf16.msra.mxu0 %v2226
    %2245 = vmatprep.subr.bf16.mxu0 %v2229
    %2246 = vmatpush1.bf16.msra.mxu0 %v2228
    %2247 = vmatprep.subr.bf16.mxu0 0
    %2248 = vmatpush1.bf16.msra.mxu0 0
    %2249 = vmatprep.subr.bf16.mxu0 0
    %2250 = vmatpush1.bf16.msra.mxu0 0
    %2251 = vmatprep.subr.bf16.mxu0 0
    %2252 = vmatpush1.bf16.msra.mxu0 0
    %2253 = vmatprep.subr.bf16.mxu0 0
    %2254 = vmatpush1.bf16.msra.mxu0 0
    %2255 = vmatprep.subr.bf16.mxu0 0
    %2256 = vmatpush1.bf16.msra.mxu0 0
    %2257 = vmatprep.subr.bf16.mxu0 0
    %2258 = vmatpush1.bf16.msra.mxu0 0
    %2259 = vmatprep.subr.bf16.mxu0 0
    %2260 = vmatpush1.bf16.msra.mxu0 0
    %2261 = vmatprep.subr.bf16.mxu0 0
    %2262 = vmatpush1.bf16.msra.mxu0 0
    %2263 = vmatprep.subr.bf16.mxu0 0
    %2264 = vmatpush1.bf16.msra.mxu0 0
    %2265 = vmatprep.subr.bf16.mxu0 0
    %2266 = vmatpush1.bf16.msra.mxu0 0
    %2267 = vmatprep.subr.bf16.mxu0 0
    %2268 = vmatpush1.bf16.msra.mxu0 0
    %2269 = vmatprep.subr.bf16.mxu0 0
    %2270 = vmatpush1.bf16.msra.mxu0 0
    %2271 = vmatprep.subr.bf16.mxu0 0
    %2272 = vmatpush1.bf16.msra.mxu0 0
    %2273 = vmatprep.subr.bf16.mxu0 0
    %2274 = vmatpush1.bf16.msra.mxu0 0
    %2275 = vmatprep.mubr.bf16.mxu0 0
    %2276 = vmatmul.mubr.bf16.gmra.mrb[0].mxu0 %v2235
    %v2277 = vpop.f32.mrb[0].mxu0
    %v2278 = vadd.f32 0.0, %v2277
    %v2279 = vpop.f32.mrb[0].mxu0
    %v2280 = vpop.f32.mrb[0].mxu0
    %v2281 = vadd.f32 0.0, %v2280
    %v2282 = vpop.f32.mrb[0].mxu0
    %2283 = vmatprep.mubr.bf16.mxu0 0
    %2284 = vmatmul.mubr.bf16.gmra.mrb[0].mxu0 %v2238
    %v2285 = vpop.f32.mrb[0].mxu0
    %v2286 = vadd.f32 0.0, %v2285
    %v2287 = vpop.f32.mrb[0].mxu0
    %v2288 = vpop.f32.mrb[0].mxu0
    %v2289 = vadd.f32 0.0, %v2288
    %v2290 = vpop.f32.mrb[0].mxu0
    %2291 = vmatprep.mubr.bf16.mxu0 0
    %2292 = vmatmul.mubr.bf16.gmra.mrb[0].mxu0 %v2241
    %v2293 = vpop.f32.mrb[0].mxu0
    %v2294 = vadd.f32 0.0, %v2293
    %v2295 = vpop.f32.mrb[0].mxu0
    %v2296 = vpop.f32.mrb[0].mxu0
    %v2297 = vadd.f32 0.0, %v2296
    %v2298 = vpop.f32.mrb[0].mxu0
    %2299 = vdwg.mxu0
    %v2300 = vlaneseq
    %v2301 = vshrl.u32 %v2300, 7
    %v2302 = vsub.s32 1, %v2301
    %v2303 = vrot.slane %v35, %v2302
    %v2304 = vadd.f32 %v2278, %v2303
    %v2305 = vadd.f32 %v2281, %v2303
    %v2306 = vadd.f32 %v2286, %v2303
    %v2307 = vadd.f32 %v2289, %v2303
    %v2308 = vadd.f32 %v2294, %v2303
    %v2309 = vadd.f32 %v2297, %v2303
    %v2310 = vadd.f32 %v1494, %v2304
    %v2311 = vadd.f32 %v1495, %v2305
    %v2312 = vadd.f32 %v1496, %v2306
    %v2313 = vadd.f32 %v1497, %v2307
    %v2314 = vadd.f32 %v1498, %v2308
    %v2315 = vadd.f32 %v1499, %v2309
    %v2316 = vsel %vm267, %v2310, 0.0
    %2317 = vadd.xlane.f32.xlu0 %v2316
    %v2318 = vpop.xlane.xlu0 %2317
    %v2319 = vsel %vm267, %v2311, 0.0
    %2320 = vadd.xlane.f32.xlu0 %v2319
    %v2321 = vpop.xlane.xlu0 %2320
    %v2322 = vsel %vm267, %v2312, 0.0
    %2323 = vadd.xlane.f32.xlu0 %v2322
    %v2324 = vpop.xlane.xlu0 %2323
    %v2325 = vsel %vm267, %v2313, 0.0
    %2326 = vadd.xlane.f32.xlu0 %v2325
    %v2327 = vpop.xlane.xlu0 %2326
    %v2328 = vsel %vm267, %v2314, 0.0
    %2329 = vadd.xlane.f32.xlu0 %v2328
    %v2330 = vpop.xlane.xlu0 %2329
    %v2331 = vsel %vm267, %v2315, 0.0
    %2332 = vadd.xlane.f32.xlu0 %v2331
    %v2333 = vpop.xlane.xlu0 %2332
    %v2334 = vmul.f32 %v2318, %v286
    %v2335 = vmul.f32 %v2321, %v286
    %v2336 = vmul.f32 %v2324, %v286
    %v2337 = vmul.f32 %v2327, %v286
    %v2338 = vmul.f32 %v2330, %v286
    %v2339 = vmul.f32 %v2333, %v286
    %v2340 = vsub.f32 %v2310, %v2334
    %v2341 = vsub.f32 %v2311, %v2335
    %v2342 = vsub.f32 %v2312, %v2336
    %v2343 = vsub.f32 %v2313, %v2337
    %v2344 = vsub.f32 %v2314, %v2338
    %v2345 = vsub.f32 %v2315, %v2339
    %v2346 = vmul.f32 %v2340, %v2340
    %v2347 = vmul.f32 %v2341, %v2341
    %v2348 = vmul.f32 %v2342, %v2342
    %v2349 = vmul.f32 %v2343, %v2343
    %v2350 = vmul.f32 %v2344, %v2344
    %v2351 = vmul.f32 %v2345, %v2345
    %v2352 = vsel %vm267, %v2346, 0.0
    %2353 = vadd.xlane.f32.xlu0 %v2352
    %v2354 = vpop.xlane.xlu0 %2353
    %v2355 = vsel %vm267, %v2347, 0.0
    %2356 = vadd.xlane.f32.xlu0 %v2355
    %v2357 = vpop.xlane.xlu0 %2356
    %v2358 = vsel %vm267, %v2348, 0.0
    %2359 = vadd.xlane.f32.xlu0 %v2358
    %v2360 = vpop.xlane.xlu0 %2359
    %v2361 = vsel %vm267, %v2349, 0.0
    %2362 = vadd.xlane.f32.xlu0 %v2361
    %v2363 = vpop.xlane.xlu0 %2362
    %v2364 = vsel %vm267, %v2350, 0.0
    %2365 = vadd.xlane.f32.xlu0 %v2364
    %v2366 = vpop.xlane.xlu0 %2365
    %v2367 = vsel %vm267, %v2351, 0.0
    %2368 = vadd.xlane.f32.xlu0 %v2367
    %v2369 = vpop.xlane.xlu0 %2368
    %v2370 = vmul.f32 %v2354, %v286
    %v2371 = vmul.f32 %v2357, %v286
    %v2372 = vmul.f32 %v2360, %v286
    %v2373 = vmul.f32 %v2363, %v286
    %v2374 = vmul.f32 %v2366, %v286
    %v2375 = vmul.f32 %v2369, %v286
    %v2376 = vadd.f32 %v2370, 1e-05
    %v2377 = vadd.f32 %v2371, 1e-05
    %v2378 = vadd.f32 %v2372, 1e-05
    %v2379 = vadd.f32 %v2373, 1e-05
    %v2380 = vadd.f32 %v2374, 1e-05
    %v2381 = vadd.f32 %v2375, 1e-05
    %v2382 = vrsqrt.pop %v2376
    %v2383 = vrsqrt.pop %v2377
    %v2384 = vrsqrt.pop %v2378
    %v2385 = vrsqrt.pop %v2379
    %v2386 = vrsqrt.pop %v2380
    %v2387 = vrsqrt.pop %v2381
    %v2388 = vmul.f32 %v2340, %v2382
    %v2389 = vmul.f32 %v2341, %v2383
    %v2390 = vmul.f32 %v2342, %v2384
    %v2391 = vmul.f32 %v2343, %v2385
    %v2392 = vmul.f32 %v2344, %v2386
    %v2393 = vmul.f32 %v2345, %v2387
    %v2394 = vlaneseq
    %v2395 = vshrl.u32 %v2394, 7
    %v2396 = vsub.s32 2, %v2395
    %v2397 = vrot.slane %v35, %v2396
    %v2398 = vmul.f32 %v2388, %v2397
    %v2399 = vmul.f32 %v2389, %v2397
    %v2400 = vmul.f32 %v2390, %v2397
    %v2401 = vmul.f32 %v2391, %v2397
    %v2402 = vmul.f32 %v2392, %v2397
    %v2403 = vmul.f32 %v2393, %v2397
    %v2404 = vlaneseq
    %v2405 = vshrl.u32 %v2404, 7
    %v2406 = vsub.s32 3, %v2405
    %v2407 = vrot.slane %v35, %v2406
    %v2408 = vadd.f32 %v2398, %v2407
    %v2409 = vadd.f32 %v2399, %v2407
    %v2410 = vadd.f32 %v2400, %v2407
    %v2411 = vadd.f32 %v2401, %v2407
    %v2412 = vadd.f32 %v2402, %v2407
    %v2413 = vadd.f32 %v2403, %v2407
    %v2414 = vpack.c.bf16 %v2409, %v2408
    %v2415 = vpack.c.bf16 %v2411, %v2410
    %v2416 = vpack.c.bf16 %v2413, %v2412
    %v2417 = vld [vmem:[#allocation2 + $0x120] sm:$0xff]
    %v2418 = vld [vmem:[#allocation2 + $0x128] sm:$0xff]
    %v2419 = vld [vmem:[#allocation2 + $0x130] sm:$0xff]
    %v2420 = vld [vmem:[#allocation2 + $0x138] sm:$0xff]
    %v2421 = vlaneseq
    %v2422 = vshrl.u32 %v2421, 7
    %v2423 = vsub.s32 4, %v2422
    %v2424 = vrot.slane %v35, %v2423
    %v2425 = vlaneseq
    %v2426 = vshrl.u32 %v2425, 7
    %v2427 = vsub.s32 4, %v2426
    %v2428 = vrot.slane %v36, %v2427
    %v2433 = vunpack.c.l.b16 %v2417
    %v2434 = vunpack.c.h.b16 %v2417
    %v2435 = vunpack.c.l.b16 %v2418
    %v2436 = vunpack.c.h.b16 %v2418
    %v2437 = vunpack.c.l.b16 %v2419
    %v2438 = vunpack.c.h.b16 %v2419
    %v2439 = vunpack.c.l.b16 %v2420
    %v2440 = vunpack.c.h.b16 %v2420
    %v2441 = vpack.c.b16 %v2435, %v2433
    %v2442 = vpack.c.b16 %v2436, %v2434
    %v2443 = vpack.c.b16 %v2439, %v2437
    %v2444 = vpack.c.b16 %v2440, %v2438
    %v2450 = vsel %vm267, %v2414, 0
    %v2453 = vsel %vm267, %v2415, 0
    %v2456 = vsel %vm267, %v2416, 0
    %2458 = vmatprep.subr.bf16.mxu0 %v2442
    %2459 = vmatpush1.bf16.msra.mxu0 %v2441
    %2460 = vmatprep.subr.bf16.mxu0 %v2444
    %2461 = vmatpush1.bf16.msra.mxu0 %v2443
    %2462 = vmatprep.subr.bf16.mxu0 0
    %2463 = vmatpush1.bf16.msra.mxu0 0
    %2464 = vmatprep.subr.bf16.mxu0 0
    %2465 = vmatpush1.bf16.msra.mxu0 0
    %2466 = vmatprep.subr.bf16.mxu0 0
    %2467 = vmatpush1.bf16.msra.mxu0 0
    %2468 = vmatprep.subr.bf16.mxu0 0
    %2469 = vmatpush1.bf16.msra.mxu0 0
    %2470 = vmatprep.subr.bf16.mxu0 0
    %2471 = vmatpush1.bf16.msra.mxu0 0
    %2472 = vmatprep.subr.bf16.mxu0 0
    %2473 = vmatpush1.bf16.msra.mxu0 0
    %2474 = vmatprep.subr.bf16.mxu0 0
    %2475 = vmatpush1.bf16.msra.mxu0 0
    %2476 = vmatprep.subr.bf16.mxu0 0
    %2477 = vmatpush1.bf16.msra.mxu0 0
    %2478 = vmatprep.subr.bf16.mxu0 0
    %2479 = vmatpush1.bf16.msra.mxu0 0
    %2480 = vmatprep.subr.bf16.mxu0 0
    %2481 = vmatpush1.bf16.msra.mxu0 0
    %2482 = vmatprep.subr.bf16.mxu0 0
    %2483 = vmatpush1.bf16.msra.mxu0 0
    %2484 = vmatprep.subr.bf16.mxu0 0
    %2485 = vmatpush1.bf16.msra.mxu0 0
    %2486 = vmatprep.subr.bf16.mxu0 0
    %2487 = vmatpush1.bf16.msra.mxu0 0
    %2488 = vmatprep.subr.bf16.mxu0 0
    %2489 = vmatpush1.bf16.msra.mxu0 0
    %2490 = vmatprep.mubr.bf16.mxu0 0
    %2491 = vmatmul.mubr.bf16.gmra.mrb[0].mxu0 %v2450
    %v2492 = vpop.f32.mrb[0].mxu0
    %v2493 = vadd.f32 %v2424, %v2492
    %v2494 = vpop.f32.mrb[0].mxu0
    %v2495 = vadd.f32 %v2428, %v2494
    %v2496 = vpop.f32.mrb[0].mxu0
    %v2497 = vadd.f32 %v2424, %v2496
    %v2498 = vpop.f32.mrb[0].mxu0
    %v2499 = vadd.f32 %v2428, %v2498
    %2500 = vmatprep.mubr.bf16.mxu0 0
    %2501 = vmatmul.mubr.bf16.gmra.mrb[0].mxu0 %v2453
    %v2502 = vpop.f32.mrb[0].mxu0
    %v2503 = vadd.f32 %v2424, %v2502
    %v2504 = vpop.f32.mrb[0].mxu0
    %v2505 = vadd.f32 %v2428, %v2504
    %v2506 = vpop.f32.mrb[0].mxu0
    %v2507 = vadd.f32 %v2424, %v2506
    %v2508 = vpop.f32.mrb[0].mxu0
    %v2509 = vadd.f32 %v2428, %v2508
    %2510 = vmatprep.mubr.bf16.mxu0 0
    %2511 = vmatmul.mubr.bf16.gmra.mrb[0].mxu0 %v2456
    %v2512 = vpop.f32.mrb[0].mxu0
    %v2513 = vadd.f32 %v2424, %v2512
    %v2514 = vpop.f32.mrb[0].mxu0
    %v2515 = vadd.f32 %v2428, %v2514
    %v2516 = vpop.f32.mrb[0].mxu0
    %v2517 = vadd.f32 %v2424, %v2516
    %v2518 = vpop.f32.mrb[0].mxu0
    %v2519 = vadd.f32 %v2428, %v2518
    %2520 = vdwg.mxu0
    %v2521 = vmul.f32 %v2495, 0.5
    %v2522 = vmul.f32 %v2499, 0.5
    %v2523 = vmul.f32 %v2505, 0.5
    %v2524 = vmul.f32 %v2509, 0.5
    %v2525 = vmul.f32 %v2515, 0.5
    %v2526 = vmul.f32 %v2519, 0.5
    %v2527 = vmul.f32 %v2495, 0.70710677
    %v2528 = vmul.f32 %v2499, 0.70710677
    %v2529 = vmul.f32 %v2505, 0.70710677
    %v2530 = vmul.f32 %v2509, 0.70710677
    %v2531 = vmul.f32 %v2515, 0.70710677
    %v2532 = vmul.f32 %v2519, 0.70710677
    %v2533 = verf.f32.pop %v2527
    %v2534 = verf.f32.pop %v2528
    %v2535 = verf.f32.pop %v2529
    %v2536 = verf.f32.pop %v2530
    %v2537 = verf.f32.pop %v2531
    %v2538 = verf.f32.pop %v2532
    %v2539 = vadd.f32 %v2533, 1.0
    %v2540 = vadd.f32 %v2534, 1.0
    %v2541 = vadd.f32 %v2535, 1.0
    %v2542 = vadd.f32 %v2536, 1.0
    %v2543 = vadd.f32 %v2537, 1.0
    %v2544 = vadd.f32 %v2538, 1.0
    %v2545 = vmul.f32 %v2521, %v2539
    %v2546 = vmul.f32 %v2522, %v2540
    %v2547 = vmul.f32 %v2523, %v2541
    %v2548 = vmul.f32 %v2524, %v2542
    %v2549 = vmul.f32 %v2525, %v2543
    %v2550 = vmul.f32 %v2526, %v2544
    %v2551 = vmul.f32 %v2493, %v2545
    %v2552 = vmul.f32 %v2497, %v2546
    %v2553 = vmul.f32 %v2503, %v2547
    %v2554 = vmul.f32 %v2507, %v2548
    %v2555 = vmul.f32 %v2513, %v2549
    %v2556 = vmul.f32 %v2517, %v2550
    %v2557 = vpack.c.bf16 %v2552, %v2551
    %v2558 = vpack.c.bf16 %v2554, %v2553
    %v2559 = vpack.c.bf16 %v2556, %v2555
    %v2560 = vld [vmem:[#allocation2 + $0x140] sm:$0xff]
    %v2561 = vld [vmem:[#allocation2 + $0x148] sm:$0xff]
    %v2562 = vld [vmem:[#allocation2 + $0x150] sm:$0xff]
    %v2563 = vld [vmem:[#allocation2 + $0x158] sm:$0xff]
    %v2564 = vld [vmem:[#allocation2 + $0x160] sm:$0xff]
    %v2565 = vld [vmem:[#allocation2 + $0x168] sm:$0xff]
    %v2566 = vld [vmem:[#allocation2 + $0x170] sm:$0xff]
    %v2567 = vld [vmem:[#allocation2 + $0x178] sm:$0xff]
    %v2568 = vld [vmem:[#allocation2 + $0x180] sm:$0xff]
    %v2569 = vld [vmem:[#allocation2 + $0x188] sm:$0xff]
    %v2570 = vld [vmem:[#allocation2 + $0x190] sm:$0xff]
    %v2571 = vld [vmem:[#allocation2 + $0x198] sm:$0xff]
    %v2572 = vld [vmem:[#allocation2 + $0x1a0] sm:$0xff]
    %v2573 = vld [vmem:[#allocation2 + $0x1a8] sm:$0xff]
    %v2574 = vld [vmem:[#allocation2 + $0x1b0] sm:$0xff]
    %v2575 = vld [vmem:[#allocation2 + $0x1b8] sm:$0xff]
    %v2592 = vunpack.c.l.b16 %v2560
    %v2593 = vunpack.c.h.b16 %v2560
    %v2594 = vunpack.c.l.b16 %v2561
    %v2595 = vunpack.c.h.b16 %v2561
    %v2596 = vunpack.c.l.b16 %v2562
    %v2597 = vunpack.c.h.b16 %v2562
    %v2598 = vunpack.c.l.b16 %v2563
    %v2599 = vunpack.c.h.b16 %v2563
    %v2600 = vunpack.c.l.b16 %v2564
    %v2601 = vunpack.c.h.b16 %v2564
    %v2602 = vunpack.c.l.b16 %v2565
    %v2603 = vunpack.c.h.b16 %v2565
    %v2604 = vunpack.c.l.b16 %v2566
    %v2605 = vunpack.c.h.b16 %v2566
    %v2606 = vunpack.c.l.b16 %v2567
    %v2607 = vunpack.c.h.b16 %v2567
    %v2608 = vunpack.c.l.b16 %v2568
    %v2609 = vunpack.c.h.b16 %v2568
    %v2610 = vunpack.c.l.b16 %v2569
    %v2611 = vunpack.c.h.b16 %v2569
    %v2612 = vunpack.c.l.b16 %v2570
    %v2613 = vunpack.c.h.b16 %v2570
    %v2614 = vunpack.c.l.b16 %v2571
    %v2615 = vunpack.c.h.b16 %v2571
    %v2616 = vunpack.c.l.b16 %v2572
    %v2617 = vunpack.c.h.b16 %v2572
    %v2618 = vunpack.c.l.b16 %v2573
    %v2619 = vunpack.c.h.b16 %v2573
    %v2620 = vunpack.c.l.b16 %v2574
    %v2621 = vunpack.c.h.b16 %v2574
    %v2622 = vunpack.c.l.b16 %v2575
    %v2623 = vunpack.c.h.b16 %v2575
    %v2624 = vpack.c.b16 %v2594, %v2592
    %v2625 = vpack.c.b16 %v2595, %v2593
    %v2626 = vpack.c.b16 %v2598, %v2596
    %v2627 = vpack.c.b16 %v2599, %v2597
    %v2628 = vpack.c.b16 %v2602, %v2600
    %v2629 = vpack.c.b16 %v2603, %v2601
    %v2630 = vpack.c.b16 %v2606, %v2604
    %v2631 = vpack.c.b16 %v2607, %v2605
    %v2632 = vpack.c.b16 %v2610, %v2608
    %v2633 = vpack.c.b16 %v2611, %v2609
    %v2634 = vpack.c.b16 %v2614, %v2612
    %v2635 = vpack.c.b16 %v2615, %v2613
    %v2636 = vpack.c.b16 %v2618, %v2616
    %v2637 = vpack.c.b16 %v2619, %v2617
    %v2638 = vpack.c.b16 %v2622, %v2620
    %v2639 = vpack.c.b16 %v2623, %v2621
    %2656 = vmatprep.subr.bf16.mxu0 %v2625
    %2657 = vmatpush1.bf16.msra.mxu0 %v2624
    %2658 = vmatprep.subr.bf16.mxu0 %v2627
    %2659 = vmatpush1.bf16.msra.mxu0 %v2626
    %2660 = vmatprep.subr.bf16.mxu0 %v2629
    %2661 = vmatpush1.bf16.msra.mxu0 %v2628
    %2662 = vmatprep.subr.bf16.mxu0 %v2631
    %2663 = vmatpush1.bf16.msra.mxu0 %v2630
    %2664 = vmatprep.subr.bf16.mxu0 %v2633
    %2665 = vmatpush1.bf16.msra.mxu0 %v2632
    %2666 = vmatprep.subr.bf16.mxu0 %v2635
    %2667 = vmatpush1.bf16.msra.mxu0 %v2634
    %2668 = vmatprep.subr.bf16.mxu0 %v2637
    %2669 = vmatpush1.bf16.msra.mxu0 %v2636
    %2670 = vmatprep.subr.bf16.mxu0 %v2639
    %2671 = vmatpush1.bf16.msra.mxu0 %v2638
    %2672 = vmatprep.subr.bf16.mxu0 0
    %2673 = vmatpush1.bf16.msra.mxu0 0
    %2674 = vmatprep.subr.bf16.mxu0 0
    %2675 = vmatpush1.bf16.msra.mxu0 0
    %2676 = vmatprep.subr.bf16.mxu0 0
    %2677 = vmatpush1.bf16.msra.mxu0 0
    %2678 = vmatprep.subr.bf16.mxu0 0
    %2679 = vmatpush1.bf16.msra.mxu0 0
    %2680 = vmatprep.subr.bf16.mxu0 0
    %2681 = vmatpush1.bf16.msra.mxu0 0
    %2682 = vmatprep.subr.bf16.mxu0 0
    %2683 = vmatpush1.bf16.msra.mxu0 0
    %2684 = vmatprep.subr.bf16.mxu0 0
    %2685 = vmatpush1.bf16.msra.mxu0 0
    %2686 = vmatprep.subr.bf16.mxu0 0
    %2687 = vmatpush1.bf16.msra.mxu0 0
    %2688 = vmatprep.mubr.bf16.mxu0 0
    %2689 = vmatmul.mubr.bf16.gmra.mrb[0].mxu0 %v2557
    %v2690 = vpop.f32.mrb[0].mxu0
    %v2691 = vadd.f32 0.0, %v2690
    %v2692 = vpop.f32.mrb[0].mxu0
    %v2693 = vpop.f32.mrb[0].mxu0
    %v2694 = vadd.f32 0.0, %v2693
    %v2695 = vpop.f32.mrb[0].mxu0
    %2696 = vmatprep.mubr.bf16.mxu0 0
    %2697 = vmatmul.mubr.bf16.gmra.mrb[0].mxu0 %v2558
    %v2698 = vpop.f32.mrb[0].mxu0
    %v2699 = vadd.f32 0.0, %v2698
    %v2700 = vpop.f32.mrb[0].mxu0
    %v2701 = vpop.f32.mrb[0].mxu0
    %v2702 = vadd.f32 0.0, %v2701
    %v2703 = vpop.f32.mrb[0].mxu0
    %2704 = vmatprep.mubr.bf16.mxu0 0
    %2705 = vmatmul.mubr.bf16.gmra.mrb[0].mxu0 %v2559
    %v2706 = vpop.f32.mrb[0].mxu0
    %v2707 = vadd.f32 0.0, %v2706
    %v2708 = vpop.f32.mrb[0].mxu0
    %v2709 = vpop.f32.mrb[0].mxu0
    %v2710 = vadd.f32 0.0, %v2709
    %v2711 = vpop.f32.mrb[0].mxu0
    %2712 = vdwg.mxu0
    %v2713 = vlaneseq
    %v2714 = vshrl.u32 %v2713, 7
    %v2715 = vsub.s32 5, %v2714
    %v2716 = vrot.slane %v35, %v2715
    %v2717 = vadd.f32 %v2691, %v2716
    %v2718 = vadd.f32 %v2694, %v2716
    %v2719 = vadd.f32 %v2699, %v2716
    %v2720 = vadd.f32 %v2702, %v2716
    %v2721 = vadd.f32 %v2707, %v2716
    %v2722 = vadd.f32 %v2710, %v2716
    %v2723 = vadd.f32 %v2310, %v2717
    %v2724 = vadd.f32 %v2311, %v2718
    %v2725 = vadd.f32 %v2312, %v2719
    %v2726 = vadd.f32 %v2313, %v2720
    %v2727 = vadd.f32 %v2314, %v2721
    %v2728 = vadd.f32 %v2315, %v2722
    %v2729 = vsel %vm267, %v2723, 0.0
    %2730 = vadd.xlane.f32.xlu0 %v2729
    %v2731 = vpop.xlane.xlu0 %2730
    %v2732 = vsel %vm267, %v2724, 0.0
    %2733 = vadd.xlane.f32.xlu0 %v2732
    %v2734 = vpop.xlane.xlu0 %2733
    %v2735 = vsel %vm267, %v2725, 0.0
    %2736 = vadd.xlane.f32.xlu0 %v2735
    %v2737 = vpop.xlane.xlu0 %2736
    %v2738 = vsel %vm267, %v2726, 0.0
    %2739 = vadd.xlane.f32.xlu0 %v2738
    %v2740 = vpop.xlane.xlu0 %2739
    %v2741 = vsel %vm267, %v2727, 0.0
    %2742 = vadd.xlane.f32.xlu0 %v2741
    %v2743 = vpop.xlane.xlu0 %2742
    %v2744 = vsel %vm267, %v2728, 0.0
    %2745 = vadd.xlane.f32.xlu0 %v2744
    %v2746 = vpop.xlane.xlu0 %2745
    %v2747 = vmul.f32 %v2731, %v286
    %v2748 = vmul.f32 %v2734, %v286
    %v2749 = vmul.f32 %v2737, %v286
    %v2750 = vmul.f32 %v2740, %v286
    %v2751 = vmul.f32 %v2743, %v286
    %v2752 = vmul.f32 %v2746, %v286
    %v2753 = vsub.f32 %v2723, %v2747
    %v2754 = vsub.f32 %v2724, %v2748
    %v2755 = vsub.f32 %v2725, %v2749
    %v2756 = vsub.f32 %v2726, %v2750
    %v2757 = vsub.f32 %v2727, %v2751
    %v2758 = vsub.f32 %v2728, %v2752
    %v2759 = vmul.f32 %v2753, %v2753
    %v2760 = vmul.f32 %v2754, %v2754
    %v2761 = vmul.f32 %v2755, %v2755
    %v2762 = vmul.f32 %v2756, %v2756
    %v2763 = vmul.f32 %v2757, %v2757
    %v2764 = vmul.f32 %v2758, %v2758
    %v2765 = vsel %vm267, %v2759, 0.0
    %2766 = vadd.xlane.f32.xlu0 %v2765
    %v2767 = vpop.xlane.xlu0 %2766
    %v2768 = vsel %vm267, %v2760, 0.0
    %2769 = vadd.xlane.f32.xlu0 %v2768
    %v2770 = vpop.xlane.xlu0 %2769
    %v2771 = vsel %vm267, %v2761, 0.0
    %2772 = vadd.xlane.f32.xlu0 %v2771
    %v2773 = vpop.xlane.xlu0 %2772
    %v2774 = vsel %vm267, %v2762, 0.0
    %2775 = vadd.xlane.f32.xlu0 %v2774
    %v2776 = vpop.xlane.xlu0 %2775
    %v2777 = vsel %vm267, %v2763, 0.0
    %2778 = vadd.xlane.f32.xlu0 %v2777
    %v2779 = vpop.xlane.xlu0 %2778
    %v2780 = vsel %vm267, %v2764, 0.0
    %2781 = vadd.xlane.f32.xlu0 %v2780
    %v2782 = vpop.xlane.xlu0 %2781
    %v2783 = vmul.f32 %v2767, %v286
    %v2784 = vmul.f32 %v2770, %v286
    %v2785 = vmul.f32 %v2773, %v286
    %v2786 = vmul.f32 %v2776, %v286
    %v2787 = vmul.f32 %v2779, %v286
    %v2788 = vmul.f32 %v2782, %v286
    %v2789 = vadd.f32 %v2783, 1e-05
    %v2790 = vadd.f32 %v2784, 1e-05
    %v2791 = vadd.f32 %v2785, 1e-05
    %v2792 = vadd.f32 %v2786, 1e-05
    %v2793 = vadd.f32 %v2787, 1e-05
    %v2794 = vadd.f32 %v2788, 1e-05
    %v2795 = vrsqrt.pop %v2789
    %v2796 = vrsqrt.pop %v2790
    %v2797 = vrsqrt.pop %v2791
    %v2798 = vrsqrt.pop %v2792
    %v2799 = vrsqrt.pop %v2793
    %v2800 = vrsqrt.pop %v2794
    %v2801 = vmul.f32 %v2753, %v2795
    %v2802 = vmul.f32 %v2754, %v2796
    %v2803 = vmul.f32 %v2755, %v2797
    %v2804 = vmul.f32 %v2756, %v2798
    %v2805 = vmul.f32 %v2757, %v2799
    %v2806 = vmul.f32 %v2758, %v2800
    %v2807 = vlaneseq
    %v2808 = vshrl.u32 %v2807, 7
    %v2809 = vsub.s32 6, %v2808
    %v2810 = vrot.slane %v35, %v2809
    %v2811 = vmul.f32 %v2801, %v2810
    %v2812 = vmul.f32 %v2802, %v2810
    %v2813 = vmul.f32 %v2803, %v2810
    %v2814 = vmul.f32 %v2804, %v2810
    %v2815 = vmul.f32 %v2805, %v2810
    %v2816 = vmul.f32 %v2806, %v2810
    %v2817 = vlaneseq
    %v2818 = vshrl.u32 %v2817, 7
    %v2819 = vsub.s32 7, %v2818
    %v2820 = vrot.slane %v35, %v2819
    %v2821 = vadd.f32 %v2811, %v2820
    %v2822 = vadd.f32 %v2812, %v2820
    %v2823 = vadd.f32 %v2813, %v2820
    %v2824 = vadd.f32 %v2814, %v2820
    %v2825 = vadd.f32 %v2815, %v2820
    %v2826 = vadd.f32 %v2816, %v2820
    %v2827 = vpack.c.bf16 %v2822, %v2821
    %v2828 = vpack.c.bf16 %v2824, %v2823
    %v2829 = vpack.c.bf16 %v2826, %v2825
    %v2830 = vld [vmem:[#allocation2 + $0x1c0] sm:$0xff]
    %v2831 = vld [vmem:[#allocation2 + $0x1c8] sm:$0xff]
    %v2832 = vld [vmem:[#allocation2 + $0x1d0] sm:$0xff]
    %v2833 = vld [vmem:[#allocation2 + $0x1d8] sm:$0xff]
    %v2834 = vlaneseq
    %v2835 = vshrl.u32 %v2834, 7
    %v2836 = vsub.s32 0, %v2835
    %v2837 = vrot.slane %v37, %v2836
    %v2838 = vlaneseq
    %v2839 = vshrl.u32 %v2838, 7
    %v2840 = vsub.s32 0, %v2839
    %v2841 = vrot.slane %v38, %v2840
    %v2846 = vunpack.c.l.b16 %v2830
    %v2847 = vunpack.c.h.b16 %v2830
    %v2848 = vunpack.c.l.b16 %v2831
    %v2849 = vunpack.c.h.b16 %v2831
    %v2850 = vunpack.c.l.b16 %v2832
    %v2851 = vunpack.c.h.b16 %v2832
    %v2852 = vunpack.c.l.b16 %v2833
    %v2853 = vunpack.c.h.b16 %v2833
    %v2854 = vpack.c.b16 %v2848, %v2846
    %v2855 = vpack.c.b16 %v2849, %v2847
    %v2856 = vpack.c.b16 %v2852, %v2850
    %v2857 = vpack.c.b16 %v2853, %v2851
    %v2863 = vsel %vm267, %v2827, 0
    %v2866 = vsel %vm267, %v2828, 0
    %v2869 = vsel %vm267, %v2829, 0
    %2871 = vmatprep.subr.bf16.mxu0 %v2855
    %2872 = vmatpush1.bf16.msra.mxu0 %v2854
    %2873 = vmatprep.subr.bf16.mxu0 %v2857
    %2874 = vmatpush1.bf16.msra.mxu0 %v2856
    %2875 = vmatprep.subr.bf16.mxu0 0
    %2876 = vmatpush1.bf16.msra.mxu0 0
    %2877 = vmatprep.subr.bf16.mxu0 0
    %2878 = vmatpush1.bf16.msra.mxu0 0
    %2879 = vmatprep.subr.bf16.mxu0 0
    %2880 = vmatpush1.bf16.msra.mxu0 0
    %2881 = vmatprep.subr.bf16.mxu0 0
    %2882 = vmatpush1.bf16.msra.mxu0 0
    %2883 = vmatprep.subr.bf16.mxu0 0
    %2884 = vmatpush1.bf16.msra.mxu0 0
    %2885 = vmatprep.subr.bf16.mxu0 0
    %2886 = vmatpush1.bf16.msra.mxu0 0
    %2887 = vmatprep.subr.bf16.mxu0 0
    %2888 = vmatpush1.bf16.msra.mxu0 0
    %2889 = vmatprep.subr.bf16.mxu0 0
    %2890 = vmatpush1.bf16.msra.mxu0 0
    %2891 = vmatprep.subr.bf16.mxu0 0
    %2892 = vmatpush1.bf16.msra.mxu0 0
    %2893 = vmatprep.subr.bf16.mxu0 0
    %2894 = vmatpush1.bf16.msra.mxu0 0
    %2895 = vmatprep.subr.bf16.mxu0 0
    %2896 = vmatpush1.bf16.msra.mxu0 0
    %2897 = vmatprep.subr.bf16.mxu0 0
    %2898 = vmatpush1.bf16.msra.mxu0 0
    %2899 = vmatprep.subr.bf16.mxu0 0
    %2900 = vmatpush1.bf16.msra.mxu0 0
    %2901 = vmatprep.subr.bf16.mxu0 0
    %2902 = vmatpush1.bf16.msra.mxu0 0
    %2903 = vmatprep.mubr.bf16.mxu0 0
    %2904 = vmatmul.mubr.bf16.gmra.mrb[0].mxu0 %v2863
    %v2905 = vpop.f32.mrb[0].mxu0
    %v2906 = vadd.f32 %v2837, %v2905
    %v2907 = vpop.f32.mrb[0].mxu0
    %v2908 = vadd.f32 %v2841, %v2907
    %v2909 = vpop.f32.mrb[0].mxu0
    %v2910 = vadd.f32 %v2837, %v2909
    %v2911 = vpop.f32.mrb[0].mxu0
    %v2912 = vadd.f32 %v2841, %v2911
    %2913 = vmatprep.mubr.bf16.mxu0 0
    %2914 = vmatmul.mubr.bf16.gmra.mrb[0].mxu0 %v2866
    %v2915 = vpop.f32.mrb[0].mxu0
    %v2916 = vadd.f32 %v2837, %v2915
    %v2917 = vpop.f32.mrb[0].mxu0
    %v2918 = vadd.f32 %v2841, %v2917
    %v2919 = vpop.f32.mrb[0].mxu0
    %v2920 = vadd.f32 %v2837, %v2919
    %v2921 = vpop.f32.mrb[0].mxu0
    %v2922 = vadd.f32 %v2841, %v2921
    %2923 = vmatprep.mubr.bf16.mxu0 0
    %2924 = vmatmul.mubr.bf16.gmra.mrb[0].mxu0 %v2869
    %v2925 = vpop.f32.mrb[0].mxu0
    %v2926 = vadd.f32 %v2837, %v2925
    %v2927 = vpop.f32.mrb[0].mxu0
    %v2928 = vadd.f32 %v2841, %v2927
    %v2929 = vpop.f32.mrb[0].mxu0
    %v2930 = vadd.f32 %v2837, %v2929
    %v2931 = vpop.f32.mrb[0].mxu0
    %v2932 = vadd.f32 %v2841, %v2931
    %2933 = vdwg.mxu0
    %vm2934 = vcmp.lt.s32.totalorder %v230, 8
    %vm2935 = vcmp.lt.s32.totalorder %v231, 8
    %vm2936 = vcmp.lt.s32.totalorder %v232, 8
    %vm2937 = vcmp.lt.s32.totalorder %v233, 8
    %vm2938 = vcmp.lt.s32.totalorder %v234, 8
    %vm2939 = vcmp.lt.s32.totalorder %v235, 8
    %vm2940 = vcmp.lt.s32.totalorder %v230, 32
    %vm2941 = vcmp.lt.s32.totalorder %v231, 32
    %vm2942 = vcmp.lt.s32.totalorder %v232, 32
    %vm2943 = vcmp.lt.s32.totalorder %v233, 32
    %vm2944 = vcmp.lt.s32.totalorder %v234, 32
    %vm2945 = vcmp.lt.s32.totalorder %v235, 32
    %vm2946 = vmand %vm242, %vm2940
    %vm2947 = vmand %vm243, %vm2941
    %vm2948 = vmand %vm244, %vm2942
    %vm2949 = vmand %vm245, %vm2943
    %vm2950 = vmand %vm246, %vm2944
    %vm2951 = vmand %vm247, %vm2945
    %vm2952 = vmor %vm2934, %vm2946
    %vm2953 = vmor %vm2935, %vm2947
    %vm2954 = vmor %vm2936, %vm2948
    %vm2955 = vmor %vm2937, %vm2949
    %vm2956 = vmor %vm2938, %vm2950
    %vm2957 = vmor %vm2939, %vm2951
    %vm2958 = vcmp.ge.s32.totalorder %v46, 72
    %vm2959 = vcmp.ge.s32.totalorder %v47, 72
    %vm2960 = vmand %vm2952, %vm2958
    %vm2961 = vmand %vm2952, %vm2959
    %vm2962 = vmand %vm2953, %vm2958
    %vm2963 = vmand %vm2953, %vm2959
    %vm2964 = vmand %vm2954, %vm2958
    %vm2965 = vmand %vm2954, %vm2959
    %vm2966 = vmand %vm2955, %vm2958
    %vm2967 = vmand %vm2955, %vm2959
    %vm2968 = vmand %vm2956, %vm2958
    %vm2969 = vmand %vm2956, %vm2959
    %vm2970 = vmand %vm2957, %vm2958
    %vm2971 = vmand %vm2957, %vm2959
    %vm2972 = vmxor %vm2952, 1
    %vm2973 = vmxor %vm2953, 1
    %vm2974 = vmxor %vm2954, 1
    %vm2975 = vmxor %vm2955, 1
    %vm2976 = vmxor %vm2956, 1
    %vm2977 = vmxor %vm2957, 1
    %vm2978 = vcmp.lt.s32.totalorder %v46, 72
    %vm2979 = vcmp.lt.s32.totalorder %v47, 72
    %vm2980 = vmand %vm2972, %vm2978
    %vm2981 = vmand %vm2972, %vm2979
    %vm2982 = vmand %vm2973, %vm2978
    %vm2983 = vmand %vm2973, %vm2979
    %vm2984 = vmand %vm2974, %vm2978
    %vm2985 = vmand %vm2974, %vm2979
    %vm2986 = vmand %vm2975, %vm2978
    %vm2987 = vmand %vm2975, %vm2979
    %vm2988 = vmand %vm2976, %vm2978
    %vm2989 = vmand %vm2976, %vm2979
    %vm2990 = vmand %vm2977, %vm2978
    %vm2991 = vmand %vm2977, %vm2979
    %vm2992 = vmor %vm2960, %vm2980
    %vm2993 = vmor %vm2961, %vm2981
    %vm2994 = vmor %vm2962, %vm2982
    %vm2995 = vmor %vm2963, %vm2983
    %vm2996 = vmor %vm2964, %vm2984
    %vm2997 = vmor %vm2965, %vm2985
    %vm2998 = vmor %vm2966, %vm2986
    %vm2999 = vmor %vm2967, %vm2987
    %vm3000 = vmor %vm2968, %vm2988
    %vm3001 = vmor %vm2969, %vm2989
    %vm3002 = vmor %vm2970, %vm2990
    %vm3003 = vmor %vm2971, %vm2991
    %v3004 = vsel %vm2992, -3.4028235e+38, %v2906
    %v3005 = vsel %vm2993, -3.4028235e+38, %v2908
    %v3006 = vsel %vm2994, -3.4028235e+38, %v2910
    %v3007 = vsel %vm2995, -3.4028235e+38, %v2912
    %v3008 = vsel %vm2996, -3.4028235e+38, %v2916
    %v3009 = vsel %vm2997, -3.4028235e+38, %v2918
    %v3010 = vsel %vm2998, -3.4028235e+38, %v2920
    %v3011 = vsel %vm2999, -3.4028235e+38, %v2922
    %v3012 = vsel %vm3000, -3.4028235e+38, %v2926
    %v3013 = vsel %vm3001, -3.4028235e+38, %v2928
    %v3014 = vsel %vm3002, -3.4028235e+38, %v2930
    %v3015 = vsel %vm3003, -3.4028235e+38, %v2932
    %3016 = vst [vmem:[#allocation5] sm:$0xff] %v3004
    %3017 = vst [vmem:[#allocation5 + $0x8] sm:$0xff] %v3005
    %3018 = vst [vmem:[#allocation5 + $0x10] sm:$0xff] %v3006
    %3019 = vst [vmem:[#allocation5 + $0x18] sm:$0xff] %v3007
    %3020 = vst [vmem:[#allocation5 + $0x20] sm:$0xff] %v3008
    %3021 = vst [vmem:[#allocation5 + $0x28] sm:$0xff] %v3009
    %3022 = vst [vmem:[#allocation5 + $0x30] sm:$0xff] %v3010
    %3023 = vst [vmem:[#allocation5 + $0x38] sm:$0xff] %v3011
    %3024 = vst [vmem:[#allocation5 + $0x40] sm:$0xff] %v3012
    %3025 = vst [vmem:[#allocation5 + $0x48] sm:$0xff] %v3013
    %3026 = vst [vmem:[#allocation5 + $0x50] sm:$0xff] %v3014
    %3027 = vst [vmem:[#allocation5 + $0x58] sm:$0xff] %v3015
    // Predicated region
    $region22: #{dalle_forward.1} parent=1 // pred_check
      _
    $region23: #{dalle_forward.1} parent=1 // pred_check_branch
      %3029 = sbr.rel (0) target = $region25
    $region24: #{dalle_forward.1} parent=1 // pred_region
      %s3031 = ssub.s32 1536, 1536
      %3032 = vsyncadd [#allocation4], %s3031
      %s3033 = sshll.u32 [#allocation5], 4
      %s3034 = int_to_ptr.vmem [resolvable:$true] %s3033
      %3039 = dma.vmem_to_hbm [thread:$0]  %s3034, 1536, %s4, [#allocation4], 256, 256, 16
    $region25: #{dalle_forward.1} parent=1 // pred_fallthru
      _
    // Predicated region
    $region26: #{dalle_forward.1} parent=1 // pred_check
      _
    $region27: #{dalle_forward.1} parent=1 // pred_check_branch
      %3041 = sbr.rel (0) target = $region29
    $region28: #{dalle_forward.1} parent=1 // pred_region
      %3042 = dma.done [#allocation4], 1536
    $region29: #{dalle_forward.1} parent=1 // pred_fallthru
      _
    %3043 = vsyncpa [#allocation3], 1
    %3044 = vsyncpa [#allocation4], 1

</llo_original>
